<compile_context>
chip_gen: v7x
topology: tpu7x:2x2x1
jax: 0.10.0
libtpu: 0.0.40
codegen_flags: <defaults>
</compile_context>

<pallas_src>
import jax
import jax.numpy as jnp
from jax.experimental import pallas as pl
from jax.experimental.pallas import tpu as pltpu


def _bahdanau_kernel(q_ref, wq_ref, v_ref, pm_ref, out_ref):
    """Fused Bahdanau attention scores for one time tile (all batches at once).

    q_ref  : (B, D)       query
    wq_ref : (D, D)       query_layer.weight^T  (so pq = q @ wq_ref)
    v_ref  : (1, D)       v.weight
    pm_ref : (B, TT, D)   processed_memory time tile
    out_ref: (B, TT)      alignment tile (time on the lane axis -> dense stores)
    """
    # tiny (B,D)@(D,D) projection on the MXU, recomputed per tile (negligible cost)
    pq = jnp.dot(q_ref[...], wq_ref[...], preferred_element_type=jnp.float32)  # (B, D)
    h = jnp.tanh(pm_ref[...] + pq[:, None, :])                                 # (B, TT, D)
    # score_{b,t} = sum_d v_d * h_{b,t,d}  -> lane reduction, result is lane-dense in T
    out_ref[...] = jnp.sum(h * v_ref[...][None, :, :], axis=-1)                # (B, TT)


def bahdanau_attention(query, processed_memory, wq, v_w, *, time_tile=256):
    """Pallas implementation of BahdanauAttention.forward.

    query            : (B, D) or (B, 1, D)
    processed_memory : (B, T, D)
    wq               : (D, D)  -- query_layer.weight (PyTorch layout: out x in)
    v_w              : (1, D)  -- v.weight
    returns          : (B, T)  alignment scores
    """
    if query.ndim == 3:               # (B, 1, D) -> (B, D); broadcast over time is implicit
        query = query[:, 0, :]
    query = query.astype(jnp.float32)
    pm = processed_memory.astype(jnp.float32)
    B, T, D = pm.shape

    tt = min(time_tile, T)
    Tp = pl.cdiv(T, tt) * tt
    if Tp != T:                       # pad only when needed (scores for pad rows are dropped)
        pm = jnp.pad(pm, ((0, 0), (0, Tp - T), (0, 0)))

    wq_t = wq.astype(jnp.float32).T           # (D, D):  pq = q @ Wq^T
    v_row = v_w.astype(jnp.float32).reshape(1, D)

    out = pl.pallas_call(
        _bahdanau_kernel,
        out_shape=jax.ShapeDtypeStruct((B, Tp), jnp.float32),
        grid=(Tp // tt,),
        in_specs=[
            pl.BlockSpec((B, D), lambda t: (0, 0)),      # query (resident)
            pl.BlockSpec((D, D), lambda t: (0, 0)),      # Wq^T  (resident)
            pl.BlockSpec((1, D), lambda t: (0, 0)),      # v     (resident)
            pl.BlockSpec((B, tt, D), lambda t: (0, t, 0)),  # processed_memory tile
        ],
        out_specs=pl.BlockSpec((B, tt), lambda t: (0, t)),
        compiler_params=pltpu.CompilerParams(
            dimension_semantics=("parallel",)),
    )(query, wq_t, v_row, pm)

    if Tp != T:
        out = out[:, :T]
    return out


if __name__ == "__main__":
    B, T, D = 2, 512, 128             # batch, max_time, dim

    key = jax.random.PRNGKey(0)
    k1, k2, k3, k4 = jax.random.split(key, 4)
    query = jax.random.normal(k1, (B, D), jnp.float32)              # (batch, dim)
    processed_memory = jax.random.normal(k2, (B, T, D), jnp.float32)
    wq = 0.1 * jax.random.normal(k3, (D, D), jnp.float32)           # query_layer.weight
    v_w = 0.1 * jax.random.normal(k4, (1, D), jnp.float32)          # v.weight

    out = bahdanau_attention(query, processed_memory, wq, v_w)
    out = jax.block_until_ready(out)
    assert out.shape == (B, T), out.shape

    # pure-JAX reference mirroring the PyTorch forward
    pq_ref = query @ wq.T                                           # (B, D)
    ref = jnp.tanh(pq_ref[:, None, :] + processed_memory) @ v_w[0]  # (B, T)
    assert bool(jnp.all(jnp.isfinite(out)))
    assert jnp.allclose(out, ref, atol=1e-4, rtol=1e-4), float(jnp.max(jnp.abs(out - ref)))
    print("KERNEL_OK")
</pallas_src>

<mosaic_0001>
module attributes {stable_mosaic.version = 11 : i64} {
  func.func @_bahdanau_kernel(%arg0: i32, %arg1: memref<2x128xf32, #tpu.memory_space<vmem>>, %arg2: memref<128x128xf32, #tpu.memory_space<vmem>>, %arg3: memref<1x128xf32, #tpu.memory_space<vmem>>, %arg4: memref<2x256x128xf32, #tpu.memory_space<vmem>>, %arg5: memref<2x256xf32, #tpu.memory_space<vmem>>) attributes {dimension_semantics = [#tpu.dimension_semantics<parallel>], iteration_bounds = array<i64: 2>, scalar_prefetch = 0 : i64, scratch_operands = 0 : i64, tpu.core_type = #tpu.core_type<tc>, window_params = [{pipeline_mode = #tpu.pipeline_mode<synchronous>, transform_indices = @transform_0, window_bounds = array<i64: 2, 128>}, {pipeline_mode = #tpu.pipeline_mode<synchronous>, transform_indices = @transform_1, window_bounds = array<i64: 128, 128>}, {pipeline_mode = #tpu.pipeline_mode<synchronous>, transform_indices = @transform_2, window_bounds = array<i64: 1, 128>}, {transform_indices = @transform_3, window_bounds = array<i64: 2, 256, 128>}, {transform_indices = @transform_4, window_bounds = array<i64: 2, 256>}]} {
    %c0 = arith.constant 0 : index
    %c0_0 = arith.constant 0 : index
    %0 = vector.load %arg1[%c0, %c0_0] : memref<2x128xf32, #tpu.memory_space<vmem>>, vector<2x128xf32>
    %c0_1 = arith.constant 0 : index
    %c0_2 = arith.constant 0 : index
    %1 = vector.load %arg2[%c0_1, %c0_2] : memref<128x128xf32, #tpu.memory_space<vmem>>, vector<128x128xf32>
    %cst = arith.constant dense<0.000000e+00> : vector<2x128xf32>
    %2 = tpu.matmul %0, %1, %cst {dimension_numbers = #tpu.dot_dimension_numbers<[1], [0], [0], [1], [0, 0, 1, 1], [], []>} : vector<2x128xf32>, vector<128x128xf32>, vector<2x128xf32> -> vector<2x128xf32>
    %c0_3 = arith.constant 0 : index
    %c0_4 = arith.constant 0 : index
    %c0_5 = arith.constant 0 : index
    %3 = vector.load %arg4[%c0_3, %c0_4, %c0_5] : memref<2x256x128xf32, #tpu.memory_space<vmem>>, vector<2x256x128xf32>
    %4 = vector.shape_cast %2 : vector<2x128xf32> to vector<2x1x128xf32>
    %5 = vector.broadcast %4 : vector<2x1x128xf32> to vector<2x256x128xf32>
    %6 = arith.addf %3, %5 : vector<2x256x128xf32>
    %7 = math.tanh %6 : vector<2x256x128xf32>
    %c0_6 = arith.constant 0 : index
    %c0_7 = arith.constant 0 : index
    %8 = vector.load %arg3[%c0_6, %c0_7] : memref<1x128xf32, #tpu.memory_space<vmem>>, vector<1x128xf32>
    %9 = vector.shape_cast %8 : vector<1x128xf32> to vector<1x1x128xf32>
    %10 = vector.broadcast %9 : vector<1x1x128xf32> to vector<2x256x128xf32>
    %11 = arith.mulf %7, %10 : vector<2x256x128xf32>
    %cst_8 = arith.constant dense<0.000000e+00> : vector<2x256xf32>
    %12 = vector.multi_reduction <add>, %11, %cst_8 [2] : vector<2x256x128xf32> to vector<2x256xf32>
    %c0_9 = arith.constant 0 : index
    %c0_10 = arith.constant 0 : index
    %13 = vector.load %arg5[%c0_9, %c0_10] : memref<2x256xf32, #tpu.memory_space<vmem>>, vector<2x256xf32>
    tpu.vector_store %arg5[%c0_9, %c0_10], %12 {strides = array<i32>} : memref<2x256xf32, #tpu.memory_space<vmem>>, vector<2x256xf32>,
    return
  }
  func.func @transform_0(%arg0: i32) -> (i32, i32) {
    %c0_i32 = arith.constant 0 : i32
    %c0_i32_0 = arith.constant 0 : i32
    %c0_i32_1 = arith.constant 0 : i32
    return %c0_i32, %c0_i32_0 : i32, i32
  }
  func.func @transform_1(%arg0: i32) -> (i32, i32) {
    %c0_i32 = arith.constant 0 : i32
    %c0_i32_0 = arith.constant 0 : i32
    %c0_i32_1 = arith.constant 0 : i32
    return %c0_i32, %c0_i32_0 : i32, i32
  }
  func.func @transform_2(%arg0: i32) -> (i32, i32) {
    %c0_i32 = arith.constant 0 : i32
    %c0_i32_0 = arith.constant 0 : i32
    %c0_i32_1 = arith.constant 0 : i32
    return %c0_i32, %c0_i32_0 : i32, i32
  }
  func.func @transform_3(%arg0: i32) -> (i32, i32, i32) {
    %c0_i32 = arith.constant 0 : i32
    %c0_i32_0 = arith.constant 0 : i32
    %c0_i32_1 = arith.constant 0 : i32
    return %c0_i32, %arg0, %c0_i32_0 : i32, i32, i32
  }
  func.func @transform_4(%arg0: i32) -> (i32, i32) {
    %c0_i32 = arith.constant 0 : i32
    %c0_i32_0 = arith.constant 0 : i32
    return %c0_i32, %arg0 : i32, i32
  }
}

</mosaic_0001>

<llo_original>
// kernel: tpu_custom_call.1
$region0: #{tpu_custom_call.1}
  #allocation0 [shape = 'u32[]', space=smem, size = 0x4, offset = 0x4, fixed_abs, tag = 'smem constant byte address 0x4 - core index']
  #allocation1 [shape = 'u32[144,128]{1,0:T(1,128)}', space=vmem, size = 0x12000, scoped, tag = 'internal scratch']
  #allocation9 [shape = 's32[]', space=sflag, size = 0x4, offset = 0, fixed_abs, tag = 'sflag constant byte address 0x0 - dummy sync flag']
  %s0 = inlined_call_operand.hbm [shape: f32[2,128], index: 0, kind: input, shape index: {}]
  %s1 = inlined_call_operand.hbm [shape: f32[128,128], index: 1, kind: input, shape index: {}]
  %s2 = inlined_call_operand.vmem [shape: f32[1,128], index: 2, kind: input, shape index: {}]
  %s3 = inlined_call_operand.hbm [shape: f32[2,512,128], index: 3, kind: input, shape index: {}]
  %s4 = inlined_call_operand.hbm [shape: f32[2,512], index: 4, kind: output, shape index: {}]
  %s5 = sld [smem:[#allocation0]]
  $region61: #{tpu_custom_call.1} parent=0
    _
  %s7 = ssub.s32 1, %s5
  %s8 = scalar_select 0, %s7, %s5
  $region1: #{tpu_custom_call.1} parent=0
    #allocation2 [shape = 'u8[1024]{0}', space=vmem, size = 0x400, scoped, tag = 'input window, operand 0, single buffered']
    #allocation3 [shape = 's32[2]{0}', space=sflag, size = 0x8, scoped, tag = 'scoped memory for tpu_custom_call.1']
    #allocation4 [shape = 's32[2]{0}', space=sflag, size = 0x8, scoped, tag = 'scoped memory for tpu_custom_call.1']
    #allocation5 [shape = 'u8[65536]{0}', space=vmem, size = 0x10000, scoped, tag = 'input window, operand 1, single buffered']
    #allocation6 [shape = 's32[1]{0}', space=sflag, size = 0x4, scoped, tag = 'scoped memory for tpu_custom_call.1']
    #allocation7 [shape = 'u8[524288]{0}', space=vmem, size = 0x80000, scoped, tag = 'input window, operand 3']
    #allocation8 [shape = 'u8[4096]{0}', space=vmem, size = 0x1000, scoped, tag = 'output window, operand 0']
    %9 = vsyncpa [#allocation3], 0
    %10 = vsyncpa [#allocation6], 0
    %11 = vsyncpa [#allocation4], 0
    %s12 = scalar_lea.sflag [#allocation4], 1
    %13 = vsyncpa %s12, 0
    loop: start=0, step=1, limit=4
    $region2: #{tpu_custom_call.1} parent=1 // loop_pre_header
      _
    $region3: #{tpu_custom_call.1} parent=1 // loop_header
      %s15 = sphi 0, %s19
      %p16 = scmp.ge.s32.totalorder %s15, 4
      %s23 = sphi 0, %s23
      %s25 = sphi 0, %s23
      %s26 = sphi 0, %s25
      %s40 = sphi 0, %s26
      %s44 = sphi 0, %s44
      %s46 = sphi 0, %s44
      %s47 = sphi 0, %s46
      %s61 = sphi 0, %s47
      %s65 = sphi 0, %s65
      %s67 = sphi 0, %s65
      %s68 = sphi 0, %s67
      %s82 = sphi 0, %s68
      %s88 = sphi 0, %s90
      %s91 = sphi 0, %s88
      %s92 = sphi 0, %s91
      %s108 = sphi 0, %s92
      %s114 = sphi 0, %s116
      %s117 = sphi 0, %s114
      %s118 = sphi 0, %s117
      %s134 = sphi 0, %s118
    $region4: #{tpu_custom_call.1} parent=1 // loop_header_branch
      %18 = sbr.rel (%p16) target = $region8
    $region5: #{tpu_custom_call.1} parent=1 // loop_body
      %s20 = ssub.s32 %s15, 1
      %s21 = ssub.s32 %s15, 2
      %s22 = sadd.s32 %s15, 1
      %s24 = sadd.s32 %s23, 1
      %p27 = scmp.eq.s32.totalorder %s15, 1
      %p28 = scmp.ne.s32.totalorder %s23, %s25
      %p29 = scmp.eq.s32.totalorder %s15, 0
      %p30 = por %p28, %p29
      %p31 = scmp.ne.s32.totalorder %s23, %s25
      %p32 = scmp.eq.s32.totalorder %s20, 1
      %p33 = por %p31, %p32
      %p34 = scmp.ne.s32.totalorder %s25, %s26
      %p35 = scmp.eq.s32.totalorder %s20, 0
      %p36 = por %p34, %p35
      %p37 = scmp.ne.s32.totalorder %s25, %s26
      %p38 = scmp.eq.s32.totalorder %s21, 1
      %p39 = por %p37, %p38
      %p41 = scmp.ne.s32.totalorder %s26, %s40
      %p42 = scmp.eq.s32.totalorder %s21, 0
      %p43 = por %p41, %p42
      %s45 = sadd.s32 %s44, 1
      %p48 = scmp.eq.s32.totalorder %s15, 1
      %p49 = scmp.ne.s32.totalorder %s44, %s46
      %p50 = scmp.eq.s32.totalorder %s15, 0
      %p51 = por %p49, %p50
      %p52 = scmp.ne.s32.totalorder %s44, %s46
      %p53 = scmp.eq.s32.totalorder %s20, 1
      %p54 = por %p52, %p53
      %p55 = scmp.ne.s32.totalorder %s46, %s47
      %p56 = scmp.eq.s32.totalorder %s20, 0
      %p57 = por %p55, %p56
      %p58 = scmp.ne.s32.totalorder %s46, %s47
      %p59 = scmp.eq.s32.totalorder %s21, 1
      %p60 = por %p58, %p59
      %p62 = scmp.ne.s32.totalorder %s47, %s61
      %p63 = scmp.eq.s32.totalorder %s21, 0
      %p64 = por %p62, %p63
      %s66 = sadd.s32 %s65, 1
      %p69 = scmp.eq.s32.totalorder %s15, 1
      %p70 = scmp.ne.s32.totalorder %s65, %s67
      %p71 = scmp.eq.s32.totalorder %s15, 0
      %p72 = por %p70, %p71
      %p73 = scmp.ne.s32.totalorder %s65, %s67
      %p74 = scmp.eq.s32.totalorder %s20, 1
      %p75 = por %p73, %p74
      %p76 = scmp.ne.s32.totalorder %s67, %s68
      %p77 = scmp.eq.s32.totalorder %s20, 0
      %p78 = por %p76, %p77
      %p79 = scmp.ne.s32.totalorder %s67, %s68
      %p80 = scmp.eq.s32.totalorder %s21, 1
      %p81 = por %p79, %p80
      %p83 = scmp.ne.s32.totalorder %s68, %s82
      %p84 = scmp.eq.s32.totalorder %s21, 0
      %p85 = por %p83, %p84
      %s86 = ssub.s32 %s15, %s22
      %p87 = scmp.eq.s32.totalorder %s86, 0
      %s89 = sadd.s32 %s88, 1
      %s90 = scalar_select %p87, %s88, %s89
      %p93 = pneg %p87
      %p94 = scmp.eq.s32.totalorder %s15, 1
      %p95 = por %p93, %p94
      %p96 = scmp.ne.s32.totalorder %s88, %s91
      %p97 = scmp.eq.s32.totalorder %s15, 0
      %p98 = por %p96, %p97
      %p99 = scmp.ne.s32.totalorder %s88, %s91
      %p100 = scmp.eq.s32.totalorder %s20, 1
      %p101 = por %p99, %p100
      %p102 = scmp.ne.s32.totalorder %s91, %s92
      %p103 = scmp.eq.s32.totalorder %s20, 0
      %p104 = por %p102, %p103
      %p105 = scmp.ne.s32.totalorder %s91, %s92
      %p106 = scmp.eq.s32.totalorder %s21, 1
      %p107 = por %p105, %p106
      %p109 = scmp.ne.s32.totalorder %s92, %s108
      %p110 = scmp.eq.s32.totalorder %s21, 0
      %p111 = por %p109, %p110
      %s112 = ssub.s32 %s15, %s22
      %p113 = scmp.eq.s32.totalorder %s112, 0
      %s115 = sadd.s32 %s114, 1
      %s116 = scalar_select %p113, %s114, %s115
      %p119 = pneg %p113
      %p120 = scmp.eq.s32.totalorder %s15, 1
      %p121 = por %p119, %p120
      %p122 = scmp.ne.s32.totalorder %s114, %s117
      %p123 = scmp.eq.s32.totalorder %s15, 0
      %p124 = por %p122, %p123
      %p125 = scmp.ne.s32.totalorder %s114, %s117
      %p126 = scmp.eq.s32.totalorder %s20, 1
      %p127 = por %p125, %p126
      %p128 = scmp.ne.s32.totalorder %s117, %s118
      %p129 = scmp.eq.s32.totalorder %s20, 0
      %p130 = por %p128, %p129
      %p131 = scmp.ne.s32.totalorder %s117, %s118
      %p132 = scmp.eq.s32.totalorder %s21, 1
      %p133 = por %p131, %p132
      %p135 = scmp.ne.s32.totalorder %s118, %s134
      %p136 = scmp.eq.s32.totalorder %s21, 0
      %p137 = por %p135, %p136
      %p138 = scmp.le.s32.totalorder 1, %s15
      %p139 = scmp.lt.s32.totalorder %s15, 3
      %p140 = pnand %p138, %p139
      %p141 = pneg %p140
      // Predicated region
      $region9: #{tpu_custom_call.1} parent=5 // pred_check
        _
      $region10: #{tpu_custom_call.1} parent=5 // pred_check_branch
        %143 = sbr.rel (%p140) target = $region12
      $region11: #{tpu_custom_call.1} parent=5 // pred_region
        %s144 = ssub.s32 %s15, 1
        // Predicated region
        $region13: #{tpu_custom_call.1} parent=11 // pred_check
          %p145 = pneg %p36
        $region14: #{tpu_custom_call.1} parent=11 // pred_check_branch
          %147 = sbr.rel (%p145) target = $region16
        $region15: #{tpu_custom_call.1} parent=11 // pred_region
          %s149 = ssub.s32 32, 32
          %150 = vsyncadd [#allocation3], %s149
          %s152 = sshll.u32 [#allocation2], 4
          %s153 = int_to_ptr.vmem [resolvable:$true] %s152
          %155 = dma.hbm_to_vmem [thread:$0]  %s0, 32, %s153, [#allocation3]
        $region16: #{tpu_custom_call.1} parent=11 // pred_fallthru
          _
        // Predicated region
        $region17: #{tpu_custom_call.1} parent=11 // pred_check
          %p156 = pneg %p57
        $region18: #{tpu_custom_call.1} parent=11 // pred_check_branch
          %158 = sbr.rel (%p156) target = $region20
        $region19: #{tpu_custom_call.1} parent=11 // pred_region
          %s160 = ssub.s32 2048, 2048
          %161 = vsyncadd [#allocation6], %s160
          %s162 = sshll.u32 [#allocation5], 4
          %s163 = int_to_ptr.vmem [resolvable:$true] %s162
          %168 = dma.hbm_to_vmem [thread:$0]  %s1, 2048, %s163, [#allocation6], 128, 128, 8
        $region20: #{tpu_custom_call.1} parent=11 // pred_fallthru
          _
        // Predicated region
        $region21: #{tpu_custom_call.1} parent=11 // pred_check
          %p169 = pneg %p78
        $region22: #{tpu_custom_call.1} parent=11 // pred_check_branch
          %171 = sbr.rel (%p169) target = $region24
        $region23: #{tpu_custom_call.1} parent=11 // pred_region
          _
        $region24: #{tpu_custom_call.1} parent=11 // pred_fallthru
          _
      $region12: #{tpu_custom_call.1} parent=5 // pred_fallthru
        _
      %p172 = scmp.lt.s32.totalorder %s15, 2
      // Predicated region
      $region25: #{tpu_custom_call.1} parent=5 // pred_check
        %p173 = pneg %p172
      $region26: #{tpu_custom_call.1} parent=5 // pred_check_branch
        %175 = sbr.rel (%p173) target = $region28
      $region27: #{tpu_custom_call.1} parent=5 // pred_region
        // Predicated region
        $region29: #{tpu_custom_call.1} parent=27 // pred_check
          %p176 = pneg %p98
        $region30: #{tpu_custom_call.1} parent=27 // pred_check_branch
          %178 = sbr.rel (%p176) target = $region32
        $region31: #{tpu_custom_call.1} parent=27 // pred_region
          #allocation10 [shape = 'u32[6]{0}', space=smem, size = 0x18, scoped, tag = 'DMA stride descriptor']
          %s179 = sand.u32 %s15, 1
          %s180 = scalar_lea.sflag [#allocation3], %s179
          %s181 = sand.u32 %s88, 1
          %s182 = smul.addr %s181, 512
          %s183 = scalar_lea.vmem [#allocation7], %s182
          %s184 = smul.u32 32, %s15
          %s186 = ssub.s32 8192, 8192
          %187 = vsyncadd %s180, %s186
          %s188 = smul.addr %s184, 128
          %s189 = scalar_lea.hbm %s3, %s188
          %s191 = sshll.u32 1, 14
          %s192 = sxor.u32 4294967295, %s191
          %s194 = sld [smem:[#allocation0]]
          %s195 = sadd.s32 2, %s194
          %s197 = sshll.u32 7, 26
          %s198 = sxor.u32 4294967295, %s197
          %s199 = sand.u32 0, %s198
          %s200 = sshll.u32 %s195, 26
          %s201 = sor.u32 %s199, %s200
          %s202 = sshll.u32 %s183, 4
          %s203 = int_to_ptr.vmem [resolvable:$true] %s202
          %209 = sst [smem:[#allocation10]] 8192
          %s210 = scalar_lea.smem [#allocation10], 1
          %211 = sst [smem:[%s210]] 4096
          %s212 = scalar_lea.smem [#allocation10], 2
          %213 = sst [smem:[%s212]] 32
          %s214 = scalar_lea.smem [#allocation10], 3
          %215 = sst [smem:[%s214]] 128
          %s216 = scalar_lea.smem [#allocation10], 4
          %217 = sst [smem:[%s216]] 128
          %s218 = scalar_lea.smem [#allocation10], 5
          %219 = sst [smem:[%s218]] 8
          %221 = dma.general %s189, 8192, %s203, %s180, [#allocation9], [#allocation10], %s201, 0
        $region32: #{tpu_custom_call.1} parent=27 // pred_fallthru
          _
      $region28: #{tpu_custom_call.1} parent=5 // pred_fallthru
        _
      %p222 = scmp.le.s32.totalorder 1, %s15
      %p223 = scmp.lt.s32.totalorder %s15, 3
      %p224 = pnand %p222, %p223
      %p225 = pneg %p224
      // Predicated region
      $region33: #{tpu_custom_call.1} parent=5 // pred_check
        _
      $region34: #{tpu_custom_call.1} parent=5 // pred_check_branch
        %227 = sbr.rel (%p224) target = $region36
      $region35: #{tpu_custom_call.1} parent=5 // pred_region
        %s228 = ssub.s32 %s15, 1
        // Predicated region
        $region37: #{tpu_custom_call.1} parent=35 // pred_check
          %p229 = pneg %p36
        $region38: #{tpu_custom_call.1} parent=35 // pred_check_branch
          %231 = sbr.rel (%p229) target = $region40
        $region39: #{tpu_custom_call.1} parent=35 // pred_region
          %232 = dma.done [#allocation3], 32
        $region40: #{tpu_custom_call.1} parent=35 // pred_fallthru
          _
        // Predicated region
        $region41: #{tpu_custom_call.1} parent=35 // pred_check
          %p233 = pneg %p57
        $region42: #{tpu_custom_call.1} parent=35 // pred_check_branch
          %235 = sbr.rel (%p233) target = $region44
        $region43: #{tpu_custom_call.1} parent=35 // pred_region
          %236 = dma.done [#allocation6], 2048
        $region44: #{tpu_custom_call.1} parent=35 // pred_fallthru
          _
        %s237 = sand.u32 %s20, 1
        %s238 = scalar_lea.sflag [#allocation3], %s237
        %s239 = sand.u32 %s91, 1
        %s240 = smul.addr %s239, 512
        %s241 = scalar_lea.vmem [#allocation7], %s240
        // Predicated region
        $region45: #{tpu_custom_call.1} parent=35 // pred_check
          %p242 = pneg %p104
        $region46: #{tpu_custom_call.1} parent=35 // pred_check_branch
          %244 = sbr.rel (%p242) target = $region48
        $region47: #{tpu_custom_call.1} parent=35 // pred_region
          %245 = dma.done %s238, 8192
        $region48: #{tpu_custom_call.1} parent=35 // pred_fallthru
          _
        %p246 = pneg %p36
        %p247 = pneg %p33
        %p248 = pneg %p57
        %p249 = pneg %p54
        %p250 = pneg %p78
        %p251 = pneg %p75
        %s252 = sand.u32 %s20, 1
        %s253 = scalar_lea.sflag [#allocation3], %s252
        %s254 = sand.u32 %s91, 1
        %s255 = smul.addr %s254, 512
        %s256 = scalar_lea.vmem [#allocation7], %s255
        %p257 = pneg %p104
        %p258 = pneg %p101
        %p259 = pneg %p130
        %p260 = pneg %p127
        %s261 = sand.u32 %s117, 1
        %s262 = scalar_lea.sflag [#allocation4], %s261
        %s263 = sand.u32 %s117, 1
        %s264 = smul.addr %s263, 4
        %s265 = scalar_lea.vmem [#allocation8], %s264
        %s266 = smul.u32 32, %s20
        %s267 = smul.u32 2, %s20
        %v268 = vld [vmem:[#allocation2] sm:$0x3]
        %v269 = vld [vmem:[#allocation5] sm:$0xff]
        %v270 = vld [vmem:[#allocation5 + $0x8] sm:$0xff]
        %v271 = vld [vmem:[#allocation5 + $0x10] sm:$0xff]
        %v272 = vld [vmem:[#allocation5 + $0x18] sm:$0xff]
        %v273 = vld [vmem:[#allocation5 + $0x20] sm:$0xff]
        %v274 = vld [vmem:[#allocation5 + $0x28] sm:$0xff]
        %v275 = vld [vmem:[#allocation5 + $0x30] sm:$0xff]
        %v276 = vld [vmem:[#allocation5 + $0x38] sm:$0xff]
        %v277 = vld [vmem:[#allocation5 + $0x40] sm:$0xff]
        %v278 = vld [vmem:[#allocation5 + $0x48] sm:$0xff]
        %v279 = vld [vmem:[#allocation5 + $0x50] sm:$0xff]
        %v280 = vld [vmem:[#allocation5 + $0x58] sm:$0xff]
        %v281 = vld [vmem:[#allocation5 + $0x60] sm:$0xff]
        %v282 = vld [vmem:[#allocation5 + $0x68] sm:$0xff]
        %v283 = vld [vmem:[#allocation5 + $0x70] sm:$0xff]
        %v284 = vld [vmem:[#allocation5 + $0x78] sm:$0xff]
        %285 = vmatprep.subr.mxu0 0.0
        %286 = vmatpush1.msra.mxu0 %v269
        %287 = vmatprep.subr.mxu0 0.0
        %288 = vmatpush1.msra.mxu0 %v270
        %289 = vmatprep.subr.mxu0 0.0
        %290 = vmatpush1.msra.mxu0 %v271
        %291 = vmatprep.subr.mxu0 0.0
        %292 = vmatpush1.msra.mxu0 %v272
        %293 = vmatprep.subr.mxu0 0.0
        %294 = vmatpush1.msra.mxu0 %v273
        %295 = vmatprep.subr.mxu0 0.0
        %296 = vmatpush1.msra.mxu0 %v274
        %297 = vmatprep.subr.mxu0 0.0
        %298 = vmatpush1.msra.mxu0 %v275
        %299 = vmatprep.subr.mxu0 0.0
        %300 = vmatpush1.msra.mxu0 %v276
        %301 = vmatprep.subr.mxu0 0.0
        %302 = vmatpush1.msra.mxu0 %v277
        %303 = vmatprep.subr.mxu0 0.0
        %304 = vmatpush1.msra.mxu0 %v278
        %305 = vmatprep.subr.mxu0 0.0
        %306 = vmatpush1.msra.mxu0 %v279
        %307 = vmatprep.subr.mxu0 0.0
        %308 = vmatpush1.msra.mxu0 %v280
        %309 = vmatprep.subr.mxu0 0.0
        %310 = vmatpush1.msra.mxu0 %v281
        %311 = vmatprep.subr.mxu0 0.0
        %312 = vmatpush1.msra.mxu0 %v282
        %313 = vmatprep.subr.mxu0 0.0
        %314 = vmatpush1.msra.mxu0 %v283
        %315 = vmatprep.subr.mxu0 0.0
        %316 = vmatpush1.msra.mxu0 %v284
        %317 = vmatprep.subr.mxu0 0.0
        %318 = vmatpush1.msra.mxu0 0.0
        %319 = vmatprep.subr.mxu0 0.0
        %320 = vmatpush1.msra.mxu0 0.0
        %321 = vmatprep.subr.mxu0 0.0
        %322 = vmatpush1.msra.mxu0 0.0
        %323 = vmatprep.subr.mxu0 0.0
        %324 = vmatpush1.msra.mxu0 0.0
        %325 = vmatprep.subr.mxu0 0.0
        %326 = vmatpush1.msra.mxu0 0.0
        %327 = vmatprep.subr.mxu0 0.0
        %328 = vmatpush1.msra.mxu0 0.0
        %329 = vmatprep.subr.mxu0 0.0
        %330 = vmatpush1.msra.mxu0 0.0
        %331 = vmatprep.subr.mxu0 0.0
        %332 = vmatpush1.msra.mxu0 0.0
        %333 = vmatprep.subr.mxu0 0.0
        %334 = vmatpush1.msra.mxu0 0.0
        %335 = vmatprep.subr.mxu0 0.0
        %336 = vmatpush1.msra.mxu0 0.0
        %337 = vmatprep.subr.mxu0 0.0
        %338 = vmatpush1.msra.mxu0 0.0
        %339 = vmatprep.subr.mxu0 0.0
        %340 = vmatpush1.msra.mxu0 0.0
        %341 = vmatprep.subr.mxu0 0.0
        %342 = vmatpush1.msra.mxu0 0.0
        %343 = vmatprep.subr.mxu0 0.0
        %344 = vmatpush1.msra.mxu0 0.0
        %345 = vmatprep.subr.mxu0 0.0
        %346 = vmatpush1.msra.mxu0 0.0
        %347 = vmatprep.subr.mxu0 0.0
        %348 = vmatpush1.msra.mxu0 0.0
        %349 = vmatprep.mubr.f32.mxu0 0.0
        %350 = vmatmul.mubr.f32.gmra.mrb[0].mxu0 %v268
        %v351 = vpop.f32.mrb[0].mxu0
        %v352 = vadd.f32 0.0, %v351
        %v353 = vpop.f32.mrb[0].mxu0
        %354 = vdwg.mxu0
        %v355 = vld [vmem:[%s241] sm:$0xff]
        %v356 = vld [vmem:[%s241 + $0x8] sm:$0xff]
        %v357 = vld [vmem:[%s241 + $0x10] sm:$0xff]
        %v358 = vld [vmem:[%s241 + $0x18] sm:$0xff]
        %v359 = vld [vmem:[%s241 + $0x20] sm:$0xff]
        %v360 = vld [vmem:[%s241 + $0x28] sm:$0xff]
        %v361 = vld [vmem:[%s241 + $0x30] sm:$0xff]
        %v362 = vld [vmem:[%s241 + $0x38] sm:$0xff]
        %v363 = vld [vmem:[%s241 + $0x40] sm:$0xff]
        %v364 = vld [vmem:[%s241 + $0x48] sm:$0xff]
        %v365 = vld [vmem:[%s241 + $0x50] sm:$0xff]
        %v366 = vld [vmem:[%s241 + $0x58] sm:$0xff]
        %v367 = vld [vmem:[%s241 + $0x60] sm:$0xff]
        %v368 = vld [vmem:[%s241 + $0x68] sm:$0xff]
        %v369 = vld [vmem:[%s241 + $0x70] sm:$0xff]
        %v370 = vld [vmem:[%s241 + $0x78] sm:$0xff]
        %v371 = vld [vmem:[%s241 + $0x80] sm:$0xff]
        %v372 = vld [vmem:[%s241 + $0x88] sm:$0xff]
        %v373 = vld [vmem:[%s241 + $0x90] sm:$0xff]
        %v374 = vld [vmem:[%s241 + $0x98] sm:$0xff]
        %v375 = vld [vmem:[%s241 + $0xa0] sm:$0xff]
        %v376 = vld [vmem:[%s241 + $0xa8] sm:$0xff]
        %v377 = vld [vmem:[%s241 + $0xb0] sm:$0xff]
        %v378 = vld [vmem:[%s241 + $0xb8] sm:$0xff]
        %v379 = vld [vmem:[%s241 + $0xc0] sm:$0xff]
        %v380 = vld [vmem:[%s241 + $0xc8] sm:$0xff]
        %v381 = vld [vmem:[%s241 + $0xd0] sm:$0xff]
        %v382 = vld [vmem:[%s241 + $0xd8] sm:$0xff]
        %v383 = vld [vmem:[%s241 + $0xe0] sm:$0xff]
        %v384 = vld [vmem:[%s241 + $0xe8] sm:$0xff]
        %v385 = vld [vmem:[%s241 + $0xf0] sm:$0xff]
        %v386 = vld [vmem:[%s241 + $0xf8] sm:$0xff]
        %v387 = vld [vmem:[%s241 + $0x100] sm:$0xff]
        %v388 = vld [vmem:[%s241 + $0x108] sm:$0xff]
        %v389 = vld [vmem:[%s241 + $0x110] sm:$0xff]
        %v390 = vld [vmem:[%s241 + $0x118] sm:$0xff]
        %v391 = vld [vmem:[%s241 + $0x120] sm:$0xff]
        %v392 = vld [vmem:[%s241 + $0x128] sm:$0xff]
        %v393 = vld [vmem:[%s241 + $0x130] sm:$0xff]
        %v394 = vld [vmem:[%s241 + $0x138] sm:$0xff]
        %v395 = vld [vmem:[%s241 + $0x140] sm:$0xff]
        %v396 = vld [vmem:[%s241 + $0x148] sm:$0xff]
        %v397 = vld [vmem:[%s241 + $0x150] sm:$0xff]
        %v398 = vld [vmem:[%s241 + $0x158] sm:$0xff]
        %v399 = vld [vmem:[%s241 + $0x160] sm:$0xff]
        %v400 = vld [vmem:[%s241 + $0x168] sm:$0xff]
        %v401 = vld [vmem:[%s241 + $0x170] sm:$0xff]
        %v402 = vld [vmem:[%s241 + $0x178] sm:$0xff]
        %v403 = vld [vmem:[%s241 + $0x180] sm:$0xff]
        %v404 = vld [vmem:[%s241 + $0x188] sm:$0xff]
        %v405 = vld [vmem:[%s241 + $0x190] sm:$0xff]
        %v406 = vld [vmem:[%s241 + $0x198] sm:$0xff]
        %v407 = vld [vmem:[%s241 + $0x1a0] sm:$0xff]
        %v408 = vld [vmem:[%s241 + $0x1a8] sm:$0xff]
        %v409 = vld [vmem:[%s241 + $0x1b0] sm:$0xff]
        %v410 = vld [vmem:[%s241 + $0x1b8] sm:$0xff]
        %v411 = vld [vmem:[%s241 + $0x1c0] sm:$0xff]
        %v412 = vld [vmem:[%s241 + $0x1c8] sm:$0xff]
        %v413 = vld [vmem:[%s241 + $0x1d0] sm:$0xff]
        %v414 = vld [vmem:[%s241 + $0x1d8] sm:$0xff]
        %v415 = vld [vmem:[%s241 + $0x1e0] sm:$0xff]
        %v416 = vld [vmem:[%s241 + $0x1e8] sm:$0xff]
        %v417 = vld [vmem:[%s241 + $0x1f0] sm:$0xff]
        %v418 = vld [vmem:[%s241 + $0x1f8] sm:$0xff]
        %v421 = vunpack.c.l.s4 1966171168
        %v422 = vunpack.c.0.s8 %v421
        %v423 = vlaneseq
        %v424 = vshrl.u32 %v423, 7
        %v425 = vsub.s32 %v422, %v424
        %v426 = vrot.slane %v352, %v425
        %v427 = vcombine.high %v426, %v426
        %v429 = vunpack.c.l.s4 1966171168
        %v430 = vunpack.c.0.s8 %v429
        %v431 = vlaneseq
        %v432 = vshrl.u32 %v431, 7
        %v433 = vsub.s32 %v430, %v432
        %v434 = vrot.slane %v426, %v433
        %v436 = vunpack.c.l.s4 1966171168
        %v437 = vunpack.c.0.s8 %v436
        %v438 = vlaneseq
        %v439 = vshrl.u32 %v438, 7
        %v440 = vsub.s32 %v437, %v439
        %v441 = vrot.slane %v427, %v440
        %v442 = vlaneseq
        %v443 = vshrl.u32 %v442, 7
        %v444 = vsub.s32 0, %v443
        %v445 = vrot.slane %v434, %v444
        %v446 = vlaneseq
        %v447 = vshrl.u32 %v446, 7
        %v448 = vsub.s32 0, %v447
        %v449 = vrot.slane %v441, %v448
        %v452 = vadd.f32 %v355, %v445
        %v453 = vadd.f32 %v356, %v445
        %v454 = vadd.f32 %v357, %v445
        %v455 = vadd.f32 %v358, %v445
        %v456 = vadd.f32 %v359, %v445
        %v457 = vadd.f32 %v360, %v445
        %v458 = vadd.f32 %v361, %v445
        %v459 = vadd.f32 %v362, %v445
        %v460 = vadd.f32 %v363, %v445
        %v461 = vadd.f32 %v364, %v445
        %v462 = vadd.f32 %v365, %v445
        %v463 = vadd.f32 %v366, %v445
        %v464 = vadd.f32 %v367, %v445
        %v465 = vadd.f32 %v368, %v445
        %v466 = vadd.f32 %v369, %v445
        %v467 = vadd.f32 %v370, %v445
        %v468 = vadd.f32 %v371, %v445
        %v469 = vadd.f32 %v372, %v445
        %v470 = vadd.f32 %v373, %v445
        %v471 = vadd.f32 %v374, %v445
        %v472 = vadd.f32 %v375, %v445
        %v473 = vadd.f32 %v376, %v445
        %v474 = vadd.f32 %v377, %v445
        %v475 = vadd.f32 %v378, %v445
        %v476 = vadd.f32 %v379, %v445
        %v477 = vadd.f32 %v380, %v445
        %v478 = vadd.f32 %v381, %v445
        %v479 = vadd.f32 %v382, %v445
        %v480 = vadd.f32 %v383, %v445
        %v481 = vadd.f32 %v384, %v445
        %v482 = vadd.f32 %v385, %v445
        %v483 = vadd.f32 %v386, %v445
        %v484 = vadd.f32 %v387, %v449
        %v485 = vadd.f32 %v388, %v449
        %v486 = vadd.f32 %v389, %v449
        %v487 = vadd.f32 %v390, %v449
        %v488 = vadd.f32 %v391, %v449
        %v489 = vadd.f32 %v392, %v449
        %v490 = vadd.f32 %v393, %v449
        %v491 = vadd.f32 %v394, %v449
        %v492 = vadd.f32 %v395, %v449
        %v493 = vadd.f32 %v396, %v449
        %v494 = vadd.f32 %v397, %v449
        %v495 = vadd.f32 %v398, %v449
        %v496 = vadd.f32 %v399, %v449
        %v497 = vadd.f32 %v400, %v449
        %v498 = vadd.f32 %v401, %v449
        %v499 = vadd.f32 %v402, %v449
        %v500 = vadd.f32 %v403, %v449
        %v501 = vadd.f32 %v404, %v449
        %v502 = vadd.f32 %v405, %v449
        %v503 = vadd.f32 %v406, %v449
        %v504 = vadd.f32 %v407, %v449
        %v505 = vadd.f32 %v408, %v449
        %v506 = vadd.f32 %v409, %v449
        %v507 = vadd.f32 %v410, %v449
        %v508 = vadd.f32 %v411, %v449
        %v509 = vadd.f32 %v412, %v449
        %v510 = vadd.f32 %v413, %v449
        %v511 = vadd.f32 %v414, %v449
        %v512 = vadd.f32 %v415, %v449
        %v513 = vadd.f32 %v416, %v449
        %v514 = vadd.f32 %v417, %v449
        %v515 = vadd.f32 %v418, %v449
        %v516 = vtanh.pop %v452
        %v517 = vtanh.pop %v453
        %v518 = vtanh.pop %v454
        %v519 = vtanh.pop %v455
        %v520 = vtanh.pop %v456
        %v521 = vtanh.pop %v457
        %v522 = vtanh.pop %v458
        %v523 = vtanh.pop %v459
        %v524 = vtanh.pop %v460
        %v525 = vtanh.pop %v461
        %v526 = vtanh.pop %v462
        %v527 = vtanh.pop %v463
        %v528 = vtanh.pop %v464
        %v529 = vtanh.pop %v465
        %v530 = vtanh.pop %v466
        %v531 = vtanh.pop %v467
        %v532 = vtanh.pop %v468
        %v533 = vtanh.pop %v469
        %v534 = vtanh.pop %v470
        %v535 = vtanh.pop %v471
        %v536 = vtanh.pop %v472
        %v537 = vtanh.pop %v473
        %v538 = vtanh.pop %v474
        %v539 = vtanh.pop %v475
        %v540 = vtanh.pop %v476
        %v541 = vtanh.pop %v477
        %v542 = vtanh.pop %v478
        %v543 = vtanh.pop %v479
        %v544 = vtanh.pop %v480
        %v545 = vtanh.pop %v481
        %v546 = vtanh.pop %v482
        %v547 = vtanh.pop %v483
        %v548 = vtanh.pop %v484
        %v549 = vtanh.pop %v485
        %v550 = vtanh.pop %v486
        %v551 = vtanh.pop %v487
        %v552 = vtanh.pop %v488
        %v553 = vtanh.pop %v489
        %v554 = vtanh.pop %v490
        %v555 = vtanh.pop %v491
        %v556 = vtanh.pop %v492
        %v557 = vtanh.pop %v493
        %v558 = vtanh.pop %v494
        %v559 = vtanh.pop %v495
        %v560 = vtanh.pop %v496
        %v561 = vtanh.pop %v497
        %v562 = vtanh.pop %v498
        %v563 = vtanh.pop %v499
        %v564 = vtanh.pop %v500
        %v565 = vtanh.pop %v501
        %v566 = vtanh.pop %v502
        %v567 = vtanh.pop %v503
        %v568 = vtanh.pop %v504
        %v569 = vtanh.pop %v505
        %v570 = vtanh.pop %v506
        %v571 = vtanh.pop %v507
        %v572 = vtanh.pop %v508
        %v573 = vtanh.pop %v509
        %v574 = vtanh.pop %v510
        %v575 = vtanh.pop %v511
        %v576 = vtanh.pop %v512
        %v577 = vtanh.pop %v513
        %v578 = vtanh.pop %v514
        %v579 = vtanh.pop %v515
        %v580 = vld [vmem:[%s2] sm:$0x1]
        %v582 = vlaneseq
        %v583 = vshrl.u32 %v582, 7
        %v584 = vsub.s32 0, %v583
        %v585 = vrot.slane %v580, %v584
        %v587 = vmul.f32 %v516, %v585
        %v588 = vmul.f32 %v517, %v585
        %v589 = vmul.f32 %v518, %v585
        %v590 = vmul.f32 %v519, %v585
        %v591 = vmul.f32 %v520, %v585
        %v592 = vmul.f32 %v521, %v585
        %v593 = vmul.f32 %v522, %v585
        %v594 = vmul.f32 %v523, %v585
        %v595 = vmul.f32 %v524, %v585
        %v596 = vmul.f32 %v525, %v585
        %v597 = vmul.f32 %v526, %v585
        %v598 = vmul.f32 %v527, %v585
        %v599 = vmul.f32 %v528, %v585
        %v600 = vmul.f32 %v529, %v585
        %v601 = vmul.f32 %v530, %v585
        %v602 = vmul.f32 %v531, %v585
        %v603 = vmul.f32 %v532, %v585
        %v604 = vmul.f32 %v533, %v585
        %v605 = vmul.f32 %v534, %v585
        %v606 = vmul.f32 %v535, %v585
        %v607 = vmul.f32 %v536, %v585
        %v608 = vmul.f32 %v537, %v585
        %v609 = vmul.f32 %v538, %v585
        %v610 = vmul.f32 %v539, %v585
        %v611 = vmul.f32 %v540, %v585
        %v612 = vmul.f32 %v541, %v585
        %v613 = vmul.f32 %v542, %v585
        %v614 = vmul.f32 %v543, %v585
        %v615 = vmul.f32 %v544, %v585
        %v616 = vmul.f32 %v545, %v585
        %v617 = vmul.f32 %v546, %v585
        %v618 = vmul.f32 %v547, %v585
        %v619 = vmul.f32 %v548, %v585
        %v620 = vmul.f32 %v549, %v585
        %v621 = vmul.f32 %v550, %v585
        %v622 = vmul.f32 %v551, %v585
        %v623 = vmul.f32 %v552, %v585
        %v624 = vmul.f32 %v553, %v585
        %v625 = vmul.f32 %v554, %v585
        %v626 = vmul.f32 %v555, %v585
        %v627 = vmul.f32 %v556, %v585
        %v628 = vmul.f32 %v557, %v585
        %v629 = vmul.f32 %v558, %v585
        %v630 = vmul.f32 %v559, %v585
        %v631 = vmul.f32 %v560, %v585
        %v632 = vmul.f32 %v561, %v585
        %v633 = vmul.f32 %v562, %v585
        %v634 = vmul.f32 %v563, %v585
        %v635 = vmul.f32 %v564, %v585
        %v636 = vmul.f32 %v565, %v585
        %v637 = vmul.f32 %v566, %v585
        %v638 = vmul.f32 %v567, %v585
        %v639 = vmul.f32 %v568, %v585
        %v640 = vmul.f32 %v569, %v585
        %v641 = vmul.f32 %v570, %v585
        %v642 = vmul.f32 %v571, %v585
        %v643 = vmul.f32 %v572, %v585
        %v644 = vmul.f32 %v573, %v585
        %v645 = vmul.f32 %v574, %v585
        %v646 = vmul.f32 %v575, %v585
        %v647 = vmul.f32 %v576, %v585
        %v648 = vmul.f32 %v577, %v585
        %v649 = vmul.f32 %v578, %v585
        %v650 = vmul.f32 %v579, %v585
        %651 = vadd.xlane.f32.xlu0 %v587
        %v652 = vpop.xlane.xlu0 %651
        %653 = vadd.xlane.f32.xlu0 %v588
        %v654 = vpop.xlane.xlu0 %653
        %655 = vadd.xlane.f32.xlu0 %v589
        %v656 = vpop.xlane.xlu0 %655
        %657 = vadd.xlane.f32.xlu0 %v590
        %v658 = vpop.xlane.xlu0 %657
        %659 = vadd.xlane.f32.xlu0 %v591
        %v660 = vpop.xlane.xlu0 %659
        %661 = vadd.xlane.f32.xlu0 %v592
        %v662 = vpop.xlane.xlu0 %661
        %663 = vadd.xlane.f32.xlu0 %v593
        %v664 = vpop.xlane.xlu0 %663
        %665 = vadd.xlane.f32.xlu0 %v594
        %v666 = vpop.xlane.xlu0 %665
        %667 = vadd.xlane.f32.xlu0 %v595
        %v668 = vpop.xlane.xlu0 %667
        %669 = vadd.xlane.f32.xlu0 %v596
        %v670 = vpop.xlane.xlu0 %669
        %671 = vadd.xlane.f32.xlu0 %v597
        %v672 = vpop.xlane.xlu0 %671
        %673 = vadd.xlane.f32.xlu0 %v598
        %v674 = vpop.xlane.xlu0 %673
        %675 = vadd.xlane.f32.xlu0 %v599
        %v676 = vpop.xlane.xlu0 %675
        %677 = vadd.xlane.f32.xlu0 %v600
        %v678 = vpop.xlane.xlu0 %677
        %679 = vadd.xlane.f32.xlu0 %v601
        %v680 = vpop.xlane.xlu0 %679
        %681 = vadd.xlane.f32.xlu0 %v602
        %v682 = vpop.xlane.xlu0 %681
        %683 = vadd.xlane.f32.xlu0 %v603
        %v684 = vpop.xlane.xlu0 %683
        %685 = vadd.xlane.f32.xlu0 %v604
        %v686 = vpop.xlane.xlu0 %685
        %687 = vadd.xlane.f32.xlu0 %v605
        %v688 = vpop.xlane.xlu0 %687
        %689 = vadd.xlane.f32.xlu0 %v606
        %v690 = vpop.xlane.xlu0 %689
        %691 = vadd.xlane.f32.xlu0 %v607
        %v692 = vpop.xlane.xlu0 %691
        %693 = vadd.xlane.f32.xlu0 %v608
        %v694 = vpop.xlane.xlu0 %693
        %695 = vadd.xlane.f32.xlu0 %v609
        %v696 = vpop.xlane.xlu0 %695
        %697 = vadd.xlane.f32.xlu0 %v610
        %v698 = vpop.xlane.xlu0 %697
        %699 = vadd.xlane.f32.xlu0 %v611
        %v700 = vpop.xlane.xlu0 %699
        %701 = vadd.xlane.f32.xlu0 %v612
        %v702 = vpop.xlane.xlu0 %701
        %703 = vadd.xlane.f32.xlu0 %v613
        %v704 = vpop.xlane.xlu0 %703
        %705 = vadd.xlane.f32.xlu0 %v614
        %v706 = vpop.xlane.xlu0 %705
        %707 = vadd.xlane.f32.xlu0 %v615
        %v708 = vpop.xlane.xlu0 %707
        %709 = vadd.xlane.f32.xlu0 %v616
        %v710 = vpop.xlane.xlu0 %709
        %711 = vadd.xlane.f32.xlu0 %v617
        %v712 = vpop.xlane.xlu0 %711
        %713 = vadd.xlane.f32.xlu0 %v618
        %v714 = vpop.xlane.xlu0 %713
        %715 = vadd.xlane.f32.xlu0 %v619
        %v716 = vpop.xlane.xlu0 %715
        %717 = vadd.xlane.f32.xlu0 %v620
        %v718 = vpop.xlane.xlu0 %717
        %719 = vadd.xlane.f32.xlu0 %v621
        %v720 = vpop.xlane.xlu0 %719
        %721 = vadd.xlane.f32.xlu0 %v622
        %v722 = vpop.xlane.xlu0 %721
        %723 = vadd.xlane.f32.xlu0 %v623
        %v724 = vpop.xlane.xlu0 %723
        %725 = vadd.xlane.f32.xlu0 %v624
        %v726 = vpop.xlane.xlu0 %725
        %727 = vadd.xlane.f32.xlu0 %v625
        %v728 = vpop.xlane.xlu0 %727
        %729 = vadd.xlane.f32.xlu0 %v626
        %v730 = vpop.xlane.xlu0 %729
        %731 = vadd.xlane.f32.xlu0 %v627
        %v732 = vpop.xlane.xlu0 %731
        %733 = vadd.xlane.f32.xlu0 %v628
        %v734 = vpop.xlane.xlu0 %733
        %735 = vadd.xlane.f32.xlu0 %v629
        %v736 = vpop.xlane.xlu0 %735
        %737 = vadd.xlane.f32.xlu0 %v630
        %v738 = vpop.xlane.xlu0 %737
        %739 = vadd.xlane.f32.xlu0 %v631
        %v740 = vpop.xlane.xlu0 %739
        %741 = vadd.xlane.f32.xlu0 %v632
        %v742 = vpop.xlane.xlu0 %741
        %743 = vadd.xlane.f32.xlu0 %v633
        %v744 = vpop.xlane.xlu0 %743
        %745 = vadd.xlane.f32.xlu0 %v634
        %v746 = vpop.xlane.xlu0 %745
        %747 = vadd.xlane.f32.xlu0 %v635
        %v748 = vpop.xlane.xlu0 %747
        %749 = vadd.xlane.f32.xlu0 %v636
        %v750 = vpop.xlane.xlu0 %749
        %751 = vadd.xlane.f32.xlu0 %v637
        %v752 = vpop.xlane.xlu0 %751
        %753 = vadd.xlane.f32.xlu0 %v638
        %v754 = vpop.xlane.xlu0 %753
        %755 = vadd.xlane.f32.xlu0 %v639
        %v756 = vpop.xlane.xlu0 %755
        %757 = vadd.xlane.f32.xlu0 %v640
        %v758 = vpop.xlane.xlu0 %757
        %759 = vadd.xlane.f32.xlu0 %v641
        %v760 = vpop.xlane.xlu0 %759
        %761 = vadd.xlane.f32.xlu0 %v642
        %v762 = vpop.xlane.xlu0 %761
        %763 = vadd.xlane.f32.xlu0 %v643
        %v764 = vpop.xlane.xlu0 %763
        %765 = vadd.xlane.f32.xlu0 %v644
        %v766 = vpop.xlane.xlu0 %765
        %767 = vadd.xlane.f32.xlu0 %v645
        %v768 = vpop.xlane.xlu0 %767
        %769 = vadd.xlane.f32.xlu0 %v646
        %v770 = vpop.xlane.xlu0 %769
        %771 = vadd.xlane.f32.xlu0 %v647
        %v772 = vpop.xlane.xlu0 %771
        %773 = vadd.xlane.f32.xlu0 %v648
        %v774 = vpop.xlane.xlu0 %773
        %775 = vadd.xlane.f32.xlu0 %v649
        %v776 = vpop.xlane.xlu0 %775
        %777 = vadd.xlane.f32.xlu0 %v650
        %v778 = vpop.xlane.xlu0 %777
        %v844 = vunpack.c.l.s4 269488144
        %v845 = vunpack.c.0.s8 %v844
        %v846 = vlaneseq
        %v847 = vshrl.u32 %v846, 7
        %v848 = vsub.s32 %v845, %v847
        %v849 = vrot.slane %v652, %v848
        %v851 = vunpack.c.l.s4 842150450
        %v852 = vunpack.c.0.s8 %v851
        %v853 = vlaneseq
        %v854 = vshrl.u32 %v853, 7
        %v855 = vsub.s32 %v852, %v854
        %v856 = vrot.slane %v652, %v855
        %v858 = vunpack.c.l.s4 1414812756
        %v859 = vunpack.c.0.s8 %v858
        %v860 = vlaneseq
        %v861 = vshrl.u32 %v860, 7
        %v862 = vsub.s32 %v859, %v861
        %v863 = vrot.slane %v652, %v862
        %v865 = vunpack.c.l.s4 1987475062
        %v866 = vunpack.c.0.s8 %v865
        %v867 = vlaneseq
        %v868 = vshrl.u32 %v867, 7
        %v869 = vsub.s32 %v866, %v868
        %v870 = vrot.slane %v652, %v869
        %v872 = vunpack.c.l.s4 269488144
        %v873 = vunpack.c.0.s8 %v872
        %v874 = vlaneseq
        %v875 = vshrl.u32 %v874, 7
        %v876 = vsub.s32 %v873, %v875
        %v877 = vrot.slane %v654, %v876
        %v879 = vunpack.c.l.s4 842150450
        %v880 = vunpack.c.0.s8 %v879
        %v881 = vlaneseq
        %v882 = vshrl.u32 %v881, 7
        %v883 = vsub.s32 %v880, %v882
        %v884 = vrot.slane %v654, %v883
        %v886 = vunpack.c.l.s4 1414812756
        %v887 = vunpack.c.0.s8 %v886
        %v888 = vlaneseq
        %v889 = vshrl.u32 %v888, 7
        %v890 = vsub.s32 %v887, %v889
        %v891 = vrot.slane %v654, %v890
        %v893 = vunpack.c.l.s4 1987475062
        %v894 = vunpack.c.0.s8 %v893
        %v895 = vlaneseq
        %v896 = vshrl.u32 %v895, 7
        %v897 = vsub.s32 %v894, %v896
        %v898 = vrot.slane %v654, %v897
        %v900 = vunpack.c.l.s4 269488144
        %v901 = vunpack.c.0.s8 %v900
        %v902 = vlaneseq
        %v903 = vshrl.u32 %v902, 7
        %v904 = vsub.s32 %v901, %v903
        %v905 = vrot.slane %v656, %v904
        %v907 = vunpack.c.l.s4 842150450
        %v908 = vunpack.c.0.s8 %v907
        %v909 = vlaneseq
        %v910 = vshrl.u32 %v909, 7
        %v911 = vsub.s32 %v908, %v910
        %v912 = vrot.slane %v656, %v911
        %v914 = vunpack.c.l.s4 1414812756
        %v915 = vunpack.c.0.s8 %v914
        %v916 = vlaneseq
        %v917 = vshrl.u32 %v916, 7
        %v918 = vsub.s32 %v915, %v917
        %v919 = vrot.slane %v656, %v918
        %v921 = vunpack.c.l.s4 1987475062
        %v922 = vunpack.c.0.s8 %v921
        %v923 = vlaneseq
        %v924 = vshrl.u32 %v923, 7
        %v925 = vsub.s32 %v922, %v924
        %v926 = vrot.slane %v656, %v925
        %v928 = vunpack.c.l.s4 269488144
        %v929 = vunpack.c.0.s8 %v928
        %v930 = vlaneseq
        %v931 = vshrl.u32 %v930, 7
        %v932 = vsub.s32 %v929, %v931
        %v933 = vrot.slane %v658, %v932
        %v935 = vunpack.c.l.s4 842150450
        %v936 = vunpack.c.0.s8 %v935
        %v937 = vlaneseq
        %v938 = vshrl.u32 %v937, 7
        %v939 = vsub.s32 %v936, %v938
        %v940 = vrot.slane %v658, %v939
        %v942 = vunpack.c.l.s4 1414812756
        %v943 = vunpack.c.0.s8 %v942
        %v944 = vlaneseq
        %v945 = vshrl.u32 %v944, 7
        %v946 = vsub.s32 %v943, %v945
        %v947 = vrot.slane %v658, %v946
        %v949 = vunpack.c.l.s4 1987475062
        %v950 = vunpack.c.0.s8 %v949
        %v951 = vlaneseq
        %v952 = vshrl.u32 %v951, 7
        %v953 = vsub.s32 %v950, %v952
        %v954 = vrot.slane %v658, %v953
        %v956 = vunpack.c.l.s4 269488144
        %v957 = vunpack.c.0.s8 %v956
        %v958 = vlaneseq
        %v959 = vshrl.u32 %v958, 7
        %v960 = vsub.s32 %v957, %v959
        %v961 = vrot.slane %v660, %v960
        %v963 = vunpack.c.l.s4 842150450
        %v964 = vunpack.c.0.s8 %v963
        %v965 = vlaneseq
        %v966 = vshrl.u32 %v965, 7
        %v967 = vsub.s32 %v964, %v966
        %v968 = vrot.slane %v660, %v967
        %v970 = vunpack.c.l.s4 1414812756
        %v971 = vunpack.c.0.s8 %v970
        %v972 = vlaneseq
        %v973 = vshrl.u32 %v972, 7
        %v974 = vsub.s32 %v971, %v973
        %v975 = vrot.slane %v660, %v974
        %v977 = vunpack.c.l.s4 1987475062
        %v978 = vunpack.c.0.s8 %v977
        %v979 = vlaneseq
        %v980 = vshrl.u32 %v979, 7
        %v981 = vsub.s32 %v978, %v980
        %v982 = vrot.slane %v660, %v981
        %v984 = vunpack.c.l.s4 269488144
        %v985 = vunpack.c.0.s8 %v984
        %v986 = vlaneseq
        %v987 = vshrl.u32 %v986, 7
        %v988 = vsub.s32 %v985, %v987
        %v989 = vrot.slane %v662, %v988
        %v991 = vunpack.c.l.s4 842150450
        %v992 = vunpack.c.0.s8 %v991
        %v993 = vlaneseq
        %v994 = vshrl.u32 %v993, 7
        %v995 = vsub.s32 %v992, %v994
        %v996 = vrot.slane %v662, %v995
        %v998 = vunpack.c.l.s4 1414812756
        %v999 = vunpack.c.0.s8 %v998
        %v1000 = vlaneseq
        %v1001 = vshrl.u32 %v1000, 7
        %v1002 = vsub.s32 %v999, %v1001
        %v1003 = vrot.slane %v662, %v1002
        %v1005 = vunpack.c.l.s4 1987475062
        %v1006 = vunpack.c.0.s8 %v1005
        %v1007 = vlaneseq
        %v1008 = vshrl.u32 %v1007, 7
        %v1009 = vsub.s32 %v1006, %v1008
        %v1010 = vrot.slane %v662, %v1009
        %v1012 = vunpack.c.l.s4 269488144
        %v1013 = vunpack.c.0.s8 %v1012
        %v1014 = vlaneseq
        %v1015 = vshrl.u32 %v1014, 7
        %v1016 = vsub.s32 %v1013, %v1015
        %v1017 = vrot.slane %v664, %v1016
        %v1019 = vunpack.c.l.s4 842150450
        %v1020 = vunpack.c.0.s8 %v1019
        %v1021 = vlaneseq
        %v1022 = vshrl.u32 %v1021, 7
        %v1023 = vsub.s32 %v1020, %v1022
        %v1024 = vrot.slane %v664, %v1023
        %v1026 = vunpack.c.l.s4 1414812756
        %v1027 = vunpack.c.0.s8 %v1026
        %v1028 = vlaneseq
        %v1029 = vshrl.u32 %v1028, 7
        %v1030 = vsub.s32 %v1027, %v1029
        %v1031 = vrot.slane %v664, %v1030
        %v1033 = vunpack.c.l.s4 1987475062
        %v1034 = vunpack.c.0.s8 %v1033
        %v1035 = vlaneseq
        %v1036 = vshrl.u32 %v1035, 7
        %v1037 = vsub.s32 %v1034, %v1036
        %v1038 = vrot.slane %v664, %v1037
        %v1040 = vunpack.c.l.s4 269488144
        %v1041 = vunpack.c.0.s8 %v1040
        %v1042 = vlaneseq
        %v1043 = vshrl.u32 %v1042, 7
        %v1044 = vsub.s32 %v1041, %v1043
        %v1045 = vrot.slane %v666, %v1044
        %v1047 = vunpack.c.l.s4 842150450
        %v1048 = vunpack.c.0.s8 %v1047
        %v1049 = vlaneseq
        %v1050 = vshrl.u32 %v1049, 7
        %v1051 = vsub.s32 %v1048, %v1050
        %v1052 = vrot.slane %v666, %v1051
        %v1054 = vunpack.c.l.s4 1414812756
        %v1055 = vunpack.c.0.s8 %v1054
        %v1056 = vlaneseq
        %v1057 = vshrl.u32 %v1056, 7
        %v1058 = vsub.s32 %v1055, %v1057
        %v1059 = vrot.slane %v666, %v1058
        %v1061 = vunpack.c.l.s4 1987475062
        %v1062 = vunpack.c.0.s8 %v1061
        %v1063 = vlaneseq
        %v1064 = vshrl.u32 %v1063, 7
        %v1065 = vsub.s32 %v1062, %v1064
        %v1066 = vrot.slane %v666, %v1065
        %v1068 = vunpack.c.l.s4 269488144
        %v1069 = vunpack.c.0.s8 %v1068
        %v1070 = vlaneseq
        %v1071 = vshrl.u32 %v1070, 7
        %v1072 = vsub.s32 %v1069, %v1071
        %v1073 = vrot.slane %v668, %v1072
        %v1075 = vunpack.c.l.s4 842150450
        %v1076 = vunpack.c.0.s8 %v1075
        %v1077 = vlaneseq
        %v1078 = vshrl.u32 %v1077, 7
        %v1079 = vsub.s32 %v1076, %v1078
        %v1080 = vrot.slane %v668, %v1079
        %v1082 = vunpack.c.l.s4 1414812756
        %v1083 = vunpack.c.0.s8 %v1082
        %v1084 = vlaneseq
        %v1085 = vshrl.u32 %v1084, 7
        %v1086 = vsub.s32 %v1083, %v1085
        %v1087 = vrot.slane %v668, %v1086
        %v1089 = vunpack.c.l.s4 1987475062
        %v1090 = vunpack.c.0.s8 %v1089
        %v1091 = vlaneseq
        %v1092 = vshrl.u32 %v1091, 7
        %v1093 = vsub.s32 %v1090, %v1092
        %v1094 = vrot.slane %v668, %v1093
        %v1096 = vunpack.c.l.s4 269488144
        %v1097 = vunpack.c.0.s8 %v1096
        %v1098 = vlaneseq
        %v1099 = vshrl.u32 %v1098, 7
        %v1100 = vsub.s32 %v1097, %v1099
        %v1101 = vrot.slane %v670, %v1100
        %v1103 = vunpack.c.l.s4 842150450
        %v1104 = vunpack.c.0.s8 %v1103
        %v1105 = vlaneseq
        %v1106 = vshrl.u32 %v1105, 7
        %v1107 = vsub.s32 %v1104, %v1106
        %v1108 = vrot.slane %v670, %v1107
        %v1110 = vunpack.c.l.s4 1414812756
        %v1111 = vunpack.c.0.s8 %v1110
        %v1112 = vlaneseq
        %v1113 = vshrl.u32 %v1112, 7
        %v1114 = vsub.s32 %v1111, %v1113
        %v1115 = vrot.slane %v670, %v1114
        %v1117 = vunpack.c.l.s4 1987475062
        %v1118 = vunpack.c.0.s8 %v1117
        %v1119 = vlaneseq
        %v1120 = vshrl.u32 %v1119, 7
        %v1121 = vsub.s32 %v1118, %v1120
        %v1122 = vrot.slane %v670, %v1121
        %v1124 = vunpack.c.l.s4 269488144
        %v1125 = vunpack.c.0.s8 %v1124
        %v1126 = vlaneseq
        %v1127 = vshrl.u32 %v1126, 7
        %v1128 = vsub.s32 %v1125, %v1127
        %v1129 = vrot.slane %v672, %v1128
        %v1131 = vunpack.c.l.s4 842150450
        %v1132 = vunpack.c.0.s8 %v1131
        %v1133 = vlaneseq
        %v1134 = vshrl.u32 %v1133, 7
        %v1135 = vsub.s32 %v1132, %v1134
        %v1136 = vrot.slane %v672, %v1135
        %v1138 = vunpack.c.l.s4 1414812756
        %v1139 = vunpack.c.0.s8 %v1138
        %v1140 = vlaneseq
        %v1141 = vshrl.u32 %v1140, 7
        %v1142 = vsub.s32 %v1139, %v1141
        %v1143 = vrot.slane %v672, %v1142
        %v1145 = vunpack.c.l.s4 1987475062
        %v1146 = vunpack.c.0.s8 %v1145
        %v1147 = vlaneseq
        %v1148 = vshrl.u32 %v1147, 7
        %v1149 = vsub.s32 %v1146, %v1148
        %v1150 = vrot.slane %v672, %v1149
        %v1152 = vunpack.c.l.s4 269488144
        %v1153 = vunpack.c.0.s8 %v1152
        %v1154 = vlaneseq
        %v1155 = vshrl.u32 %v1154, 7
        %v1156 = vsub.s32 %v1153, %v1155
        %v1157 = vrot.slane %v674, %v1156
        %v1159 = vunpack.c.l.s4 842150450
        %v1160 = vunpack.c.0.s8 %v1159
        %v1161 = vlaneseq
        %v1162 = vshrl.u32 %v1161, 7
        %v1163 = vsub.s32 %v1160, %v1162
        %v1164 = vrot.slane %v674, %v1163
        %v1166 = vunpack.c.l.s4 1414812756
        %v1167 = vunpack.c.0.s8 %v1166
        %v1168 = vlaneseq
        %v1169 = vshrl.u32 %v1168, 7
        %v1170 = vsub.s32 %v1167, %v1169
        %v1171 = vrot.slane %v674, %v1170
        %v1173 = vunpack.c.l.s4 1987475062
        %v1174 = vunpack.c.0.s8 %v1173
        %v1175 = vlaneseq
        %v1176 = vshrl.u32 %v1175, 7
        %v1177 = vsub.s32 %v1174, %v1176
        %v1178 = vrot.slane %v674, %v1177
        %v1180 = vunpack.c.l.s4 269488144
        %v1181 = vunpack.c.0.s8 %v1180
        %v1182 = vlaneseq
        %v1183 = vshrl.u32 %v1182, 7
        %v1184 = vsub.s32 %v1181, %v1183
        %v1185 = vrot.slane %v676, %v1184
        %v1187 = vunpack.c.l.s4 842150450
        %v1188 = vunpack.c.0.s8 %v1187
        %v1189 = vlaneseq
        %v1190 = vshrl.u32 %v1189, 7
        %v1191 = vsub.s32 %v1188, %v1190
        %v1192 = vrot.slane %v676, %v1191
        %v1194 = vunpack.c.l.s4 1414812756
        %v1195 = vunpack.c.0.s8 %v1194
        %v1196 = vlaneseq
        %v1197 = vshrl.u32 %v1196, 7
        %v1198 = vsub.s32 %v1195, %v1197
        %v1199 = vrot.slane %v676, %v1198
        %v1201 = vunpack.c.l.s4 1987475062
        %v1202 = vunpack.c.0.s8 %v1201
        %v1203 = vlaneseq
        %v1204 = vshrl.u32 %v1203, 7
        %v1205 = vsub.s32 %v1202, %v1204
        %v1206 = vrot.slane %v676, %v1205
        %v1208 = vunpack.c.l.s4 269488144
        %v1209 = vunpack.c.0.s8 %v1208
        %v1210 = vlaneseq
        %v1211 = vshrl.u32 %v1210, 7
        %v1212 = vsub.s32 %v1209, %v1211
        %v1213 = vrot.slane %v678, %v1212
        %v1215 = vunpack.c.l.s4 842150450
        %v1216 = vunpack.c.0.s8 %v1215
        %v1217 = vlaneseq
        %v1218 = vshrl.u32 %v1217, 7
        %v1219 = vsub.s32 %v1216, %v1218
        %v1220 = vrot.slane %v678, %v1219
        %v1222 = vunpack.c.l.s4 1414812756
        %v1223 = vunpack.c.0.s8 %v1222
        %v1224 = vlaneseq
        %v1225 = vshrl.u32 %v1224, 7
        %v1226 = vsub.s32 %v1223, %v1225
        %v1227 = vrot.slane %v678, %v1226
        %v1229 = vunpack.c.l.s4 1987475062
        %v1230 = vunpack.c.0.s8 %v1229
        %v1231 = vlaneseq
        %v1232 = vshrl.u32 %v1231, 7
        %v1233 = vsub.s32 %v1230, %v1232
        %v1234 = vrot.slane %v678, %v1233
        %v1236 = vunpack.c.l.s4 269488144
        %v1237 = vunpack.c.0.s8 %v1236
        %v1238 = vlaneseq
        %v1239 = vshrl.u32 %v1238, 7
        %v1240 = vsub.s32 %v1237, %v1239
        %v1241 = vrot.slane %v680, %v1240
        %v1243 = vunpack.c.l.s4 842150450
        %v1244 = vunpack.c.0.s8 %v1243
        %v1245 = vlaneseq
        %v1246 = vshrl.u32 %v1245, 7
        %v1247 = vsub.s32 %v1244, %v1246
        %v1248 = vrot.slane %v680, %v1247
        %v1250 = vunpack.c.l.s4 1414812756
        %v1251 = vunpack.c.0.s8 %v1250
        %v1252 = vlaneseq
        %v1253 = vshrl.u32 %v1252, 7
        %v1254 = vsub.s32 %v1251, %v1253
        %v1255 = vrot.slane %v680, %v1254
        %v1257 = vunpack.c.l.s4 1987475062
        %v1258 = vunpack.c.0.s8 %v1257
        %v1259 = vlaneseq
        %v1260 = vshrl.u32 %v1259, 7
        %v1261 = vsub.s32 %v1258, %v1260
        %v1262 = vrot.slane %v680, %v1261
        %v1264 = vunpack.c.l.s4 269488144
        %v1265 = vunpack.c.0.s8 %v1264
        %v1266 = vlaneseq
        %v1267 = vshrl.u32 %v1266, 7
        %v1268 = vsub.s32 %v1265, %v1267
        %v1269 = vrot.slane %v682, %v1268
        %v1271 = vunpack.c.l.s4 842150450
        %v1272 = vunpack.c.0.s8 %v1271
        %v1273 = vlaneseq
        %v1274 = vshrl.u32 %v1273, 7
        %v1275 = vsub.s32 %v1272, %v1274
        %v1276 = vrot.slane %v682, %v1275
        %v1278 = vunpack.c.l.s4 1414812756
        %v1279 = vunpack.c.0.s8 %v1278
        %v1280 = vlaneseq
        %v1281 = vshrl.u32 %v1280, 7
        %v1282 = vsub.s32 %v1279, %v1281
        %v1283 = vrot.slane %v682, %v1282
        %v1285 = vunpack.c.l.s4 1987475062
        %v1286 = vunpack.c.0.s8 %v1285
        %v1287 = vlaneseq
        %v1288 = vshrl.u32 %v1287, 7
        %v1289 = vsub.s32 %v1286, %v1288
        %v1290 = vrot.slane %v682, %v1289
        %v1292 = vunpack.c.l.s4 269488144
        %v1293 = vunpack.c.0.s8 %v1292
        %v1294 = vlaneseq
        %v1295 = vshrl.u32 %v1294, 7
        %v1296 = vsub.s32 %v1293, %v1295
        %v1297 = vrot.slane %v684, %v1296
        %v1299 = vunpack.c.l.s4 842150450
        %v1300 = vunpack.c.0.s8 %v1299
        %v1301 = vlaneseq
        %v1302 = vshrl.u32 %v1301, 7
        %v1303 = vsub.s32 %v1300, %v1302
        %v1304 = vrot.slane %v684, %v1303
        %v1306 = vunpack.c.l.s4 1414812756
        %v1307 = vunpack.c.0.s8 %v1306
        %v1308 = vlaneseq
        %v1309 = vshrl.u32 %v1308, 7
        %v1310 = vsub.s32 %v1307, %v1309
        %v1311 = vrot.slane %v684, %v1310
        %v1313 = vunpack.c.l.s4 1987475062
        %v1314 = vunpack.c.0.s8 %v1313
        %v1315 = vlaneseq
        %v1316 = vshrl.u32 %v1315, 7
        %v1317 = vsub.s32 %v1314, %v1316
        %v1318 = vrot.slane %v684, %v1317
        %v1320 = vunpack.c.l.s4 269488144
        %v1321 = vunpack.c.0.s8 %v1320
        %v1322 = vlaneseq
        %v1323 = vshrl.u32 %v1322, 7
        %v1324 = vsub.s32 %v1321, %v1323
        %v1325 = vrot.slane %v686, %v1324
        %v1327 = vunpack.c.l.s4 842150450
        %v1328 = vunpack.c.0.s8 %v1327
        %v1329 = vlaneseq
        %v1330 = vshrl.u32 %v1329, 7
        %v1331 = vsub.s32 %v1328, %v1330
        %v1332 = vrot.slane %v686, %v1331
        %v1334 = vunpack.c.l.s4 1414812756
        %v1335 = vunpack.c.0.s8 %v1334
        %v1336 = vlaneseq
        %v1337 = vshrl.u32 %v1336, 7
        %v1338 = vsub.s32 %v1335, %v1337
        %v1339 = vrot.slane %v686, %v1338
        %v1341 = vunpack.c.l.s4 1987475062
        %v1342 = vunpack.c.0.s8 %v1341
        %v1343 = vlaneseq
        %v1344 = vshrl.u32 %v1343, 7
        %v1345 = vsub.s32 %v1342, %v1344
        %v1346 = vrot.slane %v686, %v1345
        %v1348 = vunpack.c.l.s4 269488144
        %v1349 = vunpack.c.0.s8 %v1348
        %v1350 = vlaneseq
        %v1351 = vshrl.u32 %v1350, 7
        %v1352 = vsub.s32 %v1349, %v1351
        %v1353 = vrot.slane %v688, %v1352
        %v1355 = vunpack.c.l.s4 842150450
        %v1356 = vunpack.c.0.s8 %v1355
        %v1357 = vlaneseq
        %v1358 = vshrl.u32 %v1357, 7
        %v1359 = vsub.s32 %v1356, %v1358
        %v1360 = vrot.slane %v688, %v1359
        %v1362 = vunpack.c.l.s4 1414812756
        %v1363 = vunpack.c.0.s8 %v1362
        %v1364 = vlaneseq
        %v1365 = vshrl.u32 %v1364, 7
        %v1366 = vsub.s32 %v1363, %v1365
        %v1367 = vrot.slane %v688, %v1366
        %v1369 = vunpack.c.l.s4 1987475062
        %v1370 = vunpack.c.0.s8 %v1369
        %v1371 = vlaneseq
        %v1372 = vshrl.u32 %v1371, 7
        %v1373 = vsub.s32 %v1370, %v1372
        %v1374 = vrot.slane %v688, %v1373
        %v1376 = vunpack.c.l.s4 269488144
        %v1377 = vunpack.c.0.s8 %v1376
        %v1378 = vlaneseq
        %v1379 = vshrl.u32 %v1378, 7
        %v1380 = vsub.s32 %v1377, %v1379
        %v1381 = vrot.slane %v690, %v1380
        %v1383 = vunpack.c.l.s4 842150450
        %v1384 = vunpack.c.0.s8 %v1383
        %v1385 = vlaneseq
        %v1386 = vshrl.u32 %v1385, 7
        %v1387 = vsub.s32 %v1384, %v1386
        %v1388 = vrot.slane %v690, %v1387
        %v1390 = vunpack.c.l.s4 1414812756
        %v1391 = vunpack.c.0.s8 %v1390
        %v1392 = vlaneseq
        %v1393 = vshrl.u32 %v1392, 7
        %v1394 = vsub.s32 %v1391, %v1393
        %v1395 = vrot.slane %v690, %v1394
        %v1397 = vunpack.c.l.s4 1987475062
        %v1398 = vunpack.c.0.s8 %v1397
        %v1399 = vlaneseq
        %v1400 = vshrl.u32 %v1399, 7
        %v1401 = vsub.s32 %v1398, %v1400
        %v1402 = vrot.slane %v690, %v1401
        %v1404 = vunpack.c.l.s4 269488144
        %v1405 = vunpack.c.0.s8 %v1404
        %v1406 = vlaneseq
        %v1407 = vshrl.u32 %v1406, 7
        %v1408 = vsub.s32 %v1405, %v1407
        %v1409 = vrot.slane %v692, %v1408
        %v1411 = vunpack.c.l.s4 842150450
        %v1412 = vunpack.c.0.s8 %v1411
        %v1413 = vlaneseq
        %v1414 = vshrl.u32 %v1413, 7
        %v1415 = vsub.s32 %v1412, %v1414
        %v1416 = vrot.slane %v692, %v1415
        %v1418 = vunpack.c.l.s4 1414812756
        %v1419 = vunpack.c.0.s8 %v1418
        %v1420 = vlaneseq
        %v1421 = vshrl.u32 %v1420, 7
        %v1422 = vsub.s32 %v1419, %v1421
        %v1423 = vrot.slane %v692, %v1422
        %v1425 = vunpack.c.l.s4 1987475062
        %v1426 = vunpack.c.0.s8 %v1425
        %v1427 = vlaneseq
        %v1428 = vshrl.u32 %v1427, 7
        %v1429 = vsub.s32 %v1426, %v1428
        %v1430 = vrot.slane %v692, %v1429
        %v1432 = vunpack.c.l.s4 269488144
        %v1433 = vunpack.c.0.s8 %v1432
        %v1434 = vlaneseq
        %v1435 = vshrl.u32 %v1434, 7
        %v1436 = vsub.s32 %v1433, %v1435
        %v1437 = vrot.slane %v694, %v1436
        %v1439 = vunpack.c.l.s4 842150450
        %v1440 = vunpack.c.0.s8 %v1439
        %v1441 = vlaneseq
        %v1442 = vshrl.u32 %v1441, 7
        %v1443 = vsub.s32 %v1440, %v1442
        %v1444 = vrot.slane %v694, %v1443
        %v1446 = vunpack.c.l.s4 1414812756
        %v1447 = vunpack.c.0.s8 %v1446
        %v1448 = vlaneseq
        %v1449 = vshrl.u32 %v1448, 7
        %v1450 = vsub.s32 %v1447, %v1449
        %v1451 = vrot.slane %v694, %v1450
        %v1453 = vunpack.c.l.s4 1987475062
        %v1454 = vunpack.c.0.s8 %v1453
        %v1455 = vlaneseq
        %v1456 = vshrl.u32 %v1455, 7
        %v1457 = vsub.s32 %v1454, %v1456
        %v1458 = vrot.slane %v694, %v1457
        %v1460 = vunpack.c.l.s4 269488144
        %v1461 = vunpack.c.0.s8 %v1460
        %v1462 = vlaneseq
        %v1463 = vshrl.u32 %v1462, 7
        %v1464 = vsub.s32 %v1461, %v1463
        %v1465 = vrot.slane %v696, %v1464
        %v1467 = vunpack.c.l.s4 842150450
        %v1468 = vunpack.c.0.s8 %v1467
        %v1469 = vlaneseq
        %v1470 = vshrl.u32 %v1469, 7
        %v1471 = vsub.s32 %v1468, %v1470
        %v1472 = vrot.slane %v696, %v1471
        %v1474 = vunpack.c.l.s4 1414812756
        %v1475 = vunpack.c.0.s8 %v1474
        %v1476 = vlaneseq
        %v1477 = vshrl.u32 %v1476, 7
        %v1478 = vsub.s32 %v1475, %v1477
        %v1479 = vrot.slane %v696, %v1478
        %v1481 = vunpack.c.l.s4 1987475062
        %v1482 = vunpack.c.0.s8 %v1481
        %v1483 = vlaneseq
        %v1484 = vshrl.u32 %v1483, 7
        %v1485 = vsub.s32 %v1482, %v1484
        %v1486 = vrot.slane %v696, %v1485
        %v1488 = vunpack.c.l.s4 269488144
        %v1489 = vunpack.c.0.s8 %v1488
        %v1490 = vlaneseq
        %v1491 = vshrl.u32 %v1490, 7
        %v1492 = vsub.s32 %v1489, %v1491
        %v1493 = vrot.slane %v698, %v1492
        %v1495 = vunpack.c.l.s4 842150450
        %v1496 = vunpack.c.0.s8 %v1495
        %v1497 = vlaneseq
        %v1498 = vshrl.u32 %v1497, 7
        %v1499 = vsub.s32 %v1496, %v1498
        %v1500 = vrot.slane %v698, %v1499
        %v1502 = vunpack.c.l.s4 1414812756
        %v1503 = vunpack.c.0.s8 %v1502
        %v1504 = vlaneseq
        %v1505 = vshrl.u32 %v1504, 7
        %v1506 = vsub.s32 %v1503, %v1505
        %v1507 = vrot.slane %v698, %v1506
        %v1509 = vunpack.c.l.s4 1987475062
        %v1510 = vunpack.c.0.s8 %v1509
        %v1511 = vlaneseq
        %v1512 = vshrl.u32 %v1511, 7
        %v1513 = vsub.s32 %v1510, %v1512
        %v1514 = vrot.slane %v698, %v1513
        %v1516 = vunpack.c.l.s4 269488144
        %v1517 = vunpack.c.0.s8 %v1516
        %v1518 = vlaneseq
        %v1519 = vshrl.u32 %v1518, 7
        %v1520 = vsub.s32 %v1517, %v1519
        %v1521 = vrot.slane %v700, %v1520
        %v1523 = vunpack.c.l.s4 842150450
        %v1524 = vunpack.c.0.s8 %v1523
        %v1525 = vlaneseq
        %v1526 = vshrl.u32 %v1525, 7
        %v1527 = vsub.s32 %v1524, %v1526
        %v1528 = vrot.slane %v700, %v1527
        %v1530 = vunpack.c.l.s4 1414812756
        %v1531 = vunpack.c.0.s8 %v1530
        %v1532 = vlaneseq
        %v1533 = vshrl.u32 %v1532, 7
        %v1534 = vsub.s32 %v1531, %v1533
        %v1535 = vrot.slane %v700, %v1534
        %v1537 = vunpack.c.l.s4 1987475062
        %v1538 = vunpack.c.0.s8 %v1537
        %v1539 = vlaneseq
        %v1540 = vshrl.u32 %v1539, 7
        %v1541 = vsub.s32 %v1538, %v1540
        %v1542 = vrot.slane %v700, %v1541
        %v1544 = vunpack.c.l.s4 269488144
        %v1545 = vunpack.c.0.s8 %v1544
        %v1546 = vlaneseq
        %v1547 = vshrl.u32 %v1546, 7
        %v1548 = vsub.s32 %v1545, %v1547
        %v1549 = vrot.slane %v702, %v1548
        %v1551 = vunpack.c.l.s4 842150450
        %v1552 = vunpack.c.0.s8 %v1551
        %v1553 = vlaneseq
        %v1554 = vshrl.u32 %v1553, 7
        %v1555 = vsub.s32 %v1552, %v1554
        %v1556 = vrot.slane %v702, %v1555
        %v1558 = vunpack.c.l.s4 1414812756
        %v1559 = vunpack.c.0.s8 %v1558
        %v1560 = vlaneseq
        %v1561 = vshrl.u32 %v1560, 7
        %v1562 = vsub.s32 %v1559, %v1561
        %v1563 = vrot.slane %v702, %v1562
        %v1565 = vunpack.c.l.s4 1987475062
        %v1566 = vunpack.c.0.s8 %v1565
        %v1567 = vlaneseq
        %v1568 = vshrl.u32 %v1567, 7
        %v1569 = vsub.s32 %v1566, %v1568
        %v1570 = vrot.slane %v702, %v1569
        %v1572 = vunpack.c.l.s4 269488144
        %v1573 = vunpack.c.0.s8 %v1572
        %v1574 = vlaneseq
        %v1575 = vshrl.u32 %v1574, 7
        %v1576 = vsub.s32 %v1573, %v1575
        %v1577 = vrot.slane %v704, %v1576
        %v1579 = vunpack.c.l.s4 842150450
        %v1580 = vunpack.c.0.s8 %v1579
        %v1581 = vlaneseq
        %v1582 = vshrl.u32 %v1581, 7
        %v1583 = vsub.s32 %v1580, %v1582
        %v1584 = vrot.slane %v704, %v1583
        %v1586 = vunpack.c.l.s4 1414812756
        %v1587 = vunpack.c.0.s8 %v1586
        %v1588 = vlaneseq
        %v1589 = vshrl.u32 %v1588, 7
        %v1590 = vsub.s32 %v1587, %v1589
        %v1591 = vrot.slane %v704, %v1590
        %v1593 = vunpack.c.l.s4 1987475062
        %v1594 = vunpack.c.0.s8 %v1593
        %v1595 = vlaneseq
        %v1596 = vshrl.u32 %v1595, 7
        %v1597 = vsub.s32 %v1594, %v1596
        %v1598 = vrot.slane %v704, %v1597
        %v1600 = vunpack.c.l.s4 269488144
        %v1601 = vunpack.c.0.s8 %v1600
        %v1602 = vlaneseq
        %v1603 = vshrl.u32 %v1602, 7
        %v1604 = vsub.s32 %v1601, %v1603
        %v1605 = vrot.slane %v706, %v1604
        %v1607 = vunpack.c.l.s4 842150450
        %v1608 = vunpack.c.0.s8 %v1607
        %v1609 = vlaneseq
        %v1610 = vshrl.u32 %v1609, 7
        %v1611 = vsub.s32 %v1608, %v1610
        %v1612 = vrot.slane %v706, %v1611
        %v1614 = vunpack.c.l.s4 1414812756
        %v1615 = vunpack.c.0.s8 %v1614
        %v1616 = vlaneseq
        %v1617 = vshrl.u32 %v1616, 7
        %v1618 = vsub.s32 %v1615, %v1617
        %v1619 = vrot.slane %v706, %v1618
        %v1621 = vunpack.c.l.s4 1987475062
        %v1622 = vunpack.c.0.s8 %v1621
        %v1623 = vlaneseq
        %v1624 = vshrl.u32 %v1623, 7
        %v1625 = vsub.s32 %v1622, %v1624
        %v1626 = vrot.slane %v706, %v1625
        %v1628 = vunpack.c.l.s4 269488144
        %v1629 = vunpack.c.0.s8 %v1628
        %v1630 = vlaneseq
        %v1631 = vshrl.u32 %v1630, 7
        %v1632 = vsub.s32 %v1629, %v1631
        %v1633 = vrot.slane %v708, %v1632
        %v1635 = vunpack.c.l.s4 842150450
        %v1636 = vunpack.c.0.s8 %v1635
        %v1637 = vlaneseq
        %v1638 = vshrl.u32 %v1637, 7
        %v1639 = vsub.s32 %v1636, %v1638
        %v1640 = vrot.slane %v708, %v1639
        %v1642 = vunpack.c.l.s4 1414812756
        %v1643 = vunpack.c.0.s8 %v1642
        %v1644 = vlaneseq
        %v1645 = vshrl.u32 %v1644, 7
        %v1646 = vsub.s32 %v1643, %v1645
        %v1647 = vrot.slane %v708, %v1646
        %v1649 = vunpack.c.l.s4 1987475062
        %v1650 = vunpack.c.0.s8 %v1649
        %v1651 = vlaneseq
        %v1652 = vshrl.u32 %v1651, 7
        %v1653 = vsub.s32 %v1650, %v1652
        %v1654 = vrot.slane %v708, %v1653
        %v1656 = vunpack.c.l.s4 269488144
        %v1657 = vunpack.c.0.s8 %v1656
        %v1658 = vlaneseq
        %v1659 = vshrl.u32 %v1658, 7
        %v1660 = vsub.s32 %v1657, %v1659
        %v1661 = vrot.slane %v710, %v1660
        %v1663 = vunpack.c.l.s4 842150450
        %v1664 = vunpack.c.0.s8 %v1663
        %v1665 = vlaneseq
        %v1666 = vshrl.u32 %v1665, 7
        %v1667 = vsub.s32 %v1664, %v1666
        %v1668 = vrot.slane %v710, %v1667
        %v1670 = vunpack.c.l.s4 1414812756
        %v1671 = vunpack.c.0.s8 %v1670
        %v1672 = vlaneseq
        %v1673 = vshrl.u32 %v1672, 7
        %v1674 = vsub.s32 %v1671, %v1673
        %v1675 = vrot.slane %v710, %v1674
        %v1677 = vunpack.c.l.s4 1987475062
        %v1678 = vunpack.c.0.s8 %v1677
        %v1679 = vlaneseq
        %v1680 = vshrl.u32 %v1679, 7
        %v1681 = vsub.s32 %v1678, %v1680
        %v1682 = vrot.slane %v710, %v1681
        %v1684 = vunpack.c.l.s4 269488144
        %v1685 = vunpack.c.0.s8 %v1684
        %v1686 = vlaneseq
        %v1687 = vshrl.u32 %v1686, 7
        %v1688 = vsub.s32 %v1685, %v1687
        %v1689 = vrot.slane %v712, %v1688
        %v1691 = vunpack.c.l.s4 842150450
        %v1692 = vunpack.c.0.s8 %v1691
        %v1693 = vlaneseq
        %v1694 = vshrl.u32 %v1693, 7
        %v1695 = vsub.s32 %v1692, %v1694
        %v1696 = vrot.slane %v712, %v1695
        %v1698 = vunpack.c.l.s4 1414812756
        %v1699 = vunpack.c.0.s8 %v1698
        %v1700 = vlaneseq
        %v1701 = vshrl.u32 %v1700, 7
        %v1702 = vsub.s32 %v1699, %v1701
        %v1703 = vrot.slane %v712, %v1702
        %v1705 = vunpack.c.l.s4 1987475062
        %v1706 = vunpack.c.0.s8 %v1705
        %v1707 = vlaneseq
        %v1708 = vshrl.u32 %v1707, 7
        %v1709 = vsub.s32 %v1706, %v1708
        %v1710 = vrot.slane %v712, %v1709
        %v1712 = vunpack.c.l.s4 269488144
        %v1713 = vunpack.c.0.s8 %v1712
        %v1714 = vlaneseq
        %v1715 = vshrl.u32 %v1714, 7
        %v1716 = vsub.s32 %v1713, %v1715
        %v1717 = vrot.slane %v714, %v1716
        %v1719 = vunpack.c.l.s4 842150450
        %v1720 = vunpack.c.0.s8 %v1719
        %v1721 = vlaneseq
        %v1722 = vshrl.u32 %v1721, 7
        %v1723 = vsub.s32 %v1720, %v1722
        %v1724 = vrot.slane %v714, %v1723
        %v1726 = vunpack.c.l.s4 1414812756
        %v1727 = vunpack.c.0.s8 %v1726
        %v1728 = vlaneseq
        %v1729 = vshrl.u32 %v1728, 7
        %v1730 = vsub.s32 %v1727, %v1729
        %v1731 = vrot.slane %v714, %v1730
        %v1733 = vunpack.c.l.s4 1987475062
        %v1734 = vunpack.c.0.s8 %v1733
        %v1735 = vlaneseq
        %v1736 = vshrl.u32 %v1735, 7
        %v1737 = vsub.s32 %v1734, %v1736
        %v1738 = vrot.slane %v714, %v1737
        %v1740 = vunpack.c.l.s4 269488144
        %v1741 = vunpack.c.0.s8 %v1740
        %v1742 = vlaneseq
        %v1743 = vshrl.u32 %v1742, 7
        %v1744 = vsub.s32 %v1741, %v1743
        %v1745 = vrot.slane %v716, %v1744
        %v1747 = vunpack.c.l.s4 842150450
        %v1748 = vunpack.c.0.s8 %v1747
        %v1749 = vlaneseq
        %v1750 = vshrl.u32 %v1749, 7
        %v1751 = vsub.s32 %v1748, %v1750
        %v1752 = vrot.slane %v716, %v1751
        %v1754 = vunpack.c.l.s4 1414812756
        %v1755 = vunpack.c.0.s8 %v1754
        %v1756 = vlaneseq
        %v1757 = vshrl.u32 %v1756, 7
        %v1758 = vsub.s32 %v1755, %v1757
        %v1759 = vrot.slane %v716, %v1758
        %v1761 = vunpack.c.l.s4 1987475062
        %v1762 = vunpack.c.0.s8 %v1761
        %v1763 = vlaneseq
        %v1764 = vshrl.u32 %v1763, 7
        %v1765 = vsub.s32 %v1762, %v1764
        %v1766 = vrot.slane %v716, %v1765
        %v1768 = vunpack.c.l.s4 269488144
        %v1769 = vunpack.c.0.s8 %v1768
        %v1770 = vlaneseq
        %v1771 = vshrl.u32 %v1770, 7
        %v1772 = vsub.s32 %v1769, %v1771
        %v1773 = vrot.slane %v718, %v1772
        %v1775 = vunpack.c.l.s4 842150450
        %v1776 = vunpack.c.0.s8 %v1775
        %v1777 = vlaneseq
        %v1778 = vshrl.u32 %v1777, 7
        %v1779 = vsub.s32 %v1776, %v1778
        %v1780 = vrot.slane %v718, %v1779
        %v1782 = vunpack.c.l.s4 1414812756
        %v1783 = vunpack.c.0.s8 %v1782
        %v1784 = vlaneseq
        %v1785 = vshrl.u32 %v1784, 7
        %v1786 = vsub.s32 %v1783, %v1785
        %v1787 = vrot.slane %v718, %v1786
        %v1789 = vunpack.c.l.s4 1987475062
        %v1790 = vunpack.c.0.s8 %v1789
        %v1791 = vlaneseq
        %v1792 = vshrl.u32 %v1791, 7
        %v1793 = vsub.s32 %v1790, %v1792
        %v1794 = vrot.slane %v718, %v1793
        %v1796 = vunpack.c.l.s4 269488144
        %v1797 = vunpack.c.0.s8 %v1796
        %v1798 = vlaneseq
        %v1799 = vshrl.u32 %v1798, 7
        %v1800 = vsub.s32 %v1797, %v1799
        %v1801 = vrot.slane %v720, %v1800
        %v1803 = vunpack.c.l.s4 842150450
        %v1804 = vunpack.c.0.s8 %v1803
        %v1805 = vlaneseq
        %v1806 = vshrl.u32 %v1805, 7
        %v1807 = vsub.s32 %v1804, %v1806
        %v1808 = vrot.slane %v720, %v1807
        %v1810 = vunpack.c.l.s4 1414812756
        %v1811 = vunpack.c.0.s8 %v1810
        %v1812 = vlaneseq
        %v1813 = vshrl.u32 %v1812, 7
        %v1814 = vsub.s32 %v1811, %v1813
        %v1815 = vrot.slane %v720, %v1814
        %v1817 = vunpack.c.l.s4 1987475062
        %v1818 = vunpack.c.0.s8 %v1817
        %v1819 = vlaneseq
        %v1820 = vshrl.u32 %v1819, 7
        %v1821 = vsub.s32 %v1818, %v1820
        %v1822 = vrot.slane %v720, %v1821
        %v1824 = vunpack.c.l.s4 269488144
        %v1825 = vunpack.c.0.s8 %v1824
        %v1826 = vlaneseq
        %v1827 = vshrl.u32 %v1826, 7
        %v1828 = vsub.s32 %v1825, %v1827
        %v1829 = vrot.slane %v722, %v1828
        %v1831 = vunpack.c.l.s4 842150450
        %v1832 = vunpack.c.0.s8 %v1831
        %v1833 = vlaneseq
        %v1834 = vshrl.u32 %v1833, 7
        %v1835 = vsub.s32 %v1832, %v1834
        %v1836 = vrot.slane %v722, %v1835
        %v1838 = vunpack.c.l.s4 1414812756
        %v1839 = vunpack.c.0.s8 %v1838
        %v1840 = vlaneseq
        %v1841 = vshrl.u32 %v1840, 7
        %v1842 = vsub.s32 %v1839, %v1841
        %v1843 = vrot.slane %v722, %v1842
        %v1845 = vunpack.c.l.s4 1987475062
        %v1846 = vunpack.c.0.s8 %v1845
        %v1847 = vlaneseq
        %v1848 = vshrl.u32 %v1847, 7
        %v1849 = vsub.s32 %v1846, %v1848
        %v1850 = vrot.slane %v722, %v1849
        %v1852 = vunpack.c.l.s4 269488144
        %v1853 = vunpack.c.0.s8 %v1852
        %v1854 = vlaneseq
        %v1855 = vshrl.u32 %v1854, 7
        %v1856 = vsub.s32 %v1853, %v1855
        %v1857 = vrot.slane %v724, %v1856
        %v1859 = vunpack.c.l.s4 842150450
        %v1860 = vunpack.c.0.s8 %v1859
        %v1861 = vlaneseq
        %v1862 = vshrl.u32 %v1861, 7
        %v1863 = vsub.s32 %v1860, %v1862
        %v1864 = vrot.slane %v724, %v1863
        %v1866 = vunpack.c.l.s4 1414812756
        %v1867 = vunpack.c.0.s8 %v1866
        %v1868 = vlaneseq
        %v1869 = vshrl.u32 %v1868, 7
        %v1870 = vsub.s32 %v1867, %v1869
        %v1871 = vrot.slane %v724, %v1870
        %v1873 = vunpack.c.l.s4 1987475062
        %v1874 = vunpack.c.0.s8 %v1873
        %v1875 = vlaneseq
        %v1876 = vshrl.u32 %v1875, 7
        %v1877 = vsub.s32 %v1874, %v1876
        %v1878 = vrot.slane %v724, %v1877
        %v1880 = vunpack.c.l.s4 269488144
        %v1881 = vunpack.c.0.s8 %v1880
        %v1882 = vlaneseq
        %v1883 = vshrl.u32 %v1882, 7
        %v1884 = vsub.s32 %v1881, %v1883
        %v1885 = vrot.slane %v726, %v1884
        %v1887 = vunpack.c.l.s4 842150450
        %v1888 = vunpack.c.0.s8 %v1887
        %v1889 = vlaneseq
        %v1890 = vshrl.u32 %v1889, 7
        %v1891 = vsub.s32 %v1888, %v1890
        %v1892 = vrot.slane %v726, %v1891
        %v1894 = vunpack.c.l.s4 1414812756
        %v1895 = vunpack.c.0.s8 %v1894
        %v1896 = vlaneseq
        %v1897 = vshrl.u32 %v1896, 7
        %v1898 = vsub.s32 %v1895, %v1897
        %v1899 = vrot.slane %v726, %v1898
        %v1901 = vunpack.c.l.s4 1987475062
        %v1902 = vunpack.c.0.s8 %v1901
        %v1903 = vlaneseq
        %v1904 = vshrl.u32 %v1903, 7
        %v1905 = vsub.s32 %v1902, %v1904
        %v1906 = vrot.slane %v726, %v1905
        %v1908 = vunpack.c.l.s4 269488144
        %v1909 = vunpack.c.0.s8 %v1908
        %v1910 = vlaneseq
        %v1911 = vshrl.u32 %v1910, 7
        %v1912 = vsub.s32 %v1909, %v1911
        %v1913 = vrot.slane %v728, %v1912
        %v1915 = vunpack.c.l.s4 842150450
        %v1916 = vunpack.c.0.s8 %v1915
        %v1917 = vlaneseq
        %v1918 = vshrl.u32 %v1917, 7
        %v1919 = vsub.s32 %v1916, %v1918
        %v1920 = vrot.slane %v728, %v1919
        %v1922 = vunpack.c.l.s4 1414812756
        %v1923 = vunpack.c.0.s8 %v1922
        %v1924 = vlaneseq
        %v1925 = vshrl.u32 %v1924, 7
        %v1926 = vsub.s32 %v1923, %v1925
        %v1927 = vrot.slane %v728, %v1926
        %v1929 = vunpack.c.l.s4 1987475062
        %v1930 = vunpack.c.0.s8 %v1929
        %v1931 = vlaneseq
        %v1932 = vshrl.u32 %v1931, 7
        %v1933 = vsub.s32 %v1930, %v1932
        %v1934 = vrot.slane %v728, %v1933
        %v1936 = vunpack.c.l.s4 269488144
        %v1937 = vunpack.c.0.s8 %v1936
        %v1938 = vlaneseq
        %v1939 = vshrl.u32 %v1938, 7
        %v1940 = vsub.s32 %v1937, %v1939
        %v1941 = vrot.slane %v730, %v1940
        %v1943 = vunpack.c.l.s4 842150450
        %v1944 = vunpack.c.0.s8 %v1943
        %v1945 = vlaneseq
        %v1946 = vshrl.u32 %v1945, 7
        %v1947 = vsub.s32 %v1944, %v1946
        %v1948 = vrot.slane %v730, %v1947
        %v1950 = vunpack.c.l.s4 1414812756
        %v1951 = vunpack.c.0.s8 %v1950
        %v1952 = vlaneseq
        %v1953 = vshrl.u32 %v1952, 7
        %v1954 = vsub.s32 %v1951, %v1953
        %v1955 = vrot.slane %v730, %v1954
        %v1957 = vunpack.c.l.s4 1987475062
        %v1958 = vunpack.c.0.s8 %v1957
        %v1959 = vlaneseq
        %v1960 = vshrl.u32 %v1959, 7
        %v1961 = vsub.s32 %v1958, %v1960
        %v1962 = vrot.slane %v730, %v1961
        %v1964 = vunpack.c.l.s4 269488144
        %v1965 = vunpack.c.0.s8 %v1964
        %v1966 = vlaneseq
        %v1967 = vshrl.u32 %v1966, 7
        %v1968 = vsub.s32 %v1965, %v1967
        %v1969 = vrot.slane %v732, %v1968
        %v1971 = vunpack.c.l.s4 842150450
        %v1972 = vunpack.c.0.s8 %v1971
        %v1973 = vlaneseq
        %v1974 = vshrl.u32 %v1973, 7
        %v1975 = vsub.s32 %v1972, %v1974
        %v1976 = vrot.slane %v732, %v1975
        %v1978 = vunpack.c.l.s4 1414812756
        %v1979 = vunpack.c.0.s8 %v1978
        %v1980 = vlaneseq
        %v1981 = vshrl.u32 %v1980, 7
        %v1982 = vsub.s32 %v1979, %v1981
        %v1983 = vrot.slane %v732, %v1982
        %v1985 = vunpack.c.l.s4 1987475062
        %v1986 = vunpack.c.0.s8 %v1985
        %v1987 = vlaneseq
        %v1988 = vshrl.u32 %v1987, 7
        %v1989 = vsub.s32 %v1986, %v1988
        %v1990 = vrot.slane %v732, %v1989
        %v1992 = vunpack.c.l.s4 269488144
        %v1993 = vunpack.c.0.s8 %v1992
        %v1994 = vlaneseq
        %v1995 = vshrl.u32 %v1994, 7
        %v1996 = vsub.s32 %v1993, %v1995
        %v1997 = vrot.slane %v734, %v1996
        %v1999 = vunpack.c.l.s4 842150450
        %v2000 = vunpack.c.0.s8 %v1999
        %v2001 = vlaneseq
        %v2002 = vshrl.u32 %v2001, 7
        %v2003 = vsub.s32 %v2000, %v2002
        %v2004 = vrot.slane %v734, %v2003
        %v2006 = vunpack.c.l.s4 1414812756
        %v2007 = vunpack.c.0.s8 %v2006
        %v2008 = vlaneseq
        %v2009 = vshrl.u32 %v2008, 7
        %v2010 = vsub.s32 %v2007, %v2009
        %v2011 = vrot.slane %v734, %v2010
        %v2013 = vunpack.c.l.s4 1987475062
        %v2014 = vunpack.c.0.s8 %v2013
        %v2015 = vlaneseq
        %v2016 = vshrl.u32 %v2015, 7
        %v2017 = vsub.s32 %v2014, %v2016
        %v2018 = vrot.slane %v734, %v2017
        %v2020 = vunpack.c.l.s4 269488144
        %v2021 = vunpack.c.0.s8 %v2020
        %v2022 = vlaneseq
        %v2023 = vshrl.u32 %v2022, 7
        %v2024 = vsub.s32 %v2021, %v2023
        %v2025 = vrot.slane %v736, %v2024
        %v2027 = vunpack.c.l.s4 842150450
        %v2028 = vunpack.c.0.s8 %v2027
        %v2029 = vlaneseq
        %v2030 = vshrl.u32 %v2029, 7
        %v2031 = vsub.s32 %v2028, %v2030
        %v2032 = vrot.slane %v736, %v2031
        %v2034 = vunpack.c.l.s4 1414812756
        %v2035 = vunpack.c.0.s8 %v2034
        %v2036 = vlaneseq
        %v2037 = vshrl.u32 %v2036, 7
        %v2038 = vsub.s32 %v2035, %v2037
        %v2039 = vrot.slane %v736, %v2038
        %v2041 = vunpack.c.l.s4 1987475062
        %v2042 = vunpack.c.0.s8 %v2041
        %v2043 = vlaneseq
        %v2044 = vshrl.u32 %v2043, 7
        %v2045 = vsub.s32 %v2042, %v2044
        %v2046 = vrot.slane %v736, %v2045
        %v2048 = vunpack.c.l.s4 269488144
        %v2049 = vunpack.c.0.s8 %v2048
        %v2050 = vlaneseq
        %v2051 = vshrl.u32 %v2050, 7
        %v2052 = vsub.s32 %v2049, %v2051
        %v2053 = vrot.slane %v738, %v2052
        %v2055 = vunpack.c.l.s4 842150450
        %v2056 = vunpack.c.0.s8 %v2055
        %v2057 = vlaneseq
        %v2058 = vshrl.u32 %v2057, 7
        %v2059 = vsub.s32 %v2056, %v2058
        %v2060 = vrot.slane %v738, %v2059
        %v2062 = vunpack.c.l.s4 1414812756
        %v2063 = vunpack.c.0.s8 %v2062
        %v2064 = vlaneseq
        %v2065 = vshrl.u32 %v2064, 7
        %v2066 = vsub.s32 %v2063, %v2065
        %v2067 = vrot.slane %v738, %v2066
        %v2069 = vunpack.c.l.s4 1987475062
        %v2070 = vunpack.c.0.s8 %v2069
        %v2071 = vlaneseq
        %v2072 = vshrl.u32 %v2071, 7
        %v2073 = vsub.s32 %v2070, %v2072
        %v2074 = vrot.slane %v738, %v2073
        %v2076 = vunpack.c.l.s4 269488144
        %v2077 = vunpack.c.0.s8 %v2076
        %v2078 = vlaneseq
        %v2079 = vshrl.u32 %v2078, 7
        %v2080 = vsub.s32 %v2077, %v2079
        %v2081 = vrot.slane %v740, %v2080
        %v2083 = vunpack.c.l.s4 842150450
        %v2084 = vunpack.c.0.s8 %v2083
        %v2085 = vlaneseq
        %v2086 = vshrl.u32 %v2085, 7
        %v2087 = vsub.s32 %v2084, %v2086
        %v2088 = vrot.slane %v740, %v2087
        %v2090 = vunpack.c.l.s4 1414812756
        %v2091 = vunpack.c.0.s8 %v2090
        %v2092 = vlaneseq
        %v2093 = vshrl.u32 %v2092, 7
        %v2094 = vsub.s32 %v2091, %v2093
        %v2095 = vrot.slane %v740, %v2094
        %v2097 = vunpack.c.l.s4 1987475062
        %v2098 = vunpack.c.0.s8 %v2097
        %v2099 = vlaneseq
        %v2100 = vshrl.u32 %v2099, 7
        %v2101 = vsub.s32 %v2098, %v2100
        %v2102 = vrot.slane %v740, %v2101
        %v2104 = vunpack.c.l.s4 269488144
        %v2105 = vunpack.c.0.s8 %v2104
        %v2106 = vlaneseq
        %v2107 = vshrl.u32 %v2106, 7
        %v2108 = vsub.s32 %v2105, %v2107
        %v2109 = vrot.slane %v742, %v2108
        %v2111 = vunpack.c.l.s4 842150450
        %v2112 = vunpack.c.0.s8 %v2111
        %v2113 = vlaneseq
        %v2114 = vshrl.u32 %v2113, 7
        %v2115 = vsub.s32 %v2112, %v2114
        %v2116 = vrot.slane %v742, %v2115
        %v2118 = vunpack.c.l.s4 1414812756
        %v2119 = vunpack.c.0.s8 %v2118
        %v2120 = vlaneseq
        %v2121 = vshrl.u32 %v2120, 7
        %v2122 = vsub.s32 %v2119, %v2121
        %v2123 = vrot.slane %v742, %v2122
        %v2125 = vunpack.c.l.s4 1987475062
        %v2126 = vunpack.c.0.s8 %v2125
        %v2127 = vlaneseq
        %v2128 = vshrl.u32 %v2127, 7
        %v2129 = vsub.s32 %v2126, %v2128
        %v2130 = vrot.slane %v742, %v2129
        %v2132 = vunpack.c.l.s4 269488144
        %v2133 = vunpack.c.0.s8 %v2132
        %v2134 = vlaneseq
        %v2135 = vshrl.u32 %v2134, 7
        %v2136 = vsub.s32 %v2133, %v2135
        %v2137 = vrot.slane %v744, %v2136
        %v2139 = vunpack.c.l.s4 842150450
        %v2140 = vunpack.c.0.s8 %v2139
        %v2141 = vlaneseq
        %v2142 = vshrl.u32 %v2141, 7
        %v2143 = vsub.s32 %v2140, %v2142
        %v2144 = vrot.slane %v744, %v2143
        %v2146 = vunpack.c.l.s4 1414812756
        %v2147 = vunpack.c.0.s8 %v2146
        %v2148 = vlaneseq
        %v2149 = vshrl.u32 %v2148, 7
        %v2150 = vsub.s32 %v2147, %v2149
        %v2151 = vrot.slane %v744, %v2150
        %v2153 = vunpack.c.l.s4 1987475062
        %v2154 = vunpack.c.0.s8 %v2153
        %v2155 = vlaneseq
        %v2156 = vshrl.u32 %v2155, 7
        %v2157 = vsub.s32 %v2154, %v2156
        %v2158 = vrot.slane %v744, %v2157
        %v2160 = vunpack.c.l.s4 269488144
        %v2161 = vunpack.c.0.s8 %v2160
        %v2162 = vlaneseq
        %v2163 = vshrl.u32 %v2162, 7
        %v2164 = vsub.s32 %v2161, %v2163
        %v2165 = vrot.slane %v746, %v2164
        %v2167 = vunpack.c.l.s4 842150450
        %v2168 = vunpack.c.0.s8 %v2167
        %v2169 = vlaneseq
        %v2170 = vshrl.u32 %v2169, 7
        %v2171 = vsub.s32 %v2168, %v2170
        %v2172 = vrot.slane %v746, %v2171
        %v2174 = vunpack.c.l.s4 1414812756
        %v2175 = vunpack.c.0.s8 %v2174
        %v2176 = vlaneseq
        %v2177 = vshrl.u32 %v2176, 7
        %v2178 = vsub.s32 %v2175, %v2177
        %v2179 = vrot.slane %v746, %v2178
        %v2181 = vunpack.c.l.s4 1987475062
        %v2182 = vunpack.c.0.s8 %v2181
        %v2183 = vlaneseq
        %v2184 = vshrl.u32 %v2183, 7
        %v2185 = vsub.s32 %v2182, %v2184
        %v2186 = vrot.slane %v746, %v2185
        %v2188 = vunpack.c.l.s4 269488144
        %v2189 = vunpack.c.0.s8 %v2188
        %v2190 = vlaneseq
        %v2191 = vshrl.u32 %v2190, 7
        %v2192 = vsub.s32 %v2189, %v2191
        %v2193 = vrot.slane %v748, %v2192
        %v2195 = vunpack.c.l.s4 842150450
        %v2196 = vunpack.c.0.s8 %v2195
        %v2197 = vlaneseq
        %v2198 = vshrl.u32 %v2197, 7
        %v2199 = vsub.s32 %v2196, %v2198
        %v2200 = vrot.slane %v748, %v2199
        %v2202 = vunpack.c.l.s4 1414812756
        %v2203 = vunpack.c.0.s8 %v2202
        %v2204 = vlaneseq
        %v2205 = vshrl.u32 %v2204, 7
        %v2206 = vsub.s32 %v2203, %v2205
        %v2207 = vrot.slane %v748, %v2206
        %v2209 = vunpack.c.l.s4 1987475062
        %v2210 = vunpack.c.0.s8 %v2209
        %v2211 = vlaneseq
        %v2212 = vshrl.u32 %v2211, 7
        %v2213 = vsub.s32 %v2210, %v2212
        %v2214 = vrot.slane %v748, %v2213
        %v2216 = vunpack.c.l.s4 269488144
        %v2217 = vunpack.c.0.s8 %v2216
        %v2218 = vlaneseq
        %v2219 = vshrl.u32 %v2218, 7
        %v2220 = vsub.s32 %v2217, %v2219
        %v2221 = vrot.slane %v750, %v2220
        %v2223 = vunpack.c.l.s4 842150450
        %v2224 = vunpack.c.0.s8 %v2223
        %v2225 = vlaneseq
        %v2226 = vshrl.u32 %v2225, 7
        %v2227 = vsub.s32 %v2224, %v2226
        %v2228 = vrot.slane %v750, %v2227
        %v2230 = vunpack.c.l.s4 1414812756
        %v2231 = vunpack.c.0.s8 %v2230
        %v2232 = vlaneseq
        %v2233 = vshrl.u32 %v2232, 7
        %v2234 = vsub.s32 %v2231, %v2233
        %v2235 = vrot.slane %v750, %v2234
        %v2237 = vunpack.c.l.s4 1987475062
        %v2238 = vunpack.c.0.s8 %v2237
        %v2239 = vlaneseq
        %v2240 = vshrl.u32 %v2239, 7
        %v2241 = vsub.s32 %v2238, %v2240
        %v2242 = vrot.slane %v750, %v2241
        %v2244 = vunpack.c.l.s4 269488144
        %v2245 = vunpack.c.0.s8 %v2244
        %v2246 = vlaneseq
        %v2247 = vshrl.u32 %v2246, 7
        %v2248 = vsub.s32 %v2245, %v2247
        %v2249 = vrot.slane %v752, %v2248
        %v2251 = vunpack.c.l.s4 842150450
        %v2252 = vunpack.c.0.s8 %v2251
        %v2253 = vlaneseq
        %v2254 = vshrl.u32 %v2253, 7
        %v2255 = vsub.s32 %v2252, %v2254
        %v2256 = vrot.slane %v752, %v2255
        %v2258 = vunpack.c.l.s4 1414812756
        %v2259 = vunpack.c.0.s8 %v2258
        %v2260 = vlaneseq
        %v2261 = vshrl.u32 %v2260, 7
        %v2262 = vsub.s32 %v2259, %v2261
        %v2263 = vrot.slane %v752, %v2262
        %v2265 = vunpack.c.l.s4 1987475062
        %v2266 = vunpack.c.0.s8 %v2265
        %v2267 = vlaneseq
        %v2268 = vshrl.u32 %v2267, 7
        %v2269 = vsub.s32 %v2266, %v2268
        %v2270 = vrot.slane %v752, %v2269
        %v2272 = vunpack.c.l.s4 269488144
        %v2273 = vunpack.c.0.s8 %v2272
        %v2274 = vlaneseq
        %v2275 = vshrl.u32 %v2274, 7
        %v2276 = vsub.s32 %v2273, %v2275
        %v2277 = vrot.slane %v754, %v2276
        %v2279 = vunpack.c.l.s4 842150450
        %v2280 = vunpack.c.0.s8 %v2279
        %v2281 = vlaneseq
        %v2282 = vshrl.u32 %v2281, 7
        %v2283 = vsub.s32 %v2280, %v2282
        %v2284 = vrot.slane %v754, %v2283
        %v2286 = vunpack.c.l.s4 1414812756
        %v2287 = vunpack.c.0.s8 %v2286
        %v2288 = vlaneseq
        %v2289 = vshrl.u32 %v2288, 7
        %v2290 = vsub.s32 %v2287, %v2289
        %v2291 = vrot.slane %v754, %v2290
        %v2293 = vunpack.c.l.s4 1987475062
        %v2294 = vunpack.c.0.s8 %v2293
        %v2295 = vlaneseq
        %v2296 = vshrl.u32 %v2295, 7
        %v2297 = vsub.s32 %v2294, %v2296
        %v2298 = vrot.slane %v754, %v2297
        %v2300 = vunpack.c.l.s4 269488144
        %v2301 = vunpack.c.0.s8 %v2300
        %v2302 = vlaneseq
        %v2303 = vshrl.u32 %v2302, 7
        %v2304 = vsub.s32 %v2301, %v2303
        %v2305 = vrot.slane %v756, %v2304
        %v2307 = vunpack.c.l.s4 842150450
        %v2308 = vunpack.c.0.s8 %v2307
        %v2309 = vlaneseq
        %v2310 = vshrl.u32 %v2309, 7
        %v2311 = vsub.s32 %v2308, %v2310
        %v2312 = vrot.slane %v756, %v2311
        %v2314 = vunpack.c.l.s4 1414812756
        %v2315 = vunpack.c.0.s8 %v2314
        %v2316 = vlaneseq
        %v2317 = vshrl.u32 %v2316, 7
        %v2318 = vsub.s32 %v2315, %v2317
        %v2319 = vrot.slane %v756, %v2318
        %v2321 = vunpack.c.l.s4 1987475062
        %v2322 = vunpack.c.0.s8 %v2321
        %v2323 = vlaneseq
        %v2324 = vshrl.u32 %v2323, 7
        %v2325 = vsub.s32 %v2322, %v2324
        %v2326 = vrot.slane %v756, %v2325
        %v2328 = vunpack.c.l.s4 269488144
        %v2329 = vunpack.c.0.s8 %v2328
        %v2330 = vlaneseq
        %v2331 = vshrl.u32 %v2330, 7
        %v2332 = vsub.s32 %v2329, %v2331
        %v2333 = vrot.slane %v758, %v2332
        %v2335 = vunpack.c.l.s4 842150450
        %v2336 = vunpack.c.0.s8 %v2335
        %v2337 = vlaneseq
        %v2338 = vshrl.u32 %v2337, 7
        %v2339 = vsub.s32 %v2336, %v2338
        %v2340 = vrot.slane %v758, %v2339
        %v2342 = vunpack.c.l.s4 1414812756
        %v2343 = vunpack.c.0.s8 %v2342
        %v2344 = vlaneseq
        %v2345 = vshrl.u32 %v2344, 7
        %v2346 = vsub.s32 %v2343, %v2345
        %v2347 = vrot.slane %v758, %v2346
        %v2349 = vunpack.c.l.s4 1987475062
        %v2350 = vunpack.c.0.s8 %v2349
        %v2351 = vlaneseq
        %v2352 = vshrl.u32 %v2351, 7
        %v2353 = vsub.s32 %v2350, %v2352
        %v2354 = vrot.slane %v758, %v2353
        %v2356 = vunpack.c.l.s4 269488144
        %v2357 = vunpack.c.0.s8 %v2356
        %v2358 = vlaneseq
        %v2359 = vshrl.u32 %v2358, 7
        %v2360 = vsub.s32 %v2357, %v2359
        %v2361 = vrot.slane %v760, %v2360
        %v2363 = vunpack.c.l.s4 842150450
        %v2364 = vunpack.c.0.s8 %v2363
        %v2365 = vlaneseq
        %v2366 = vshrl.u32 %v2365, 7
        %v2367 = vsub.s32 %v2364, %v2366
        %v2368 = vrot.slane %v760, %v2367
        %v2370 = vunpack.c.l.s4 1414812756
        %v2371 = vunpack.c.0.s8 %v2370
        %v2372 = vlaneseq
        %v2373 = vshrl.u32 %v2372, 7
        %v2374 = vsub.s32 %v2371, %v2373
        %v2375 = vrot.slane %v760, %v2374
        %v2377 = vunpack.c.l.s4 1987475062
        %v2378 = vunpack.c.0.s8 %v2377
        %v2379 = vlaneseq
        %v2380 = vshrl.u32 %v2379, 7
        %v2381 = vsub.s32 %v2378, %v2380
        %v2382 = vrot.slane %v760, %v2381
        %v2384 = vunpack.c.l.s4 269488144
        %v2385 = vunpack.c.0.s8 %v2384
        %v2386 = vlaneseq
        %v2387 = vshrl.u32 %v2386, 7
        %v2388 = vsub.s32 %v2385, %v2387
        %v2389 = vrot.slane %v762, %v2388
        %v2391 = vunpack.c.l.s4 842150450
        %v2392 = vunpack.c.0.s8 %v2391
        %v2393 = vlaneseq
        %v2394 = vshrl.u32 %v2393, 7
        %v2395 = vsub.s32 %v2392, %v2394
        %v2396 = vrot.slane %v762, %v2395
        %v2398 = vunpack.c.l.s4 1414812756
        %v2399 = vunpack.c.0.s8 %v2398
        %v2400 = vlaneseq
        %v2401 = vshrl.u32 %v2400, 7
        %v2402 = vsub.s32 %v2399, %v2401
        %v2403 = vrot.slane %v762, %v2402
        %v2405 = vunpack.c.l.s4 1987475062
        %v2406 = vunpack.c.0.s8 %v2405
        %v2407 = vlaneseq
        %v2408 = vshrl.u32 %v2407, 7
        %v2409 = vsub.s32 %v2406, %v2408
        %v2410 = vrot.slane %v762, %v2409
        %v2412 = vunpack.c.l.s4 269488144
        %v2413 = vunpack.c.0.s8 %v2412
        %v2414 = vlaneseq
        %v2415 = vshrl.u32 %v2414, 7
        %v2416 = vsub.s32 %v2413, %v2415
        %v2417 = vrot.slane %v764, %v2416
        %v2419 = vunpack.c.l.s4 842150450
        %v2420 = vunpack.c.0.s8 %v2419
        %v2421 = vlaneseq
        %v2422 = vshrl.u32 %v2421, 7
        %v2423 = vsub.s32 %v2420, %v2422
        %v2424 = vrot.slane %v764, %v2423
        %v2426 = vunpack.c.l.s4 1414812756
        %v2427 = vunpack.c.0.s8 %v2426
        %v2428 = vlaneseq
        %v2429 = vshrl.u32 %v2428, 7
        %v2430 = vsub.s32 %v2427, %v2429
        %v2431 = vrot.slane %v764, %v2430
        %v2433 = vunpack.c.l.s4 1987475062
        %v2434 = vunpack.c.0.s8 %v2433
        %v2435 = vlaneseq
        %v2436 = vshrl.u32 %v2435, 7
        %v2437 = vsub.s32 %v2434, %v2436
        %v2438 = vrot.slane %v764, %v2437
        %v2440 = vunpack.c.l.s4 269488144
        %v2441 = vunpack.c.0.s8 %v2440
        %v2442 = vlaneseq
        %v2443 = vshrl.u32 %v2442, 7
        %v2444 = vsub.s32 %v2441, %v2443
        %v2445 = vrot.slane %v766, %v2444
        %v2447 = vunpack.c.l.s4 842150450
        %v2448 = vunpack.c.0.s8 %v2447
        %v2449 = vlaneseq
        %v2450 = vshrl.u32 %v2449, 7
        %v2451 = vsub.s32 %v2448, %v2450
        %v2452 = vrot.slane %v766, %v2451
        %v2454 = vunpack.c.l.s4 1414812756
        %v2455 = vunpack.c.0.s8 %v2454
        %v2456 = vlaneseq
        %v2457 = vshrl.u32 %v2456, 7
        %v2458 = vsub.s32 %v2455, %v2457
        %v2459 = vrot.slane %v766, %v2458
        %v2461 = vunpack.c.l.s4 1987475062
        %v2462 = vunpack.c.0.s8 %v2461
        %v2463 = vlaneseq
        %v2464 = vshrl.u32 %v2463, 7
        %v2465 = vsub.s32 %v2462, %v2464
        %v2466 = vrot.slane %v766, %v2465
        %v2468 = vunpack.c.l.s4 269488144
        %v2469 = vunpack.c.0.s8 %v2468
        %v2470 = vlaneseq
        %v2471 = vshrl.u32 %v2470, 7
        %v2472 = vsub.s32 %v2469, %v2471
        %v2473 = vrot.slane %v768, %v2472
        %v2475 = vunpack.c.l.s4 842150450
        %v2476 = vunpack.c.0.s8 %v2475
        %v2477 = vlaneseq
        %v2478 = vshrl.u32 %v2477, 7
        %v2479 = vsub.s32 %v2476, %v2478
        %v2480 = vrot.slane %v768, %v2479
        %v2482 = vunpack.c.l.s4 1414812756
        %v2483 = vunpack.c.0.s8 %v2482
        %v2484 = vlaneseq
        %v2485 = vshrl.u32 %v2484, 7
        %v2486 = vsub.s32 %v2483, %v2485
        %v2487 = vrot.slane %v768, %v2486
        %v2489 = vunpack.c.l.s4 1987475062
        %v2490 = vunpack.c.0.s8 %v2489
        %v2491 = vlaneseq
        %v2492 = vshrl.u32 %v2491, 7
        %v2493 = vsub.s32 %v2490, %v2492
        %v2494 = vrot.slane %v768, %v2493
        %v2496 = vunpack.c.l.s4 269488144
        %v2497 = vunpack.c.0.s8 %v2496
        %v2498 = vlaneseq
        %v2499 = vshrl.u32 %v2498, 7
        %v2500 = vsub.s32 %v2497, %v2499
        %v2501 = vrot.slane %v770, %v2500
        %v2503 = vunpack.c.l.s4 842150450
        %v2504 = vunpack.c.0.s8 %v2503
        %v2505 = vlaneseq
        %v2506 = vshrl.u32 %v2505, 7
        %v2507 = vsub.s32 %v2504, %v2506
        %v2508 = vrot.slane %v770, %v2507
        %v2510 = vunpack.c.l.s4 1414812756
        %v2511 = vunpack.c.0.s8 %v2510
        %v2512 = vlaneseq
        %v2513 = vshrl.u32 %v2512, 7
        %v2514 = vsub.s32 %v2511, %v2513
        %v2515 = vrot.slane %v770, %v2514
        %v2517 = vunpack.c.l.s4 1987475062
        %v2518 = vunpack.c.0.s8 %v2517
        %v2519 = vlaneseq
        %v2520 = vshrl.u32 %v2519, 7
        %v2521 = vsub.s32 %v2518, %v2520
        %v2522 = vrot.slane %v770, %v2521
        %v2524 = vunpack.c.l.s4 269488144
        %v2525 = vunpack.c.0.s8 %v2524
        %v2526 = vlaneseq
        %v2527 = vshrl.u32 %v2526, 7
        %v2528 = vsub.s32 %v2525, %v2527
        %v2529 = vrot.slane %v772, %v2528
        %v2531 = vunpack.c.l.s4 842150450
        %v2532 = vunpack.c.0.s8 %v2531
        %v2533 = vlaneseq
        %v2534 = vshrl.u32 %v2533, 7
        %v2535 = vsub.s32 %v2532, %v2534
        %v2536 = vrot.slane %v772, %v2535
        %v2538 = vunpack.c.l.s4 1414812756
        %v2539 = vunpack.c.0.s8 %v2538
        %v2540 = vlaneseq
        %v2541 = vshrl.u32 %v2540, 7
        %v2542 = vsub.s32 %v2539, %v2541
        %v2543 = vrot.slane %v772, %v2542
        %v2545 = vunpack.c.l.s4 1987475062
        %v2546 = vunpack.c.0.s8 %v2545
        %v2547 = vlaneseq
        %v2548 = vshrl.u32 %v2547, 7
        %v2549 = vsub.s32 %v2546, %v2548
        %v2550 = vrot.slane %v772, %v2549
        %v2552 = vunpack.c.l.s4 269488144
        %v2553 = vunpack.c.0.s8 %v2552
        %v2554 = vlaneseq
        %v2555 = vshrl.u32 %v2554, 7
        %v2556 = vsub.s32 %v2553, %v2555
        %v2557 = vrot.slane %v774, %v2556
        %v2559 = vunpack.c.l.s4 842150450
        %v2560 = vunpack.c.0.s8 %v2559
        %v2561 = vlaneseq
        %v2562 = vshrl.u32 %v2561, 7
        %v2563 = vsub.s32 %v2560, %v2562
        %v2564 = vrot.slane %v774, %v2563
        %v2566 = vunpack.c.l.s4 1414812756
        %v2567 = vunpack.c.0.s8 %v2566
        %v2568 = vlaneseq
        %v2569 = vshrl.u32 %v2568, 7
        %v2570 = vsub.s32 %v2567, %v2569
        %v2571 = vrot.slane %v774, %v2570
        %v2573 = vunpack.c.l.s4 1987475062
        %v2574 = vunpack.c.0.s8 %v2573
        %v2575 = vlaneseq
        %v2576 = vshrl.u32 %v2575, 7
        %v2577 = vsub.s32 %v2574, %v2576
        %v2578 = vrot.slane %v774, %v2577
        %v2580 = vunpack.c.l.s4 269488144
        %v2581 = vunpack.c.0.s8 %v2580
        %v2582 = vlaneseq
        %v2583 = vshrl.u32 %v2582, 7
        %v2584 = vsub.s32 %v2581, %v2583
        %v2585 = vrot.slane %v776, %v2584
        %v2587 = vunpack.c.l.s4 842150450
        %v2588 = vunpack.c.0.s8 %v2587
        %v2589 = vlaneseq
        %v2590 = vshrl.u32 %v2589, 7
        %v2591 = vsub.s32 %v2588, %v2590
        %v2592 = vrot.slane %v776, %v2591
        %v2594 = vunpack.c.l.s4 1414812756
        %v2595 = vunpack.c.0.s8 %v2594
        %v2596 = vlaneseq
        %v2597 = vshrl.u32 %v2596, 7
        %v2598 = vsub.s32 %v2595, %v2597
        %v2599 = vrot.slane %v776, %v2598
        %v2601 = vunpack.c.l.s4 1987475062
        %v2602 = vunpack.c.0.s8 %v2601
        %v2603 = vlaneseq
        %v2604 = vshrl.u32 %v2603, 7
        %v2605 = vsub.s32 %v2602, %v2604
        %v2606 = vrot.slane %v776, %v2605
        %v2608 = vunpack.c.l.s4 269488144
        %v2609 = vunpack.c.0.s8 %v2608
        %v2610 = vlaneseq
        %v2611 = vshrl.u32 %v2610, 7
        %v2612 = vsub.s32 %v2609, %v2611
        %v2613 = vrot.slane %v778, %v2612
        %v2615 = vunpack.c.l.s4 842150450
        %v2616 = vunpack.c.0.s8 %v2615
        %v2617 = vlaneseq
        %v2618 = vshrl.u32 %v2617, 7
        %v2619 = vsub.s32 %v2616, %v2618
        %v2620 = vrot.slane %v778, %v2619
        %v2622 = vunpack.c.l.s4 1414812756
        %v2623 = vunpack.c.0.s8 %v2622
        %v2624 = vlaneseq
        %v2625 = vshrl.u32 %v2624, 7
        %v2626 = vsub.s32 %v2623, %v2625
        %v2627 = vrot.slane %v778, %v2626
        %v2629 = vunpack.c.l.s4 1987475062
        %v2630 = vunpack.c.0.s8 %v2629
        %v2631 = vlaneseq
        %v2632 = vshrl.u32 %v2631, 7
        %v2633 = vsub.s32 %v2630, %v2632
        %v2634 = vrot.slane %v778, %v2633
        %v2635 = vcombine.low %v849, %v856
        %v2636 = vcombine.low %v863, %v870
        %v2638 = vunpack.c.l.s4 1983009808
        %v2639 = vunpack.c.0.s8 %v2638
        %v2640 = vlaneseq
        %v2641 = vshrl.u32 %v2640, 7
        %v2642 = vsub.s32 %v2639, %v2641
        %v2643 = vrot.slane %v2635, %v2642
        %v2645 = vunpack.c.l.s4 1983009808
        %v2646 = vunpack.c.0.s8 %v2645
        %v2647 = vlaneseq
        %v2648 = vshrl.u32 %v2647, 7
        %v2649 = vsub.s32 %v2646, %v2648
        %v2650 = vrot.slane %v2636, %v2649
        %v2651 = vcombine.low %v2643, %v2650
        %v2652 = vcombine.low %v877, %v884
        %v2653 = vcombine.low %v891, %v898
        %v2655 = vunpack.c.l.s4 1983009808
        %v2656 = vunpack.c.0.s8 %v2655
        %v2657 = vlaneseq
        %v2658 = vshrl.u32 %v2657, 7
        %v2659 = vsub.s32 %v2656, %v2658
        %v2660 = vrot.slane %v2652, %v2659
        %v2662 = vunpack.c.l.s4 1983009808
        %v2663 = vunpack.c.0.s8 %v2662
        %v2664 = vlaneseq
        %v2665 = vshrl.u32 %v2664, 7
        %v2666 = vsub.s32 %v2663, %v2665
        %v2667 = vrot.slane %v2653, %v2666
        %v2668 = vcombine.low %v2660, %v2667
        %v2669 = vcombine.low %v905, %v912
        %v2670 = vcombine.low %v919, %v926
        %v2672 = vunpack.c.l.s4 1983009808
        %v2673 = vunpack.c.0.s8 %v2672
        %v2674 = vlaneseq
        %v2675 = vshrl.u32 %v2674, 7
        %v2676 = vsub.s32 %v2673, %v2675
        %v2677 = vrot.slane %v2669, %v2676
        %v2679 = vunpack.c.l.s4 1983009808
        %v2680 = vunpack.c.0.s8 %v2679
        %v2681 = vlaneseq
        %v2682 = vshrl.u32 %v2681, 7
        %v2683 = vsub.s32 %v2680, %v2682
        %v2684 = vrot.slane %v2670, %v2683
        %v2685 = vcombine.low %v2677, %v2684
        %v2686 = vcombine.low %v933, %v940
        %v2687 = vcombine.low %v947, %v954
        %v2689 = vunpack.c.l.s4 1983009808
        %v2690 = vunpack.c.0.s8 %v2689
        %v2691 = vlaneseq
        %v2692 = vshrl.u32 %v2691, 7
        %v2693 = vsub.s32 %v2690, %v2692
        %v2694 = vrot.slane %v2686, %v2693
        %v2696 = vunpack.c.l.s4 1983009808
        %v2697 = vunpack.c.0.s8 %v2696
        %v2698 = vlaneseq
        %v2699 = vshrl.u32 %v2698, 7
        %v2700 = vsub.s32 %v2697, %v2699
        %v2701 = vrot.slane %v2687, %v2700
        %v2702 = vcombine.low %v2694, %v2701
        %v2703 = vcombine.low %v961, %v968
        %v2704 = vcombine.low %v975, %v982
        %v2706 = vunpack.c.l.s4 1983009808
        %v2707 = vunpack.c.0.s8 %v2706
        %v2708 = vlaneseq
        %v2709 = vshrl.u32 %v2708, 7
        %v2710 = vsub.s32 %v2707, %v2709
        %v2711 = vrot.slane %v2703, %v2710
        %v2713 = vunpack.c.l.s4 1983009808
        %v2714 = vunpack.c.0.s8 %v2713
        %v2715 = vlaneseq
        %v2716 = vshrl.u32 %v2715, 7
        %v2717 = vsub.s32 %v2714, %v2716
        %v2718 = vrot.slane %v2704, %v2717
        %v2719 = vcombine.low %v2711, %v2718
        %v2720 = vcombine.low %v989, %v996
        %v2721 = vcombine.low %v1003, %v1010
        %v2723 = vunpack.c.l.s4 1983009808
        %v2724 = vunpack.c.0.s8 %v2723
        %v2725 = vlaneseq
        %v2726 = vshrl.u32 %v2725, 7
        %v2727 = vsub.s32 %v2724, %v2726
        %v2728 = vrot.slane %v2720, %v2727
        %v2730 = vunpack.c.l.s4 1983009808
        %v2731 = vunpack.c.0.s8 %v2730
        %v2732 = vlaneseq
        %v2733 = vshrl.u32 %v2732, 7
        %v2734 = vsub.s32 %v2731, %v2733
        %v2735 = vrot.slane %v2721, %v2734
        %v2736 = vcombine.low %v2728, %v2735
        %v2737 = vcombine.low %v1017, %v1024
        %v2738 = vcombine.low %v1031, %v1038
        %v2740 = vunpack.c.l.s4 1983009808
        %v2741 = vunpack.c.0.s8 %v2740
        %v2742 = vlaneseq
        %v2743 = vshrl.u32 %v2742, 7
        %v2744 = vsub.s32 %v2741, %v2743
        %v2745 = vrot.slane %v2737, %v2744
        %v2747 = vunpack.c.l.s4 1983009808
        %v2748 = vunpack.c.0.s8 %v2747
        %v2749 = vlaneseq
        %v2750 = vshrl.u32 %v2749, 7
        %v2751 = vsub.s32 %v2748, %v2750
        %v2752 = vrot.slane %v2738, %v2751
        %v2753 = vcombine.low %v2745, %v2752
        %v2754 = vcombine.low %v1045, %v1052
        %v2755 = vcombine.low %v1059, %v1066
        %v2757 = vunpack.c.l.s4 1983009808
        %v2758 = vunpack.c.0.s8 %v2757
        %v2759 = vlaneseq
        %v2760 = vshrl.u32 %v2759, 7
        %v2761 = vsub.s32 %v2758, %v2760
        %v2762 = vrot.slane %v2754, %v2761
        %v2764 = vunpack.c.l.s4 1983009808
        %v2765 = vunpack.c.0.s8 %v2764
        %v2766 = vlaneseq
        %v2767 = vshrl.u32 %v2766, 7
        %v2768 = vsub.s32 %v2765, %v2767
        %v2769 = vrot.slane %v2755, %v2768
        %v2770 = vcombine.low %v2762, %v2769
        %v2771 = vcombine.low %v1073, %v1080
        %v2772 = vcombine.low %v1087, %v1094
        %v2774 = vunpack.c.l.s4 1983009808
        %v2775 = vunpack.c.0.s8 %v2774
        %v2776 = vlaneseq
        %v2777 = vshrl.u32 %v2776, 7
        %v2778 = vsub.s32 %v2775, %v2777
        %v2779 = vrot.slane %v2771, %v2778
        %v2781 = vunpack.c.l.s4 1983009808
        %v2782 = vunpack.c.0.s8 %v2781
        %v2783 = vlaneseq
        %v2784 = vshrl.u32 %v2783, 7
        %v2785 = vsub.s32 %v2782, %v2784
        %v2786 = vrot.slane %v2772, %v2785
        %v2787 = vcombine.low %v2779, %v2786
        %v2788 = vcombine.low %v1101, %v1108
        %v2789 = vcombine.low %v1115, %v1122
        %v2791 = vunpack.c.l.s4 1983009808
        %v2792 = vunpack.c.0.s8 %v2791
        %v2793 = vlaneseq
        %v2794 = vshrl.u32 %v2793, 7
        %v2795 = vsub.s32 %v2792, %v2794
        %v2796 = vrot.slane %v2788, %v2795
        %v2798 = vunpack.c.l.s4 1983009808
        %v2799 = vunpack.c.0.s8 %v2798
        %v2800 = vlaneseq
        %v2801 = vshrl.u32 %v2800, 7
        %v2802 = vsub.s32 %v2799, %v2801
        %v2803 = vrot.slane %v2789, %v2802
        %v2804 = vcombine.low %v2796, %v2803
        %v2805 = vcombine.low %v1129, %v1136
        %v2806 = vcombine.low %v1143, %v1150
        %v2808 = vunpack.c.l.s4 1983009808
        %v2809 = vunpack.c.0.s8 %v2808
        %v2810 = vlaneseq
        %v2811 = vshrl.u32 %v2810, 7
        %v2812 = vsub.s32 %v2809, %v2811
        %v2813 = vrot.slane %v2805, %v2812
        %v2815 = vunpack.c.l.s4 1983009808
        %v2816 = vunpack.c.0.s8 %v2815
        %v2817 = vlaneseq
        %v2818 = vshrl.u32 %v2817, 7
        %v2819 = vsub.s32 %v2816, %v2818
        %v2820 = vrot.slane %v2806, %v2819
        %v2821 = vcombine.low %v2813, %v2820
        %v2822 = vcombine.low %v1157, %v1164
        %v2823 = vcombine.low %v1171, %v1178
        %v2825 = vunpack.c.l.s4 1983009808
        %v2826 = vunpack.c.0.s8 %v2825
        %v2827 = vlaneseq
        %v2828 = vshrl.u32 %v2827, 7
        %v2829 = vsub.s32 %v2826, %v2828
        %v2830 = vrot.slane %v2822, %v2829
        %v2832 = vunpack.c.l.s4 1983009808
        %v2833 = vunpack.c.0.s8 %v2832
        %v2834 = vlaneseq
        %v2835 = vshrl.u32 %v2834, 7
        %v2836 = vsub.s32 %v2833, %v2835
        %v2837 = vrot.slane %v2823, %v2836
        %v2838 = vcombine.low %v2830, %v2837
        %v2839 = vcombine.low %v1185, %v1192
        %v2840 = vcombine.low %v1199, %v1206
        %v2842 = vunpack.c.l.s4 1983009808
        %v2843 = vunpack.c.0.s8 %v2842
        %v2844 = vlaneseq
        %v2845 = vshrl.u32 %v2844, 7
        %v2846 = vsub.s32 %v2843, %v2845
        %v2847 = vrot.slane %v2839, %v2846
        %v2849 = vunpack.c.l.s4 1983009808
        %v2850 = vunpack.c.0.s8 %v2849
        %v2851 = vlaneseq
        %v2852 = vshrl.u32 %v2851, 7
        %v2853 = vsub.s32 %v2850, %v2852
        %v2854 = vrot.slane %v2840, %v2853
        %v2855 = vcombine.low %v2847, %v2854
        %v2856 = vcombine.low %v1213, %v1220
        %v2857 = vcombine.low %v1227, %v1234
        %v2859 = vunpack.c.l.s4 1983009808
        %v2860 = vunpack.c.0.s8 %v2859
        %v2861 = vlaneseq
        %v2862 = vshrl.u32 %v2861, 7
        %v2863 = vsub.s32 %v2860, %v2862
        %v2864 = vrot.slane %v2856, %v2863
        %v2866 = vunpack.c.l.s4 1983009808
        %v2867 = vunpack.c.0.s8 %v2866
        %v2868 = vlaneseq
        %v2869 = vshrl.u32 %v2868, 7
        %v2870 = vsub.s32 %v2867, %v2869
        %v2871 = vrot.slane %v2857, %v2870
        %v2872 = vcombine.low %v2864, %v2871
        %v2873 = vcombine.low %v1241, %v1248
        %v2874 = vcombine.low %v1255, %v1262
        %v2876 = vunpack.c.l.s4 1983009808
        %v2877 = vunpack.c.0.s8 %v2876
        %v2878 = vlaneseq
        %v2879 = vshrl.u32 %v2878, 7
        %v2880 = vsub.s32 %v2877, %v2879
        %v2881 = vrot.slane %v2873, %v2880
        %v2883 = vunpack.c.l.s4 1983009808
        %v2884 = vunpack.c.0.s8 %v2883
        %v2885 = vlaneseq
        %v2886 = vshrl.u32 %v2885, 7
        %v2887 = vsub.s32 %v2884, %v2886
        %v2888 = vrot.slane %v2874, %v2887
        %v2889 = vcombine.low %v2881, %v2888
        %v2890 = vcombine.low %v1269, %v1276
        %v2891 = vcombine.low %v1283, %v1290
        %v2893 = vunpack.c.l.s4 1983009808
        %v2894 = vunpack.c.0.s8 %v2893
        %v2895 = vlaneseq
        %v2896 = vshrl.u32 %v2895, 7
        %v2897 = vsub.s32 %v2894, %v2896
        %v2898 = vrot.slane %v2890, %v2897
        %v2900 = vunpack.c.l.s4 1983009808
        %v2901 = vunpack.c.0.s8 %v2900
        %v2902 = vlaneseq
        %v2903 = vshrl.u32 %v2902, 7
        %v2904 = vsub.s32 %v2901, %v2903
        %v2905 = vrot.slane %v2891, %v2904
        %v2906 = vcombine.low %v2898, %v2905
        %v2907 = vcombine.low %v1297, %v1304
        %v2908 = vcombine.low %v1311, %v1318
        %v2910 = vunpack.c.l.s4 1983009808
        %v2911 = vunpack.c.0.s8 %v2910
        %v2912 = vlaneseq
        %v2913 = vshrl.u32 %v2912, 7
        %v2914 = vsub.s32 %v2911, %v2913
        %v2915 = vrot.slane %v2907, %v2914
        %v2917 = vunpack.c.l.s4 1983009808
        %v2918 = vunpack.c.0.s8 %v2917
        %v2919 = vlaneseq
        %v2920 = vshrl.u32 %v2919, 7
        %v2921 = vsub.s32 %v2918, %v2920
        %v2922 = vrot.slane %v2908, %v2921
        %v2923 = vcombine.low %v2915, %v2922
        %v2924 = vcombine.low %v1325, %v1332
        %v2925 = vcombine.low %v1339, %v1346
        %v2927 = vunpack.c.l.s4 1983009808
        %v2928 = vunpack.c.0.s8 %v2927
        %v2929 = vlaneseq
        %v2930 = vshrl.u32 %v2929, 7
        %v2931 = vsub.s32 %v2928, %v2930
        %v2932 = vrot.slane %v2924, %v2931
        %v2934 = vunpack.c.l.s4 1983009808
        %v2935 = vunpack.c.0.s8 %v2934
        %v2936 = vlaneseq
        %v2937 = vshrl.u32 %v2936, 7
        %v2938 = vsub.s32 %v2935, %v2937
        %v2939 = vrot.slane %v2925, %v2938
        %v2940 = vcombine.low %v2932, %v2939
        %v2941 = vcombine.low %v1353, %v1360
        %v2942 = vcombine.low %v1367, %v1374
        %v2944 = vunpack.c.l.s4 1983009808
        %v2945 = vunpack.c.0.s8 %v2944
        %v2946 = vlaneseq
        %v2947 = vshrl.u32 %v2946, 7
        %v2948 = vsub.s32 %v2945, %v2947
        %v2949 = vrot.slane %v2941, %v2948
        %v2951 = vunpack.c.l.s4 1983009808
        %v2952 = vunpack.c.0.s8 %v2951
        %v2953 = vlaneseq
        %v2954 = vshrl.u32 %v2953, 7
        %v2955 = vsub.s32 %v2952, %v2954
        %v2956 = vrot.slane %v2942, %v2955
        %v2957 = vcombine.low %v2949, %v2956
        %v2958 = vcombine.low %v1381, %v1388
        %v2959 = vcombine.low %v1395, %v1402
        %v2961 = vunpack.c.l.s4 1983009808
        %v2962 = vunpack.c.0.s8 %v2961
        %v2963 = vlaneseq
        %v2964 = vshrl.u32 %v2963, 7
        %v2965 = vsub.s32 %v2962, %v2964
        %v2966 = vrot.slane %v2958, %v2965
        %v2968 = vunpack.c.l.s4 1983009808
        %v2969 = vunpack.c.0.s8 %v2968
        %v2970 = vlaneseq
        %v2971 = vshrl.u32 %v2970, 7
        %v2972 = vsub.s32 %v2969, %v2971
        %v2973 = vrot.slane %v2959, %v2972
        %v2974 = vcombine.low %v2966, %v2973
        %v2975 = vcombine.low %v1409, %v1416
        %v2976 = vcombine.low %v1423, %v1430
        %v2978 = vunpack.c.l.s4 1983009808
        %v2979 = vunpack.c.0.s8 %v2978
        %v2980 = vlaneseq
        %v2981 = vshrl.u32 %v2980, 7
        %v2982 = vsub.s32 %v2979, %v2981
        %v2983 = vrot.slane %v2975, %v2982
        %v2985 = vunpack.c.l.s4 1983009808
        %v2986 = vunpack.c.0.s8 %v2985
        %v2987 = vlaneseq
        %v2988 = vshrl.u32 %v2987, 7
        %v2989 = vsub.s32 %v2986, %v2988
        %v2990 = vrot.slane %v2976, %v2989
        %v2991 = vcombine.low %v2983, %v2990
        %v2992 = vcombine.low %v1437, %v1444
        %v2993 = vcombine.low %v1451, %v1458
        %v2995 = vunpack.c.l.s4 1983009808
        %v2996 = vunpack.c.0.s8 %v2995
        %v2997 = vlaneseq
        %v2998 = vshrl.u32 %v2997, 7
        %v2999 = vsub.s32 %v2996, %v2998
        %v3000 = vrot.slane %v2992, %v2999
        %v3002 = vunpack.c.l.s4 1983009808
        %v3003 = vunpack.c.0.s8 %v3002
        %v3004 = vlaneseq
        %v3005 = vshrl.u32 %v3004, 7
        %v3006 = vsub.s32 %v3003, %v3005
        %v3007 = vrot.slane %v2993, %v3006
        %v3008 = vcombine.low %v3000, %v3007
        %v3009 = vcombine.low %v1465, %v1472
        %v3010 = vcombine.low %v1479, %v1486
        %v3012 = vunpack.c.l.s4 1983009808
        %v3013 = vunpack.c.0.s8 %v3012
        %v3014 = vlaneseq
        %v3015 = vshrl.u32 %v3014, 7
        %v3016 = vsub.s32 %v3013, %v3015
        %v3017 = vrot.slane %v3009, %v3016
        %v3019 = vunpack.c.l.s4 1983009808
        %v3020 = vunpack.c.0.s8 %v3019
        %v3021 = vlaneseq
        %v3022 = vshrl.u32 %v3021, 7
        %v3023 = vsub.s32 %v3020, %v3022
        %v3024 = vrot.slane %v3010, %v3023
        %v3025 = vcombine.low %v3017, %v3024
        %v3026 = vcombine.low %v1493, %v1500
        %v3027 = vcombine.low %v1507, %v1514
        %v3029 = vunpack.c.l.s4 1983009808
        %v3030 = vunpack.c.0.s8 %v3029
        %v3031 = vlaneseq
        %v3032 = vshrl.u32 %v3031, 7
        %v3033 = vsub.s32 %v3030, %v3032
        %v3034 = vrot.slane %v3026, %v3033
        %v3036 = vunpack.c.l.s4 1983009808
        %v3037 = vunpack.c.0.s8 %v3036
        %v3038 = vlaneseq
        %v3039 = vshrl.u32 %v3038, 7
        %v3040 = vsub.s32 %v3037, %v3039
        %v3041 = vrot.slane %v3027, %v3040
        %v3042 = vcombine.low %v3034, %v3041
        %v3043 = vcombine.low %v1521, %v1528
        %v3044 = vcombine.low %v1535, %v1542
        %v3046 = vunpack.c.l.s4 1983009808
        %v3047 = vunpack.c.0.s8 %v3046
        %v3048 = vlaneseq
        %v3049 = vshrl.u32 %v3048, 7
        %v3050 = vsub.s32 %v3047, %v3049
        %v3051 = vrot.slane %v3043, %v3050
        %v3053 = vunpack.c.l.s4 1983009808
        %v3054 = vunpack.c.0.s8 %v3053
        %v3055 = vlaneseq
        %v3056 = vshrl.u32 %v3055, 7
        %v3057 = vsub.s32 %v3054, %v3056
        %v3058 = vrot.slane %v3044, %v3057
        %v3059 = vcombine.low %v3051, %v3058
        %v3060 = vcombine.low %v1549, %v1556
        %v3061 = vcombine.low %v1563, %v1570
        %v3063 = vunpack.c.l.s4 1983009808
        %v3064 = vunpack.c.0.s8 %v3063
        %v3065 = vlaneseq
        %v3066 = vshrl.u32 %v3065, 7
        %v3067 = vsub.s32 %v3064, %v3066
        %v3068 = vrot.slane %v3060, %v3067
        %v3070 = vunpack.c.l.s4 1983009808
        %v3071 = vunpack.c.0.s8 %v3070
        %v3072 = vlaneseq
        %v3073 = vshrl.u32 %v3072, 7
        %v3074 = vsub.s32 %v3071, %v3073
        %v3075 = vrot.slane %v3061, %v3074
        %v3076 = vcombine.low %v3068, %v3075
        %v3077 = vcombine.low %v1577, %v1584
        %v3078 = vcombine.low %v1591, %v1598
        %v3080 = vunpack.c.l.s4 1983009808
        %v3081 = vunpack.c.0.s8 %v3080
        %v3082 = vlaneseq
        %v3083 = vshrl.u32 %v3082, 7
        %v3084 = vsub.s32 %v3081, %v3083
        %v3085 = vrot.slane %v3077, %v3084
        %v3087 = vunpack.c.l.s4 1983009808
        %v3088 = vunpack.c.0.s8 %v3087
        %v3089 = vlaneseq
        %v3090 = vshrl.u32 %v3089, 7
        %v3091 = vsub.s32 %v3088, %v3090
        %v3092 = vrot.slane %v3078, %v3091
        %v3093 = vcombine.low %v3085, %v3092
        %v3094 = vcombine.low %v1605, %v1612
        %v3095 = vcombine.low %v1619, %v1626
        %v3097 = vunpack.c.l.s4 1983009808
        %v3098 = vunpack.c.0.s8 %v3097
        %v3099 = vlaneseq
        %v3100 = vshrl.u32 %v3099, 7
        %v3101 = vsub.s32 %v3098, %v3100
        %v3102 = vrot.slane %v3094, %v3101
        %v3104 = vunpack.c.l.s4 1983009808
        %v3105 = vunpack.c.0.s8 %v3104
        %v3106 = vlaneseq
        %v3107 = vshrl.u32 %v3106, 7
        %v3108 = vsub.s32 %v3105, %v3107
        %v3109 = vrot.slane %v3095, %v3108
        %v3110 = vcombine.low %v3102, %v3109
        %v3111 = vcombine.low %v1633, %v1640
        %v3112 = vcombine.low %v1647, %v1654
        %v3114 = vunpack.c.l.s4 1983009808
        %v3115 = vunpack.c.0.s8 %v3114
        %v3116 = vlaneseq
        %v3117 = vshrl.u32 %v3116, 7
        %v3118 = vsub.s32 %v3115, %v3117
        %v3119 = vrot.slane %v3111, %v3118
        %v3121 = vunpack.c.l.s4 1983009808
        %v3122 = vunpack.c.0.s8 %v3121
        %v3123 = vlaneseq
        %v3124 = vshrl.u32 %v3123, 7
        %v3125 = vsub.s32 %v3122, %v3124
        %v3126 = vrot.slane %v3112, %v3125
        %v3127 = vcombine.low %v3119, %v3126
        %v3128 = vcombine.low %v1661, %v1668
        %v3129 = vcombine.low %v1675, %v1682
        %v3131 = vunpack.c.l.s4 1983009808
        %v3132 = vunpack.c.0.s8 %v3131
        %v3133 = vlaneseq
        %v3134 = vshrl.u32 %v3133, 7
        %v3135 = vsub.s32 %v3132, %v3134
        %v3136 = vrot.slane %v3128, %v3135
        %v3138 = vunpack.c.l.s4 1983009808
        %v3139 = vunpack.c.0.s8 %v3138
        %v3140 = vlaneseq
        %v3141 = vshrl.u32 %v3140, 7
        %v3142 = vsub.s32 %v3139, %v3141
        %v3143 = vrot.slane %v3129, %v3142
        %v3144 = vcombine.low %v3136, %v3143
        %v3145 = vcombine.low %v1689, %v1696
        %v3146 = vcombine.low %v1703, %v1710
        %v3148 = vunpack.c.l.s4 1983009808
        %v3149 = vunpack.c.0.s8 %v3148
        %v3150 = vlaneseq
        %v3151 = vshrl.u32 %v3150, 7
        %v3152 = vsub.s32 %v3149, %v3151
        %v3153 = vrot.slane %v3145, %v3152
        %v3155 = vunpack.c.l.s4 1983009808
        %v3156 = vunpack.c.0.s8 %v3155
        %v3157 = vlaneseq
        %v3158 = vshrl.u32 %v3157, 7
        %v3159 = vsub.s32 %v3156, %v3158
        %v3160 = vrot.slane %v3146, %v3159
        %v3161 = vcombine.low %v3153, %v3160
        %v3162 = vcombine.low %v1717, %v1724
        %v3163 = vcombine.low %v1731, %v1738
        %v3165 = vunpack.c.l.s4 1983009808
        %v3166 = vunpack.c.0.s8 %v3165
        %v3167 = vlaneseq
        %v3168 = vshrl.u32 %v3167, 7
        %v3169 = vsub.s32 %v3166, %v3168
        %v3170 = vrot.slane %v3162, %v3169
        %v3172 = vunpack.c.l.s4 1983009808
        %v3173 = vunpack.c.0.s8 %v3172
        %v3174 = vlaneseq
        %v3175 = vshrl.u32 %v3174, 7
        %v3176 = vsub.s32 %v3173, %v3175
        %v3177 = vrot.slane %v3163, %v3176
        %v3178 = vcombine.low %v3170, %v3177
        %v3179 = vcombine.low %v1745, %v1752
        %v3180 = vcombine.low %v1759, %v1766
        %v3182 = vunpack.c.l.s4 1983009808
        %v3183 = vunpack.c.0.s8 %v3182
        %v3184 = vlaneseq
        %v3185 = vshrl.u32 %v3184, 7
        %v3186 = vsub.s32 %v3183, %v3185
        %v3187 = vrot.slane %v3179, %v3186
        %v3189 = vunpack.c.l.s4 1983009808
        %v3190 = vunpack.c.0.s8 %v3189
        %v3191 = vlaneseq
        %v3192 = vshrl.u32 %v3191, 7
        %v3193 = vsub.s32 %v3190, %v3192
        %v3194 = vrot.slane %v3180, %v3193
        %v3195 = vcombine.low %v3187, %v3194
        %v3196 = vcombine.low %v1773, %v1780
        %v3197 = vcombine.low %v1787, %v1794
        %v3199 = vunpack.c.l.s4 1983009808
        %v3200 = vunpack.c.0.s8 %v3199
        %v3201 = vlaneseq
        %v3202 = vshrl.u32 %v3201, 7
        %v3203 = vsub.s32 %v3200, %v3202
        %v3204 = vrot.slane %v3196, %v3203
        %v3206 = vunpack.c.l.s4 1983009808
        %v3207 = vunpack.c.0.s8 %v3206
        %v3208 = vlaneseq
        %v3209 = vshrl.u32 %v3208, 7
        %v3210 = vsub.s32 %v3207, %v3209
        %v3211 = vrot.slane %v3197, %v3210
        %v3212 = vcombine.low %v3204, %v3211
        %v3213 = vcombine.low %v1801, %v1808
        %v3214 = vcombine.low %v1815, %v1822
        %v3216 = vunpack.c.l.s4 1983009808
        %v3217 = vunpack.c.0.s8 %v3216
        %v3218 = vlaneseq
        %v3219 = vshrl.u32 %v3218, 7
        %v3220 = vsub.s32 %v3217, %v3219
        %v3221 = vrot.slane %v3213, %v3220
        %v3223 = vunpack.c.l.s4 1983009808
        %v3224 = vunpack.c.0.s8 %v3223
        %v3225 = vlaneseq
        %v3226 = vshrl.u32 %v3225, 7
        %v3227 = vsub.s32 %v3224, %v3226
        %v3228 = vrot.slane %v3214, %v3227
        %v3229 = vcombine.low %v3221, %v3228
        %v3230 = vcombine.low %v1829, %v1836
        %v3231 = vcombine.low %v1843, %v1850
        %v3233 = vunpack.c.l.s4 1983009808
        %v3234 = vunpack.c.0.s8 %v3233
        %v3235 = vlaneseq
        %v3236 = vshrl.u32 %v3235, 7
        %v3237 = vsub.s32 %v3234, %v3236
        %v3238 = vrot.slane %v3230, %v3237
        %v3240 = vunpack.c.l.s4 1983009808
        %v3241 = vunpack.c.0.s8 %v3240
        %v3242 = vlaneseq
        %v3243 = vshrl.u32 %v3242, 7
        %v3244 = vsub.s32 %v3241, %v3243
        %v3245 = vrot.slane %v3231, %v3244
        %v3246 = vcombine.low %v3238, %v3245
        %v3247 = vcombine.low %v1857, %v1864
        %v3248 = vcombine.low %v1871, %v1878
        %v3250 = vunpack.c.l.s4 1983009808
        %v3251 = vunpack.c.0.s8 %v3250
        %v3252 = vlaneseq
        %v3253 = vshrl.u32 %v3252, 7
        %v3254 = vsub.s32 %v3251, %v3253
        %v3255 = vrot.slane %v3247, %v3254
        %v3257 = vunpack.c.l.s4 1983009808
        %v3258 = vunpack.c.0.s8 %v3257
        %v3259 = vlaneseq
        %v3260 = vshrl.u32 %v3259, 7
        %v3261 = vsub.s32 %v3258, %v3260
        %v3262 = vrot.slane %v3248, %v3261
        %v3263 = vcombine.low %v3255, %v3262
        %v3264 = vcombine.low %v1885, %v1892
        %v3265 = vcombine.low %v1899, %v1906
        %v3267 = vunpack.c.l.s4 1983009808
        %v3268 = vunpack.c.0.s8 %v3267
        %v3269 = vlaneseq
        %v3270 = vshrl.u32 %v3269, 7
        %v3271 = vsub.s32 %v3268, %v3270
        %v3272 = vrot.slane %v3264, %v3271
        %v3274 = vunpack.c.l.s4 1983009808
        %v3275 = vunpack.c.0.s8 %v3274
        %v3276 = vlaneseq
        %v3277 = vshrl.u32 %v3276, 7
        %v3278 = vsub.s32 %v3275, %v3277
        %v3279 = vrot.slane %v3265, %v3278
        %v3280 = vcombine.low %v3272, %v3279
        %v3281 = vcombine.low %v1913, %v1920
        %v3282 = vcombine.low %v1927, %v1934
        %v3284 = vunpack.c.l.s4 1983009808
        %v3285 = vunpack.c.0.s8 %v3284
        %v3286 = vlaneseq
        %v3287 = vshrl.u32 %v3286, 7
        %v3288 = vsub.s32 %v3285, %v3287
        %v3289 = vrot.slane %v3281, %v3288
        %v3291 = vunpack.c.l.s4 1983009808
        %v3292 = vunpack.c.0.s8 %v3291
        %v3293 = vlaneseq
        %v3294 = vshrl.u32 %v3293, 7
        %v3295 = vsub.s32 %v3292, %v3294
        %v3296 = vrot.slane %v3282, %v3295
        %v3297 = vcombine.low %v3289, %v3296
        %v3298 = vcombine.low %v1941, %v1948
        %v3299 = vcombine.low %v1955, %v1962
        %v3301 = vunpack.c.l.s4 1983009808
        %v3302 = vunpack.c.0.s8 %v3301
        %v3303 = vlaneseq
        %v3304 = vshrl.u32 %v3303, 7
        %v3305 = vsub.s32 %v3302, %v3304
        %v3306 = vrot.slane %v3298, %v3305
        %v3308 = vunpack.c.l.s4 1983009808
        %v3309 = vunpack.c.0.s8 %v3308
        %v3310 = vlaneseq
        %v3311 = vshrl.u32 %v3310, 7
        %v3312 = vsub.s32 %v3309, %v3311
        %v3313 = vrot.slane %v3299, %v3312
        %v3314 = vcombine.low %v3306, %v3313
        %v3315 = vcombine.low %v1969, %v1976
        %v3316 = vcombine.low %v1983, %v1990
        %v3318 = vunpack.c.l.s4 1983009808
        %v3319 = vunpack.c.0.s8 %v3318
        %v3320 = vlaneseq
        %v3321 = vshrl.u32 %v3320, 7
        %v3322 = vsub.s32 %v3319, %v3321
        %v3323 = vrot.slane %v3315, %v3322
        %v3325 = vunpack.c.l.s4 1983009808
        %v3326 = vunpack.c.0.s8 %v3325
        %v3327 = vlaneseq
        %v3328 = vshrl.u32 %v3327, 7
        %v3329 = vsub.s32 %v3326, %v3328
        %v3330 = vrot.slane %v3316, %v3329
        %v3331 = vcombine.low %v3323, %v3330
        %v3332 = vcombine.low %v1997, %v2004
        %v3333 = vcombine.low %v2011, %v2018
        %v3335 = vunpack.c.l.s4 1983009808
        %v3336 = vunpack.c.0.s8 %v3335
        %v3337 = vlaneseq
        %v3338 = vshrl.u32 %v3337, 7
        %v3339 = vsub.s32 %v3336, %v3338
        %v3340 = vrot.slane %v3332, %v3339
        %v3342 = vunpack.c.l.s4 1983009808
        %v3343 = vunpack.c.0.s8 %v3342
        %v3344 = vlaneseq
        %v3345 = vshrl.u32 %v3344, 7
        %v3346 = vsub.s32 %v3343, %v3345
        %v3347 = vrot.slane %v3333, %v3346
        %v3348 = vcombine.low %v3340, %v3347
        %v3349 = vcombine.low %v2025, %v2032
        %v3350 = vcombine.low %v2039, %v2046
        %v3352 = vunpack.c.l.s4 1983009808
        %v3353 = vunpack.c.0.s8 %v3352
        %v3354 = vlaneseq
        %v3355 = vshrl.u32 %v3354, 7
        %v3356 = vsub.s32 %v3353, %v3355
        %v3357 = vrot.slane %v3349, %v3356
        %v3359 = vunpack.c.l.s4 1983009808
        %v3360 = vunpack.c.0.s8 %v3359
        %v3361 = vlaneseq
        %v3362 = vshrl.u32 %v3361, 7
        %v3363 = vsub.s32 %v3360, %v3362
        %v3364 = vrot.slane %v3350, %v3363
        %v3365 = vcombine.low %v3357, %v3364
        %v3366 = vcombine.low %v2053, %v2060
        %v3367 = vcombine.low %v2067, %v2074
        %v3369 = vunpack.c.l.s4 1983009808
        %v3370 = vunpack.c.0.s8 %v3369
        %v3371 = vlaneseq
        %v3372 = vshrl.u32 %v3371, 7
        %v3373 = vsub.s32 %v3370, %v3372
        %v3374 = vrot.slane %v3366, %v3373
        %v3376 = vunpack.c.l.s4 1983009808
        %v3377 = vunpack.c.0.s8 %v3376
        %v3378 = vlaneseq
        %v3379 = vshrl.u32 %v3378, 7
        %v3380 = vsub.s32 %v3377, %v3379
        %v3381 = vrot.slane %v3367, %v3380
        %v3382 = vcombine.low %v3374, %v3381
        %v3383 = vcombine.low %v2081, %v2088
        %v3384 = vcombine.low %v2095, %v2102
        %v3386 = vunpack.c.l.s4 1983009808
        %v3387 = vunpack.c.0.s8 %v3386
        %v3388 = vlaneseq
        %v3389 = vshrl.u32 %v3388, 7
        %v3390 = vsub.s32 %v3387, %v3389
        %v3391 = vrot.slane %v3383, %v3390
        %v3393 = vunpack.c.l.s4 1983009808
        %v3394 = vunpack.c.0.s8 %v3393
        %v3395 = vlaneseq
        %v3396 = vshrl.u32 %v3395, 7
        %v3397 = vsub.s32 %v3394, %v3396
        %v3398 = vrot.slane %v3384, %v3397
        %v3399 = vcombine.low %v3391, %v3398
        %v3400 = vcombine.low %v2109, %v2116
        %v3401 = vcombine.low %v2123, %v2130
        %v3403 = vunpack.c.l.s4 1983009808
        %v3404 = vunpack.c.0.s8 %v3403
        %v3405 = vlaneseq
        %v3406 = vshrl.u32 %v3405, 7
        %v3407 = vsub.s32 %v3404, %v3406
        %v3408 = vrot.slane %v3400, %v3407
        %v3410 = vunpack.c.l.s4 1983009808
        %v3411 = vunpack.c.0.s8 %v3410
        %v3412 = vlaneseq
        %v3413 = vshrl.u32 %v3412, 7
        %v3414 = vsub.s32 %v3411, %v3413
        %v3415 = vrot.slane %v3401, %v3414
        %v3416 = vcombine.low %v3408, %v3415
        %v3417 = vcombine.low %v2137, %v2144
        %v3418 = vcombine.low %v2151, %v2158
        %v3420 = vunpack.c.l.s4 1983009808
        %v3421 = vunpack.c.0.s8 %v3420
        %v3422 = vlaneseq
        %v3423 = vshrl.u32 %v3422, 7
        %v3424 = vsub.s32 %v3421, %v3423
        %v3425 = vrot.slane %v3417, %v3424
        %v3427 = vunpack.c.l.s4 1983009808
        %v3428 = vunpack.c.0.s8 %v3427
        %v3429 = vlaneseq
        %v3430 = vshrl.u32 %v3429, 7
        %v3431 = vsub.s32 %v3428, %v3430
        %v3432 = vrot.slane %v3418, %v3431
        %v3433 = vcombine.low %v3425, %v3432
        %v3434 = vcombine.low %v2165, %v2172
        %v3435 = vcombine.low %v2179, %v2186
        %v3437 = vunpack.c.l.s4 1983009808
        %v3438 = vunpack.c.0.s8 %v3437
        %v3439 = vlaneseq
        %v3440 = vshrl.u32 %v3439, 7
        %v3441 = vsub.s32 %v3438, %v3440
        %v3442 = vrot.slane %v3434, %v3441
        %v3444 = vunpack.c.l.s4 1983009808
        %v3445 = vunpack.c.0.s8 %v3444
        %v3446 = vlaneseq
        %v3447 = vshrl.u32 %v3446, 7
        %v3448 = vsub.s32 %v3445, %v3447
        %v3449 = vrot.slane %v3435, %v3448
        %v3450 = vcombine.low %v3442, %v3449
        %v3451 = vcombine.low %v2193, %v2200
        %v3452 = vcombine.low %v2207, %v2214
        %v3454 = vunpack.c.l.s4 1983009808
        %v3455 = vunpack.c.0.s8 %v3454
        %v3456 = vlaneseq
        %v3457 = vshrl.u32 %v3456, 7
        %v3458 = vsub.s32 %v3455, %v3457
        %v3459 = vrot.slane %v3451, %v3458
        %v3461 = vunpack.c.l.s4 1983009808
        %v3462 = vunpack.c.0.s8 %v3461
        %v3463 = vlaneseq
        %v3464 = vshrl.u32 %v3463, 7
        %v3465 = vsub.s32 %v3462, %v3464
        %v3466 = vrot.slane %v3452, %v3465
        %v3467 = vcombine.low %v3459, %v3466
        %v3468 = vcombine.low %v2221, %v2228
        %v3469 = vcombine.low %v2235, %v2242
        %v3471 = vunpack.c.l.s4 1983009808
        %v3472 = vunpack.c.0.s8 %v3471
        %v3473 = vlaneseq
        %v3474 = vshrl.u32 %v3473, 7
        %v3475 = vsub.s32 %v3472, %v3474
        %v3476 = vrot.slane %v3468, %v3475
        %v3478 = vunpack.c.l.s4 1983009808
        %v3479 = vunpack.c.0.s8 %v3478
        %v3480 = vlaneseq
        %v3481 = vshrl.u32 %v3480, 7
        %v3482 = vsub.s32 %v3479, %v3481
        %v3483 = vrot.slane %v3469, %v3482
        %v3484 = vcombine.low %v3476, %v3483
        %v3485 = vcombine.low %v2249, %v2256
        %v3486 = vcombine.low %v2263, %v2270
        %v3488 = vunpack.c.l.s4 1983009808
        %v3489 = vunpack.c.0.s8 %v3488
        %v3490 = vlaneseq
        %v3491 = vshrl.u32 %v3490, 7
        %v3492 = vsub.s32 %v3489, %v3491
        %v3493 = vrot.slane %v3485, %v3492
        %v3495 = vunpack.c.l.s4 1983009808
        %v3496 = vunpack.c.0.s8 %v3495
        %v3497 = vlaneseq
        %v3498 = vshrl.u32 %v3497, 7
        %v3499 = vsub.s32 %v3496, %v3498
        %v3500 = vrot.slane %v3486, %v3499
        %v3501 = vcombine.low %v3493, %v3500
        %v3502 = vcombine.low %v2277, %v2284
        %v3503 = vcombine.low %v2291, %v2298
        %v3505 = vunpack.c.l.s4 1983009808
        %v3506 = vunpack.c.0.s8 %v3505
        %v3507 = vlaneseq
        %v3508 = vshrl.u32 %v3507, 7
        %v3509 = vsub.s32 %v3506, %v3508
        %v3510 = vrot.slane %v3502, %v3509
        %v3512 = vunpack.c.l.s4 1983009808
        %v3513 = vunpack.c.0.s8 %v3512
        %v3514 = vlaneseq
        %v3515 = vshrl.u32 %v3514, 7
        %v3516 = vsub.s32 %v3513, %v3515
        %v3517 = vrot.slane %v3503, %v3516
        %v3518 = vcombine.low %v3510, %v3517
        %v3519 = vcombine.low %v2305, %v2312
        %v3520 = vcombine.low %v2319, %v2326
        %v3522 = vunpack.c.l.s4 1983009808
        %v3523 = vunpack.c.0.s8 %v3522
        %v3524 = vlaneseq
        %v3525 = vshrl.u32 %v3524, 7
        %v3526 = vsub.s32 %v3523, %v3525
        %v3527 = vrot.slane %v3519, %v3526
        %v3529 = vunpack.c.l.s4 1983009808
        %v3530 = vunpack.c.0.s8 %v3529
        %v3531 = vlaneseq
        %v3532 = vshrl.u32 %v3531, 7
        %v3533 = vsub.s32 %v3530, %v3532
        %v3534 = vrot.slane %v3520, %v3533
        %v3535 = vcombine.low %v3527, %v3534
        %v3536 = vcombine.low %v2333, %v2340
        %v3537 = vcombine.low %v2347, %v2354
        %v3539 = vunpack.c.l.s4 1983009808
        %v3540 = vunpack.c.0.s8 %v3539
        %v3541 = vlaneseq
        %v3542 = vshrl.u32 %v3541, 7
        %v3543 = vsub.s32 %v3540, %v3542
        %v3544 = vrot.slane %v3536, %v3543
        %v3546 = vunpack.c.l.s4 1983009808
        %v3547 = vunpack.c.0.s8 %v3546
        %v3548 = vlaneseq
        %v3549 = vshrl.u32 %v3548, 7
        %v3550 = vsub.s32 %v3547, %v3549
        %v3551 = vrot.slane %v3537, %v3550
        %v3552 = vcombine.low %v3544, %v3551
        %v3553 = vcombine.low %v2361, %v2368
        %v3554 = vcombine.low %v2375, %v2382
        %v3556 = vunpack.c.l.s4 1983009808
        %v3557 = vunpack.c.0.s8 %v3556
        %v3558 = vlaneseq
        %v3559 = vshrl.u32 %v3558, 7
        %v3560 = vsub.s32 %v3557, %v3559
        %v3561 = vrot.slane %v3553, %v3560
        %v3563 = vunpack.c.l.s4 1983009808
        %v3564 = vunpack.c.0.s8 %v3563
        %v3565 = vlaneseq
        %v3566 = vshrl.u32 %v3565, 7
        %v3567 = vsub.s32 %v3564, %v3566
        %v3568 = vrot.slane %v3554, %v3567
        %v3569 = vcombine.low %v3561, %v3568
        %v3570 = vcombine.low %v2389, %v2396
        %v3571 = vcombine.low %v2403, %v2410
        %v3573 = vunpack.c.l.s4 1983009808
        %v3574 = vunpack.c.0.s8 %v3573
        %v3575 = vlaneseq
        %v3576 = vshrl.u32 %v3575, 7
        %v3577 = vsub.s32 %v3574, %v3576
        %v3578 = vrot.slane %v3570, %v3577
        %v3580 = vunpack.c.l.s4 1983009808
        %v3581 = vunpack.c.0.s8 %v3580
        %v3582 = vlaneseq
        %v3583 = vshrl.u32 %v3582, 7
        %v3584 = vsub.s32 %v3581, %v3583
        %v3585 = vrot.slane %v3571, %v3584
        %v3586 = vcombine.low %v3578, %v3585
        %v3587 = vcombine.low %v2417, %v2424
        %v3588 = vcombine.low %v2431, %v2438
        %v3590 = vunpack.c.l.s4 1983009808
        %v3591 = vunpack.c.0.s8 %v3590
        %v3592 = vlaneseq
        %v3593 = vshrl.u32 %v3592, 7
        %v3594 = vsub.s32 %v3591, %v3593
        %v3595 = vrot.slane %v3587, %v3594
        %v3597 = vunpack.c.l.s4 1983009808
        %v3598 = vunpack.c.0.s8 %v3597
        %v3599 = vlaneseq
        %v3600 = vshrl.u32 %v3599, 7
        %v3601 = vsub.s32 %v3598, %v3600
        %v3602 = vrot.slane %v3588, %v3601
        %v3603 = vcombine.low %v3595, %v3602
        %v3604 = vcombine.low %v2445, %v2452
        %v3605 = vcombine.low %v2459, %v2466
        %v3607 = vunpack.c.l.s4 1983009808
        %v3608 = vunpack.c.0.s8 %v3607
        %v3609 = vlaneseq
        %v3610 = vshrl.u32 %v3609, 7
        %v3611 = vsub.s32 %v3608, %v3610
        %v3612 = vrot.slane %v3604, %v3611
        %v3614 = vunpack.c.l.s4 1983009808
        %v3615 = vunpack.c.0.s8 %v3614
        %v3616 = vlaneseq
        %v3617 = vshrl.u32 %v3616, 7
        %v3618 = vsub.s32 %v3615, %v3617
        %v3619 = vrot.slane %v3605, %v3618
        %v3620 = vcombine.low %v3612, %v3619
        %v3621 = vcombine.low %v2473, %v2480
        %v3622 = vcombine.low %v2487, %v2494
        %v3624 = vunpack.c.l.s4 1983009808
        %v3625 = vunpack.c.0.s8 %v3624
        %v3626 = vlaneseq
        %v3627 = vshrl.u32 %v3626, 7
        %v3628 = vsub.s32 %v3625, %v3627
        %v3629 = vrot.slane %v3621, %v3628
        %v3631 = vunpack.c.l.s4 1983009808
        %v3632 = vunpack.c.0.s8 %v3631
        %v3633 = vlaneseq
        %v3634 = vshrl.u32 %v3633, 7
        %v3635 = vsub.s32 %v3632, %v3634
        %v3636 = vrot.slane %v3622, %v3635
        %v3637 = vcombine.low %v3629, %v3636
        %v3638 = vcombine.low %v2501, %v2508
        %v3639 = vcombine.low %v2515, %v2522
        %v3641 = vunpack.c.l.s4 1983009808
        %v3642 = vunpack.c.0.s8 %v3641
        %v3643 = vlaneseq
        %v3644 = vshrl.u32 %v3643, 7
        %v3645 = vsub.s32 %v3642, %v3644
        %v3646 = vrot.slane %v3638, %v3645
        %v3648 = vunpack.c.l.s4 1983009808
        %v3649 = vunpack.c.0.s8 %v3648
        %v3650 = vlaneseq
        %v3651 = vshrl.u32 %v3650, 7
        %v3652 = vsub.s32 %v3649, %v3651
        %v3653 = vrot.slane %v3639, %v3652
        %v3654 = vcombine.low %v3646, %v3653
        %v3655 = vcombine.low %v2529, %v2536
        %v3656 = vcombine.low %v2543, %v2550
        %v3658 = vunpack.c.l.s4 1983009808
        %v3659 = vunpack.c.0.s8 %v3658
        %v3660 = vlaneseq
        %v3661 = vshrl.u32 %v3660, 7
        %v3662 = vsub.s32 %v3659, %v3661
        %v3663 = vrot.slane %v3655, %v3662
        %v3665 = vunpack.c.l.s4 1983009808
        %v3666 = vunpack.c.0.s8 %v3665
        %v3667 = vlaneseq
        %v3668 = vshrl.u32 %v3667, 7
        %v3669 = vsub.s32 %v3666, %v3668
        %v3670 = vrot.slane %v3656, %v3669
        %v3671 = vcombine.low %v3663, %v3670
        %v3672 = vcombine.low %v2557, %v2564
        %v3673 = vcombine.low %v2571, %v2578
        %v3675 = vunpack.c.l.s4 1983009808
        %v3676 = vunpack.c.0.s8 %v3675
        %v3677 = vlaneseq
        %v3678 = vshrl.u32 %v3677, 7
        %v3679 = vsub.s32 %v3676, %v3678
        %v3680 = vrot.slane %v3672, %v3679
        %v3682 = vunpack.c.l.s4 1983009808
        %v3683 = vunpack.c.0.s8 %v3682
        %v3684 = vlaneseq
        %v3685 = vshrl.u32 %v3684, 7
        %v3686 = vsub.s32 %v3683, %v3685
        %v3687 = vrot.slane %v3673, %v3686
        %v3688 = vcombine.low %v3680, %v3687
        %v3689 = vcombine.low %v2585, %v2592
        %v3690 = vcombine.low %v2599, %v2606
        %v3692 = vunpack.c.l.s4 1983009808
        %v3693 = vunpack.c.0.s8 %v3692
        %v3694 = vlaneseq
        %v3695 = vshrl.u32 %v3694, 7
        %v3696 = vsub.s32 %v3693, %v3695
        %v3697 = vrot.slane %v3689, %v3696
        %v3699 = vunpack.c.l.s4 1983009808
        %v3700 = vunpack.c.0.s8 %v3699
        %v3701 = vlaneseq
        %v3702 = vshrl.u32 %v3701, 7
        %v3703 = vsub.s32 %v3700, %v3702
        %v3704 = vrot.slane %v3690, %v3703
        %v3705 = vcombine.low %v3697, %v3704
        %v3706 = vcombine.low %v2613, %v2620
        %v3707 = vcombine.low %v2627, %v2634
        %v3709 = vunpack.c.l.s4 1983009808
        %v3710 = vunpack.c.0.s8 %v3709
        %v3711 = vlaneseq
        %v3712 = vshrl.u32 %v3711, 7
        %v3713 = vsub.s32 %v3710, %v3712
        %v3714 = vrot.slane %v3706, %v3713
        %v3716 = vunpack.c.l.s4 1983009808
        %v3717 = vunpack.c.0.s8 %v3716
        %v3718 = vlaneseq
        %v3719 = vshrl.u32 %v3718, 7
        %v3720 = vsub.s32 %v3717, %v3719
        %v3721 = vrot.slane %v3707, %v3720
        %v3722 = vcombine.low %v3714, %v3721
        %3723 = vset.pattern.permute.xlu0 0
        %3724 = vperm.xlu0 %3723, %v2651
        %v3725 = vpop.permute.xlu0 %3724
        %3726 = vset.pattern.permute.xlu0 0
        %3727 = vperm.xlu0 %3726, %v2668
        %v3728 = vpop.permute.xlu0 %3727
        %3729 = vset.pattern.permute.xlu0 0
        %3730 = vperm.xlu0 %3729, %v2685
        %v3731 = vpop.permute.xlu0 %3730
        %3732 = vset.pattern.permute.xlu0 0
        %3733 = vperm.xlu0 %3732, %v2702
        %v3734 = vpop.permute.xlu0 %3733
        %3735 = vset.pattern.permute.xlu0 0
        %3736 = vperm.xlu0 %3735, %v2719
        %v3737 = vpop.permute.xlu0 %3736
        %3738 = vset.pattern.permute.xlu0 0
        %3739 = vperm.xlu0 %3738, %v2736
        %v3740 = vpop.permute.xlu0 %3739
        %3741 = vset.pattern.permute.xlu0 0
        %3742 = vperm.xlu0 %3741, %v2753
        %v3743 = vpop.permute.xlu0 %3742
        %3744 = vset.pattern.permute.xlu0 0
        %3745 = vperm.xlu0 %3744, %v2770
        %v3746 = vpop.permute.xlu0 %3745
        %3747 = vset.pattern.permute.xlu0 0
        %3748 = vperm.xlu0 %3747, %v2787
        %v3749 = vpop.permute.xlu0 %3748
        %3750 = vset.pattern.permute.xlu0 0
        %3751 = vperm.xlu0 %3750, %v2804
        %v3752 = vpop.permute.xlu0 %3751
        %3753 = vset.pattern.permute.xlu0 0
        %3754 = vperm.xlu0 %3753, %v2821
        %v3755 = vpop.permute.xlu0 %3754
        %3756 = vset.pattern.permute.xlu0 0
        %3757 = vperm.xlu0 %3756, %v2838
        %v3758 = vpop.permute.xlu0 %3757
        %3759 = vset.pattern.permute.xlu0 0
        %3760 = vperm.xlu0 %3759, %v2855
        %v3761 = vpop.permute.xlu0 %3760
        %3762 = vset.pattern.permute.xlu0 0
        %3763 = vperm.xlu0 %3762, %v2872
        %v3764 = vpop.permute.xlu0 %3763
        %3765 = vset.pattern.permute.xlu0 0
        %3766 = vperm.xlu0 %3765, %v2889
        %v3767 = vpop.permute.xlu0 %3766
        %3768 = vset.pattern.permute.xlu0 0
        %3769 = vperm.xlu0 %3768, %v2906
        %v3770 = vpop.permute.xlu0 %3769
        %3771 = vset.pattern.permute.xlu0 0
        %3772 = vperm.xlu0 %3771, %v2923
        %v3773 = vpop.permute.xlu0 %3772
        %3774 = vset.pattern.permute.xlu0 0
        %3775 = vperm.xlu0 %3774, %v2940
        %v3776 = vpop.permute.xlu0 %3775
        %3777 = vset.pattern.permute.xlu0 0
        %3778 = vperm.xlu0 %3777, %v2957
        %v3779 = vpop.permute.xlu0 %3778
        %3780 = vset.pattern.permute.xlu0 0
        %3781 = vperm.xlu0 %3780, %v2974
        %v3782 = vpop.permute.xlu0 %3781
        %3783 = vset.pattern.permute.xlu0 0
        %3784 = vperm.xlu0 %3783, %v2991
        %v3785 = vpop.permute.xlu0 %3784
        %3786 = vset.pattern.permute.xlu0 0
        %3787 = vperm.xlu0 %3786, %v3008
        %v3788 = vpop.permute.xlu0 %3787
        %3789 = vset.pattern.permute.xlu0 0
        %3790 = vperm.xlu0 %3789, %v3025
        %v3791 = vpop.permute.xlu0 %3790
        %3792 = vset.pattern.permute.xlu0 0
        %3793 = vperm.xlu0 %3792, %v3042
        %v3794 = vpop.permute.xlu0 %3793
        %3795 = vset.pattern.permute.xlu0 0
        %3796 = vperm.xlu0 %3795, %v3059
        %v3797 = vpop.permute.xlu0 %3796
        %3798 = vset.pattern.permute.xlu0 0
        %3799 = vperm.xlu0 %3798, %v3076
        %v3800 = vpop.permute.xlu0 %3799
        %3801 = vset.pattern.permute.xlu0 0
        %3802 = vperm.xlu0 %3801, %v3093
        %v3803 = vpop.permute.xlu0 %3802
        %3804 = vset.pattern.permute.xlu0 0
        %3805 = vperm.xlu0 %3804, %v3110
        %v3806 = vpop.permute.xlu0 %3805
        %3807 = vset.pattern.permute.xlu0 0
        %3808 = vperm.xlu0 %3807, %v3127
        %v3809 = vpop.permute.xlu0 %3808
        %3810 = vset.pattern.permute.xlu0 0
        %3811 = vperm.xlu0 %3810, %v3144
        %v3812 = vpop.permute.xlu0 %3811
        %3813 = vset.pattern.permute.xlu0 0
        %3814 = vperm.xlu0 %3813, %v3161
        %v3815 = vpop.permute.xlu0 %3814
        %3816 = vset.pattern.permute.xlu0 0
        %3817 = vperm.xlu0 %3816, %v3178
        %v3818 = vpop.permute.xlu0 %3817
        %3819 = vset.pattern.permute.xlu0 0
        %3820 = vperm.xlu0 %3819, %v3195
        %v3821 = vpop.permute.xlu0 %3820
        %3822 = vset.pattern.permute.xlu0 0
        %3823 = vperm.xlu0 %3822, %v3212
        %v3824 = vpop.permute.xlu0 %3823
        %3825 = vset.pattern.permute.xlu0 0
        %3826 = vperm.xlu0 %3825, %v3229
        %v3827 = vpop.permute.xlu0 %3826
        %3828 = vset.pattern.permute.xlu0 0
        %3829 = vperm.xlu0 %3828, %v3246
        %v3830 = vpop.permute.xlu0 %3829
        %3831 = vset.pattern.permute.xlu0 0
        %3832 = vperm.xlu0 %3831, %v3263
        %v3833 = vpop.permute.xlu0 %3832
        %3834 = vset.pattern.permute.xlu0 0
        %3835 = vperm.xlu0 %3834, %v3280
        %v3836 = vpop.permute.xlu0 %3835
        %3837 = vset.pattern.permute.xlu0 0
        %3838 = vperm.xlu0 %3837, %v3297
        %v3839 = vpop.permute.xlu0 %3838
        %3840 = vset.pattern.permute.xlu0 0
        %3841 = vperm.xlu0 %3840, %v3314
        %v3842 = vpop.permute.xlu0 %3841
        %3843 = vset.pattern.permute.xlu0 0
        %3844 = vperm.xlu0 %3843, %v3331
        %v3845 = vpop.permute.xlu0 %3844
        %3846 = vset.pattern.permute.xlu0 0
        %3847 = vperm.xlu0 %3846, %v3348
        %v3848 = vpop.permute.xlu0 %3847
        %3849 = vset.pattern.permute.xlu0 0
        %3850 = vperm.xlu0 %3849, %v3365
        %v3851 = vpop.permute.xlu0 %3850
        %3852 = vset.pattern.permute.xlu0 0
        %3853 = vperm.xlu0 %3852, %v3382
        %v3854 = vpop.permute.xlu0 %3853
        %3855 = vset.pattern.permute.xlu0 0
        %3856 = vperm.xlu0 %3855, %v3399
        %v3857 = vpop.permute.xlu0 %3856
        %3858 = vset.pattern.permute.xlu0 0
        %3859 = vperm.xlu0 %3858, %v3416
        %v3860 = vpop.permute.xlu0 %3859
        %3861 = vset.pattern.permute.xlu0 0
        %3862 = vperm.xlu0 %3861, %v3433
        %v3863 = vpop.permute.xlu0 %3862
        %3864 = vset.pattern.permute.xlu0 0
        %3865 = vperm.xlu0 %3864, %v3450
        %v3866 = vpop.permute.xlu0 %3865
        %3867 = vset.pattern.permute.xlu0 0
        %3868 = vperm.xlu0 %3867, %v3467
        %v3869 = vpop.permute.xlu0 %3868
        %3870 = vset.pattern.permute.xlu0 0
        %3871 = vperm.xlu0 %3870, %v3484
        %v3872 = vpop.permute.xlu0 %3871
        %3873 = vset.pattern.permute.xlu0 0
        %3874 = vperm.xlu0 %3873, %v3501
        %v3875 = vpop.permute.xlu0 %3874
        %3876 = vset.pattern.permute.xlu0 0
        %3877 = vperm.xlu0 %3876, %v3518
        %v3878 = vpop.permute.xlu0 %3877
        %3879 = vset.pattern.permute.xlu0 0
        %3880 = vperm.xlu0 %3879, %v3535
        %v3881 = vpop.permute.xlu0 %3880
        %3882 = vset.pattern.permute.xlu0 0
        %3883 = vperm.xlu0 %3882, %v3552
        %v3884 = vpop.permute.xlu0 %3883
        %3885 = vset.pattern.permute.xlu0 0
        %3886 = vperm.xlu0 %3885, %v3569
        %v3887 = vpop.permute.xlu0 %3886
        %3888 = vset.pattern.permute.xlu0 0
        %3889 = vperm.xlu0 %3888, %v3586
        %v3890 = vpop.permute.xlu0 %3889
        %3891 = vset.pattern.permute.xlu0 0
        %3892 = vperm.xlu0 %3891, %v3603
        %v3893 = vpop.permute.xlu0 %3892
        %3894 = vset.pattern.permute.xlu0 0
        %3895 = vperm.xlu0 %3894, %v3620
        %v3896 = vpop.permute.xlu0 %3895
        %3897 = vset.pattern.permute.xlu0 0
        %3898 = vperm.xlu0 %3897, %v3637
        %v3899 = vpop.permute.xlu0 %3898
        %3900 = vset.pattern.permute.xlu0 0
        %3901 = vperm.xlu0 %3900, %v3654
        %v3902 = vpop.permute.xlu0 %3901
        %3903 = vset.pattern.permute.xlu0 0
        %3904 = vperm.xlu0 %3903, %v3671
        %v3905 = vpop.permute.xlu0 %3904
        %3906 = vset.pattern.permute.xlu0 0
        %3907 = vperm.xlu0 %3906, %v3688
        %v3908 = vpop.permute.xlu0 %3907
        %3909 = vset.pattern.permute.xlu0 0
        %3910 = vperm.xlu0 %3909, %v3705
        %v3911 = vpop.permute.xlu0 %3910
        %3912 = vset.pattern.permute.xlu0 0
        %3913 = vperm.xlu0 %3912, %v3722
        %v3914 = vpop.permute.xlu0 %3913
        %v3915 = vlaneseq
        %v3916 = vand.u32 %v3915, 127
        %v3917 = vlaneseq
        %v3918 = vshrl.u32 %v3917, 7
        %v3919 = vsub.s32 %v3916, %v3918
        %v3920 = vrot.slane %v3725, %v3919
        %v3921 = vadd.s32 %v3916, 4294967288
        %v3922 = vlaneseq
        %v3923 = vshrl.u32 %v3922, 7
        %v3924 = vsub.s32 %v3921, %v3923
        %v3925 = vrot.slane %v3728, %v3924
        %vm3926 = vcmask 130112
        %v3927 = vsel %vm3926, %v3925, %v3920
        %v3928 = vadd.s32 %v3916, 4294967280
        %v3929 = vlaneseq
        %v3930 = vshrl.u32 %v3929, 7
        %v3931 = vsub.s32 %v3928, %v3930
        %v3932 = vrot.slane %v3731, %v3931
        %vm3933 = vcmask 195712
        %v3934 = vsel %vm3933, %v3932, %v3927
        %v3935 = vadd.s32 %v3916, 4294967272
        %v3936 = vlaneseq
        %v3937 = vshrl.u32 %v3936, 7
        %v3938 = vsub.s32 %v3935, %v3937
        %v3939 = vrot.slane %v3734, %v3938
        %vm3940 = vcmask 261312
        %v3941 = vsel %vm3940, %v3939, %v3934
        %v3942 = vadd.s32 %v3916, 4294967264
        %v3943 = vlaneseq
        %v3944 = vshrl.u32 %v3943, 7
        %v3945 = vsub.s32 %v3942, %v3944
        %v3946 = vrot.slane %v3737, %v3945
        %vm3947 = vcmask 326912
        %v3948 = vsel %vm3947, %v3946, %v3941
        %v3949 = vadd.s32 %v3916, 4294967256
        %v3950 = vlaneseq
        %v3951 = vshrl.u32 %v3950, 7
        %v3952 = vsub.s32 %v3949, %v3951
        %v3953 = vrot.slane %v3740, %v3952
        %vm3954 = vcmask 392512
        %v3955 = vsel %vm3954, %v3953, %v3948
        %v3956 = vadd.s32 %v3916, 4294967248
        %v3957 = vlaneseq
        %v3958 = vshrl.u32 %v3957, 7
        %v3959 = vsub.s32 %v3956, %v3958
        %v3960 = vrot.slane %v3743, %v3959
        %vm3961 = vcmask 458112
        %v3962 = vsel %vm3961, %v3960, %v3955
        %v3963 = vadd.s32 %v3916, 4294967240
        %v3964 = vlaneseq
        %v3965 = vshrl.u32 %v3964, 7
        %v3966 = vsub.s32 %v3963, %v3965
        %v3967 = vrot.slane %v3746, %v3966
        %vm3968 = vcmask 523712
        %v3969 = vsel %vm3968, %v3967, %v3962
        %v3970 = vadd.s32 %v3916, 4294967232
        %v3971 = vlaneseq
        %v3972 = vshrl.u32 %v3971, 7
        %v3973 = vsub.s32 %v3970, %v3972
        %v3974 = vrot.slane %v3749, %v3973
        %vm3975 = vcmask 589312
        %v3976 = vsel %vm3975, %v3974, %v3969
        %v3977 = vadd.s32 %v3916, 4294967224
        %v3978 = vlaneseq
        %v3979 = vshrl.u32 %v3978, 7
        %v3980 = vsub.s32 %v3977, %v3979
        %v3981 = vrot.slane %v3752, %v3980
        %vm3982 = vcmask 654912
        %v3983 = vsel %vm3982, %v3981, %v3976
        %v3984 = vadd.s32 %v3916, 4294967216
        %v3985 = vlaneseq
        %v3986 = vshrl.u32 %v3985, 7
        %v3987 = vsub.s32 %v3984, %v3986
        %v3988 = vrot.slane %v3755, %v3987
        %vm3989 = vcmask 720512
        %v3990 = vsel %vm3989, %v3988, %v3983
        %v3991 = vadd.s32 %v3916, 4294967208
        %v3992 = vlaneseq
        %v3993 = vshrl.u32 %v3992, 7
        %v3994 = vsub.s32 %v3991, %v3993
        %v3995 = vrot.slane %v3758, %v3994
        %vm3996 = vcmask 786112
        %v3997 = vsel %vm3996, %v3995, %v3990
        %v3998 = vadd.s32 %v3916, 4294967200
        %v3999 = vlaneseq
        %v4000 = vshrl.u32 %v3999, 7
        %v4001 = vsub.s32 %v3998, %v4000
        %v4002 = vrot.slane %v3761, %v4001
        %vm4003 = vcmask 851712
        %v4004 = vsel %vm4003, %v4002, %v3997
        %v4005 = vadd.s32 %v3916, 4294967192
        %v4006 = vlaneseq
        %v4007 = vshrl.u32 %v4006, 7
        %v4008 = vsub.s32 %v4005, %v4007
        %v4009 = vrot.slane %v3764, %v4008
        %vm4010 = vcmask 917312
        %v4011 = vsel %vm4010, %v4009, %v4004
        %v4012 = vadd.s32 %v3916, 4294967184
        %v4013 = vlaneseq
        %v4014 = vshrl.u32 %v4013, 7
        %v4015 = vsub.s32 %v4012, %v4014
        %v4016 = vrot.slane %v3767, %v4015
        %vm4017 = vcmask 982912
        %v4018 = vsel %vm4017, %v4016, %v4011
        %v4019 = vadd.s32 %v3916, 4294967176
        %v4020 = vlaneseq
        %v4021 = vshrl.u32 %v4020, 7
        %v4022 = vsub.s32 %v4019, %v4021
        %v4023 = vrot.slane %v3770, %v4022
        %vm4024 = vcmask 1048512
        %v4025 = vsel %vm4024, %v4023, %v4018
        %v4026 = vlaneseq
        %v4027 = vshrl.u32 %v4026, 7
        %v4028 = vsub.s32 %v3916, %v4027
        %v4029 = vrot.slane %v3773, %v4028
        %v4030 = vlaneseq
        %v4031 = vshrl.u32 %v4030, 7
        %v4032 = vsub.s32 %v3921, %v4031
        %v4033 = vrot.slane %v3776, %v4032
        %v4034 = vsel %vm3926, %v4033, %v4029
        %v4035 = vlaneseq
        %v4036 = vshrl.u32 %v4035, 7
        %v4037 = vsub.s32 %v3928, %v4036
        %v4038 = vrot.slane %v3779, %v4037
        %v4039 = vsel %vm3933, %v4038, %v4034
        %v4040 = vlaneseq
        %v4041 = vshrl.u32 %v4040, 7
        %v4042 = vsub.s32 %v3935, %v4041
        %v4043 = vrot.slane %v3782, %v4042
        %v4044 = vsel %vm3940, %v4043, %v4039
        %v4045 = vlaneseq
        %v4046 = vshrl.u32 %v4045, 7
        %v4047 = vsub.s32 %v3942, %v4046
        %v4048 = vrot.slane %v3785, %v4047
        %v4049 = vsel %vm3947, %v4048, %v4044
        %v4050 = vlaneseq
        %v4051 = vshrl.u32 %v4050, 7
        %v4052 = vsub.s32 %v3949, %v4051
        %v4053 = vrot.slane %v3788, %v4052
        %v4054 = vsel %vm3954, %v4053, %v4049
        %v4055 = vlaneseq
        %v4056 = vshrl.u32 %v4055, 7
        %v4057 = vsub.s32 %v3956, %v4056
        %v4058 = vrot.slane %v3791, %v4057
        %v4059 = vsel %vm3961, %v4058, %v4054
        %v4060 = vlaneseq
        %v4061 = vshrl.u32 %v4060, 7
        %v4062 = vsub.s32 %v3963, %v4061
        %v4063 = vrot.slane %v3794, %v4062
        %v4064 = vsel %vm3968, %v4063, %v4059
        %v4065 = vlaneseq
        %v4066 = vshrl.u32 %v4065, 7
        %v4067 = vsub.s32 %v3970, %v4066
        %v4068 = vrot.slane %v3797, %v4067
        %v4069 = vsel %vm3975, %v4068, %v4064
        %v4070 = vlaneseq
        %v4071 = vshrl.u32 %v4070, 7
        %v4072 = vsub.s32 %v3977, %v4071
        %v4073 = vrot.slane %v3800, %v4072
        %v4074 = vsel %vm3982, %v4073, %v4069
        %v4075 = vlaneseq
        %v4076 = vshrl.u32 %v4075, 7
        %v4077 = vsub.s32 %v3984, %v4076
        %v4078 = vrot.slane %v3803, %v4077
        %v4079 = vsel %vm3989, %v4078, %v4074
        %v4080 = vlaneseq
        %v4081 = vshrl.u32 %v4080, 7
        %v4082 = vsub.s32 %v3991, %v4081
        %v4083 = vrot.slane %v3806, %v4082
        %v4084 = vsel %vm3996, %v4083, %v4079
        %v4085 = vlaneseq
        %v4086 = vshrl.u32 %v4085, 7
        %v4087 = vsub.s32 %v3998, %v4086
        %v4088 = vrot.slane %v3809, %v4087
        %v4089 = vsel %vm4003, %v4088, %v4084
        %v4090 = vlaneseq
        %v4091 = vshrl.u32 %v4090, 7
        %v4092 = vsub.s32 %v4005, %v4091
        %v4093 = vrot.slane %v3812, %v4092
        %v4094 = vsel %vm4010, %v4093, %v4089
        %v4095 = vlaneseq
        %v4096 = vshrl.u32 %v4095, 7
        %v4097 = vsub.s32 %v4012, %v4096
        %v4098 = vrot.slane %v3815, %v4097
        %v4099 = vsel %vm4017, %v4098, %v4094
        %v4100 = vlaneseq
        %v4101 = vshrl.u32 %v4100, 7
        %v4102 = vsub.s32 %v4019, %v4101
        %v4103 = vrot.slane %v3818, %v4102
        %v4104 = vsel %vm4024, %v4103, %v4099
        %v4105 = vlaneseq
        %v4106 = vshrl.u32 %v4105, 7
        %v4107 = vsub.s32 %v3916, %v4106
        %v4108 = vrot.slane %v3821, %v4107
        %v4109 = vlaneseq
        %v4110 = vshrl.u32 %v4109, 7
        %v4111 = vsub.s32 %v3921, %v4110
        %v4112 = vrot.slane %v3824, %v4111
        %v4113 = vsel %vm3926, %v4112, %v4108
        %v4114 = vlaneseq
        %v4115 = vshrl.u32 %v4114, 7
        %v4116 = vsub.s32 %v3928, %v4115
        %v4117 = vrot.slane %v3827, %v4116
        %v4118 = vsel %vm3933, %v4117, %v4113
        %v4119 = vlaneseq
        %v4120 = vshrl.u32 %v4119, 7
        %v4121 = vsub.s32 %v3935, %v4120
        %v4122 = vrot.slane %v3830, %v4121
        %v4123 = vsel %vm3940, %v4122, %v4118
        %v4124 = vlaneseq
        %v4125 = vshrl.u32 %v4124, 7
        %v4126 = vsub.s32 %v3942, %v4125
        %v4127 = vrot.slane %v3833, %v4126
        %v4128 = vsel %vm3947, %v4127, %v4123
        %v4129 = vlaneseq
        %v4130 = vshrl.u32 %v4129, 7
        %v4131 = vsub.s32 %v3949, %v4130
        %v4132 = vrot.slane %v3836, %v4131
        %v4133 = vsel %vm3954, %v4132, %v4128
        %v4134 = vlaneseq
        %v4135 = vshrl.u32 %v4134, 7
        %v4136 = vsub.s32 %v3956, %v4135
        %v4137 = vrot.slane %v3839, %v4136
        %v4138 = vsel %vm3961, %v4137, %v4133
        %v4139 = vlaneseq
        %v4140 = vshrl.u32 %v4139, 7
        %v4141 = vsub.s32 %v3963, %v4140
        %v4142 = vrot.slane %v3842, %v4141
        %v4143 = vsel %vm3968, %v4142, %v4138
        %v4144 = vlaneseq
        %v4145 = vshrl.u32 %v4144, 7
        %v4146 = vsub.s32 %v3970, %v4145
        %v4147 = vrot.slane %v3845, %v4146
        %v4148 = vsel %vm3975, %v4147, %v4143
        %v4149 = vlaneseq
        %v4150 = vshrl.u32 %v4149, 7
        %v4151 = vsub.s32 %v3977, %v4150
        %v4152 = vrot.slane %v3848, %v4151
        %v4153 = vsel %vm3982, %v4152, %v4148
        %v4154 = vlaneseq
        %v4155 = vshrl.u32 %v4154, 7
        %v4156 = vsub.s32 %v3984, %v4155
        %v4157 = vrot.slane %v3851, %v4156
        %v4158 = vsel %vm3989, %v4157, %v4153
        %v4159 = vlaneseq
        %v4160 = vshrl.u32 %v4159, 7
        %v4161 = vsub.s32 %v3991, %v4160
        %v4162 = vrot.slane %v3854, %v4161
        %v4163 = vsel %vm3996, %v4162, %v4158
        %v4164 = vlaneseq
        %v4165 = vshrl.u32 %v4164, 7
        %v4166 = vsub.s32 %v3998, %v4165
        %v4167 = vrot.slane %v3857, %v4166
        %v4168 = vsel %vm4003, %v4167, %v4163
        %v4169 = vlaneseq
        %v4170 = vshrl.u32 %v4169, 7
        %v4171 = vsub.s32 %v4005, %v4170
        %v4172 = vrot.slane %v3860, %v4171
        %v4173 = vsel %vm4010, %v4172, %v4168
        %v4174 = vlaneseq
        %v4175 = vshrl.u32 %v4174, 7
        %v4176 = vsub.s32 %v4012, %v4175
        %v4177 = vrot.slane %v3863, %v4176
        %v4178 = vsel %vm4017, %v4177, %v4173
        %v4179 = vlaneseq
        %v4180 = vshrl.u32 %v4179, 7
        %v4181 = vsub.s32 %v4019, %v4180
        %v4182 = vrot.slane %v3866, %v4181
        %v4183 = vsel %vm4024, %v4182, %v4178
        %v4184 = vlaneseq
        %v4185 = vshrl.u32 %v4184, 7
        %v4186 = vsub.s32 %v3916, %v4185
        %v4187 = vrot.slane %v3869, %v4186
        %v4188 = vlaneseq
        %v4189 = vshrl.u32 %v4188, 7
        %v4190 = vsub.s32 %v3921, %v4189
        %v4191 = vrot.slane %v3872, %v4190
        %v4192 = vsel %vm3926, %v4191, %v4187
        %v4193 = vlaneseq
        %v4194 = vshrl.u32 %v4193, 7
        %v4195 = vsub.s32 %v3928, %v4194
        %v4196 = vrot.slane %v3875, %v4195
        %v4197 = vsel %vm3933, %v4196, %v4192
        %v4198 = vlaneseq
        %v4199 = vshrl.u32 %v4198, 7
        %v4200 = vsub.s32 %v3935, %v4199
        %v4201 = vrot.slane %v3878, %v4200
        %v4202 = vsel %vm3940, %v4201, %v4197
        %v4203 = vlaneseq
        %v4204 = vshrl.u32 %v4203, 7
        %v4205 = vsub.s32 %v3942, %v4204
        %v4206 = vrot.slane %v3881, %v4205
        %v4207 = vsel %vm3947, %v4206, %v4202
        %v4208 = vlaneseq
        %v4209 = vshrl.u32 %v4208, 7
        %v4210 = vsub.s32 %v3949, %v4209
        %v4211 = vrot.slane %v3884, %v4210
        %v4212 = vsel %vm3954, %v4211, %v4207
        %v4213 = vlaneseq
        %v4214 = vshrl.u32 %v4213, 7
        %v4215 = vsub.s32 %v3956, %v4214
        %v4216 = vrot.slane %v3887, %v4215
        %v4217 = vsel %vm3961, %v4216, %v4212
        %v4218 = vlaneseq
        %v4219 = vshrl.u32 %v4218, 7
        %v4220 = vsub.s32 %v3963, %v4219
        %v4221 = vrot.slane %v3890, %v4220
        %v4222 = vsel %vm3968, %v4221, %v4217
        %v4223 = vlaneseq
        %v4224 = vshrl.u32 %v4223, 7
        %v4225 = vsub.s32 %v3970, %v4224
        %v4226 = vrot.slane %v3893, %v4225
        %v4227 = vsel %vm3975, %v4226, %v4222
        %v4228 = vlaneseq
        %v4229 = vshrl.u32 %v4228, 7
        %v4230 = vsub.s32 %v3977, %v4229
        %v4231 = vrot.slane %v3896, %v4230
        %v4232 = vsel %vm3982, %v4231, %v4227
        %v4233 = vlaneseq
        %v4234 = vshrl.u32 %v4233, 7
        %v4235 = vsub.s32 %v3984, %v4234
        %v4236 = vrot.slane %v3899, %v4235
        %v4237 = vsel %vm3989, %v4236, %v4232
        %v4238 = vlaneseq
        %v4239 = vshrl.u32 %v4238, 7
        %v4240 = vsub.s32 %v3991, %v4239
        %v4241 = vrot.slane %v3902, %v4240
        %v4242 = vsel %vm3996, %v4241, %v4237
        %v4243 = vlaneseq
        %v4244 = vshrl.u32 %v4243, 7
        %v4245 = vsub.s32 %v3998, %v4244
        %v4246 = vrot.slane %v3905, %v4245
        %v4247 = vsel %vm4003, %v4246, %v4242
        %v4248 = vlaneseq
        %v4249 = vshrl.u32 %v4248, 7
        %v4250 = vsub.s32 %v4005, %v4249
        %v4251 = vrot.slane %v3908, %v4250
        %v4252 = vsel %vm4010, %v4251, %v4247
        %v4253 = vlaneseq
        %v4254 = vshrl.u32 %v4253, 7
        %v4255 = vsub.s32 %v4012, %v4254
        %v4256 = vrot.slane %v3911, %v4255
        %v4257 = vsel %vm4017, %v4256, %v4252
        %v4258 = vlaneseq
        %v4259 = vshrl.u32 %v4258, 7
        %v4260 = vsub.s32 %v4019, %v4259
        %v4261 = vrot.slane %v3914, %v4260
        %v4262 = vsel %vm4024, %v4261, %v4257
        %vm4263 = vcmask 1041409
        %v4264 = vsel %vm4263, %v4183, %v4025
        %v4265 = vsel %vm4263, %v4262, %v4104
        %v4266 = vcombine.low %v4264, %v4265
        %v4268 = vunpack.c.l.s4 1983009808
        %v4269 = vunpack.c.0.s8 %v4268
        %v4270 = vlaneseq
        %v4271 = vshrl.u32 %v4270, 7
        %v4272 = vsub.s32 %v4269, %v4271
        %v4273 = vrot.slane %v4266, %v4272
        %4275 = vst [vmem:[%s265] sm:$0xf] %v4273
        %s4276 = sand.u32 %s117, 1
        %s4277 = scalar_lea.sflag [#allocation4], %s4276
        %s4278 = sand.u32 %s117, 1
        %s4279 = smul.addr %s4278, 4
        %s4280 = scalar_lea.vmem [#allocation8], %s4279
        // Predicated region
        $region49: #{tpu_custom_call.1} parent=35 // pred_check
          %p4281 = pneg %p127
        $region50: #{tpu_custom_call.1} parent=35 // pred_check_branch
          %4283 = sbr.rel (%p4281) target = $region52
        $region51: #{tpu_custom_call.1} parent=35 // pred_region
          %s4284 = smul.u32 2, %s20
          %s4286 = ssub.s32 64, 64
          %4287 = vsyncadd %s4277, %s4286
          %s4288 = smul.addr %s4284, 32
          %s4289 = scalar_lea.hbm %s4, %s4288
          %s4291 = sshll.u32 %s4280, 4
          %s4292 = int_to_ptr.vmem [resolvable:$true] %s4291
          %4294 = dma.vmem_to_hbm [thread:$0]  %s4292, 64, %s4289, %s4277
        $region52: #{tpu_custom_call.1} parent=35 // pred_fallthru
          _
      $region36: #{tpu_custom_call.1} parent=5 // pred_fallthru
        _
      %p4295 = scmp.le.s32.totalorder 2, %s15
      // Predicated region
      $region53: #{tpu_custom_call.1} parent=5 // pred_check
        %p4296 = pneg %p4295
      $region54: #{tpu_custom_call.1} parent=5 // pred_check_branch
        %4298 = sbr.rel (%p4296) target = $region56
      $region55: #{tpu_custom_call.1} parent=5 // pred_region
        %s4299 = ssub.s32 %s15, 2
        // Predicated region
        $region57: #{tpu_custom_call.1} parent=55 // pred_check
          %p4300 = pneg %p133
        $region58: #{tpu_custom_call.1} parent=55 // pred_check_branch
          %4302 = sbr.rel (%p4300) target = $region60
        $region59: #{tpu_custom_call.1} parent=55 // pred_region
          %s4303 = sand.u32 %s118, 1
          %s4304 = scalar_lea.sflag [#allocation4], %s4303
          %s4305 = sand.u32 %s118, 1
          %s4306 = smul.addr %s4305, 4
          %s4307 = scalar_lea.vmem [#allocation8], %s4306
          %4308 = dma.done %s4304, 64
        $region60: #{tpu_custom_call.1} parent=55 // pred_fallthru
          _
      $region56: #{tpu_custom_call.1} parent=5 // pred_fallthru
        _
    $region6: #{tpu_custom_call.1} parent=1 // loop_footer
      %s19 = sadd.s32 1, %s15
    $region7: #{tpu_custom_call.1} parent=1 // loop_footer_branch
      %14 = sbr.rel target = $region3
    $region8: #{tpu_custom_call.1} parent=1 // loop_exit
      _
    %4309 = vsyncpa [#allocation3], 1
    %s4310 = scalar_lea.sflag [#allocation3], 1
    %4311 = vsyncpa %s4310, 1
    %4312 = vsyncpa [#allocation6], 1
    %4313 = vsyncpa [#allocation4], 1
    %s4314 = scalar_lea.sflag [#allocation4], 1
    %4315 = vsyncpa %s4314, 1

</llo_original>
